<compile_context>
chip_gen: v6e
topology: v6e:2x2x1
jax: 0.10.0
libtpu: 0.0.40
codegen_flags: <defaults>
</compile_context>

<pallas_src>
import functools

import jax
import jax.numpy as jnp
from jax import lax
from jax.experimental import pallas as pl
from jax.experimental.pallas import tpu as pltpu


def _round_up(x, m):
    return -(-x // m) * m


# ----------------------------------------------------------------------------
# Pallas kernel.  grid = (batch blocks, vocab tiles); the vocab axis is a
# K-reduction of the bag-of-words projection into xp_scr.
# ----------------------------------------------------------------------------
def hcn_kernel(bow_ref,            # (T*B, Vk)  bf16 bag-of-words (vocab tile)
               embd_ref,           # (T*B, E)   f32 mean word embedding
               ctx_ref,            # (T*B, 4)   f32
               prev_ref,           # (T*B, A)   f32
               maskp_ref,          # (T*B, AP)  f32 act_filter, lane padded
               w_bow_ref,          # (Vk, 4Hp)  bf16
               w_emb_ref,          # (E, 4Hp)   f32
               w_ctx_ref,          # (4, 4Hp)   f32
               w_prev_ref,         # (A, 4Hp)   f32
               w_maskp_ref,        # (AP, 4Hp)  f32 (zero pad rows)
               w_hh_ref,           # (Hp, 4Hp)  bf16 (pre-transposed, zero pad rows)
               b_ref,              # (1, 4Hp)   f32  b_ih + b_hh (zero pad lanes)
               w_fc_ref,           # (Hp, AP)   bf16 (zero pad rows/cols)
               b_fc_ref,           # (1, AP)    f32 (-1e30 in pad lanes)
               y_ref,              # (T*B, AP)  output probabilities
               xp_scr,             # (T*B, 4Hp) scratch: input-projection accumulator
               hs_scr,             # (T*B, Hp)  scratch: tanh(h_t)
               *, hidden_pad, batch_block, unroll):
    Hp = hidden_pad
    B = batch_block
    TB = y_ref.shape[0]
    T = TB // B
    f32 = jnp.float32
    bf16 = jnp.bfloat16
    kv = pl.program_id(1)
    nvk = pl.num_programs(1)

    # --- first vocab tile: init the accumulator with every V-independent term.
    @pl.when(kv == 0)
    def _():
        xp_scr[...] = (
            jnp.dot(embd_ref[...], w_emb_ref[...], preferred_element_type=f32)
            + jnp.dot(ctx_ref[...], w_ctx_ref[...], preferred_element_type=f32)
            + jnp.dot(prev_ref[...], w_prev_ref[...], preferred_element_type=f32)
            + jnp.dot(maskp_ref[...], w_maskp_ref[...], preferred_element_type=f32)
            + b_ref[...])

    # --- every vocab tile: accumulate the bf16 bag-of-words projection.
    xp_scr[...] += jnp.dot(bow_ref[...], w_bow_ref[...],
                           preferred_element_type=f32)

    # --- last vocab tile: serial LSTM recurrence + lane-dense epilogue.
    @pl.when(kv == nvk - 1)
    def _():
        w_hh = w_hh_ref[...]                              # bf16, hoisted

        def gate_math(gates, c):
            # Hp is a multiple of 128 -> every gate slice is a free lane-aligned view.
            i_g = jax.nn.sigmoid(gates[:, 0 * Hp:1 * Hp])
            f_g = jax.nn.sigmoid(gates[:, 1 * Hp:2 * Hp])
            g_g = jnp.tanh(gates[:, 2 * Hp:3 * Hp])
            o_g = jax.nn.sigmoid(gates[:, 3 * Hp:4 * Hp])
            c = f_g * c + i_g * g_g
            h = o_g * jnp.tanh(c)
            return h, c

        # Peeled t == 0: zero initial state -> skip the h @ W_hh matmul.
        h, c = gate_math(xp_scr[pl.ds(0, B), :], jnp.zeros((B, Hp), f32))
        hs_scr[pl.ds(0, B), :] = jnp.tanh(h)

        def step(t, carry):
            h, c = carry
            row = pl.multiple_of(t * B, B)                # aligned dynamic offset
            gates = xp_scr[pl.ds(row, B), :] + jnp.dot(
                h.astype(bf16), w_hh, preferred_element_type=f32)
            h, c = gate_math(gates, c)
            hs_scr[pl.ds(row, B), :] = jnp.tanh(h)
            return (h, c)

        lax.fori_loop(1, T, step, (h, c), unroll=unroll)

        # Epilogue: one bf16 fc matmul, batched softmax, masked lane-dense store.
        logits = jnp.dot(hs_scr[...].astype(bf16), w_fc_ref[...],
                         preferred_element_type=f32) + b_fc_ref[...]
        z = logits - jnp.max(logits, axis=-1, keepdims=True)
        e = jnp.exp(z)                                    # pad lanes (-1e30) -> 0
        probs = e / jnp.sum(e, axis=-1, keepdims=True)    # exact normalisation
        y_ref[...] = (probs * maskp_ref[...]).astype(y_ref.dtype)


# ----------------------------------------------------------------------------
# Wrapper
# ----------------------------------------------------------------------------
def hybrid_code_network(uttr, context, bow, prev, act_filter, params,
                        *, vocab_size, embd_size, hidden_size, action_size,
                        batch_block=None, vocab_tile=4096,
                        out_dtype=jnp.float32):
    bs, T, sent_len = uttr.shape
    V, E, H, A = vocab_size, embd_size, hidden_size, action_size
    f32, bf16 = jnp.float32, jnp.bfloat16

    # Batch block: amortise the serial h @ W_hh MXU pass over as many dialogues
    # as possible (128 sublane rows fill the MXU on v5e; pass 256 on v6e/v7x).
    if batch_block is None:
        batch_block = min(128, _round_up(bs, 8))
    B = max(8, _round_up(batch_block, 8))
    nb = -(-bs // B)
    bs_pad = nb * B

    AP = _round_up(A, 128)            # lane-dense action dim
    Hp = _round_up(H, 128)            # per-gate lane padding
    G4 = 4 * Hp

    # Vocab (K) tiling for the bag-of-words projection.
    Vk = min(_round_up(V, 128), _round_up(vocab_tile, 128))
    Vp = _round_up(V, Vk)
    nvk = Vp // Vk

    # ---- XLA-side glue: mean word embedding via gather + layout plumbing only.
    embd = jnp.mean(params["emb"][uttr], axis=2).astype(f32)      # (bs, T, E)

    def prep(x, pad_last_to=None, dtype=f32):
        # (bs, T, F) -> (nb, T*B, Fp): batch-block outer, t-major / b-minor inner.
        F = x.shape[-1]
        if pad_last_to is not None and pad_last_to > F:
            x = jnp.pad(x, ((0, 0), (0, 0), (0, pad_last_to - F)))
            F = pad_last_to
        if bs_pad > bs:
            x = jnp.pad(x, ((0, bs_pad - bs), (0, 0), (0, 0)))
        x = x.reshape(nb, B, T, F).transpose(0, 2, 1, 3).reshape(nb, T * B, F)
        return x.astype(dtype)

    bow_p = prep(bow, pad_last_to=Vp, dtype=bf16)   # 0/1 values: exact in bf16
    embd_p = prep(embd)
    ctx_p = prep(context)
    prev_p = prep(prev)
    maskp_p = prep(act_filter, pad_last_to=AP)

    # ---- weights -------------------------------------------------------------
    W_ih, W_hh = params["w_ih"], params["w_hh"]
    W_fc, b_fc = params["w_fc"], params["b_fc"]
    bias = (params["b_ih"] + params["b_hh"]).reshape(1, 4 * H).astype(f32)

    def gate_pad(w_t):
        # (F, 4H) -> (F, 4*Hp): each LSTM gate gets its own 128-aligned lane
        # segment so per-timestep gate slices are free vreg views.  Pad lanes
        # stay exactly zero through the recurrence.
        out = jnp.zeros((w_t.shape[0], G4), f32)
        for g in range(4):
            out = out.at[:, g * Hp:g * Hp + H].set(w_t[:, g * H:(g + 1) * H])
        return out

    # Split W_ih along the PyTorch concat order: bow | ctx | embd | prev | mask.
    o = 0
    w_bow_t = W_ih[:, o:o + V].T; o += V
    w_ctx_t = W_ih[:, o:o + 4].T; o += 4
    w_emb_t = W_ih[:, o:o + E].T; o += E
    w_prev_t = W_ih[:, o:o + A].T; o += A
    w_mask_t = W_ih[:, o:o + A].T; o += A

    w_bow_p = jnp.zeros((Vp, G4), f32).at[:V].set(gate_pad(w_bow_t)).astype(bf16)
    w_emb_p = gate_pad(w_emb_t)
    w_ctx_p = gate_pad(w_ctx_t)
    w_prev_p = gate_pad(w_prev_t)
    w_mask_p = jnp.zeros((AP, G4), f32).at[:A].set(gate_pad(w_mask_t))
    w_hh_p = jnp.zeros((Hp, G4), f32).at[:H].set(
        gate_pad(W_hh.T.astype(f32))).astype(bf16)
    bias_p = gate_pad(bias)
    w_fc_p = jnp.zeros((Hp, AP), f32).at[:H, :A].set(W_fc.T).astype(bf16)
    b_fc_p = jnp.full((1, AP), -1e30, f32).at[0, :A].set(b_fc)

    kernel = functools.partial(hcn_kernel, hidden_pad=Hp, batch_block=B,
                               unroll=True if T <= 16 else 4)

    def act_spec(last):
        return pl.BlockSpec((None, T * B, last), lambda i, k: (i, 0, 0))

    def w_spec(shape):
        return pl.BlockSpec(shape, lambda i, k: (0,) * len(shape))

    # Scoped VMEM limit: above the 16/32 MiB defaults for production sizes but
    # safely below the physical cap (64 MiB on v7x, 128 MiB on v5e/v6e).
    try:
        vmem_cap = pltpu.get_tpu_info().vmem_capacity_bytes
    except Exception:
        vmem_cap = 128 * 1024 * 1024
    vmem_limit = int(min(vmem_cap * 3 // 4, 100 * 1024 * 1024))

    y = pl.pallas_call(
        kernel,
        out_shape=jax.ShapeDtypeStruct((nb, T * B, AP), out_dtype),
        grid_spec=pltpu.PrefetchScalarGridSpec(
            num_scalar_prefetch=0,
            grid=(nb, nvk),
            in_specs=[
                pl.BlockSpec((None, T * B, Vk), lambda i, k: (i, 0, k)),  # bow
                act_spec(E),               # mean word embedding
                act_spec(4),               # context
                act_spec(A),               # prev action
                act_spec(AP),              # act_filter (lane padded)
                pl.BlockSpec((Vk, G4), lambda i, k: (k, 0)),              # w_bow
                w_spec((E, G4)),           # w_emb
                w_spec((4, G4)),           # w_ctx
                w_spec((A, G4)),           # w_prev
                w_spec((AP, G4)),          # w_mask (padded rows = 0)
                w_spec((Hp, G4)),          # w_hh (bf16)
                w_spec((1, G4)),           # bias
                w_spec((Hp, AP)),          # w_fc (bf16, padded = 0)
                w_spec((1, AP)),           # b_fc (pad = -1e30)
            ],
            out_specs=pl.BlockSpec((None, T * B, AP), lambda i, k: (i, 0, 0)),
            scratch_shapes=[
                pltpu.VMEM((T * B, G4), jnp.float32),   # input-projection acc
                pltpu.VMEM((T * B, Hp), jnp.float32),   # tanh(h_t)
            ],
        ),
        compiler_params=pltpu.CompilerParams(
            dimension_semantics=("parallel", "arbitrary"),
            vmem_limit_bytes=vmem_limit),
    )(bow_p, embd_p, ctx_p, prev_p, maskp_p,
      w_bow_p, w_emb_p, w_ctx_p, w_prev_p, w_mask_p,
      w_hh_p, bias_p, w_fc_p, b_fc_p)

    # Undo the block layout: (nb, T*B, AP) -> (bs, T, A).
    y = y.reshape(nb, T, B, AP).transpose(0, 2, 1, 3).reshape(bs_pad, T, AP)
    return y[:bs, :, :A]


# ----------------------------------------------------------------------------
# Pure-JAX reference (mirrors the PyTorch forward) for a correctness check
# ----------------------------------------------------------------------------
def ref_forward(uttr, context, bow, prev, act_filter, params,
                *, vocab_size, hidden_size):
    bs, dlg_len, sent_len = uttr.shape
    H = hidden_size
    embd = jnp.mean(params["emb"][uttr], axis=2)                     # (bs, T, E)
    x = jnp.concatenate([bow, context, embd, prev, act_filter], axis=2)
    W_ih, W_hh = params["w_ih"], params["w_hh"]
    b = params["b_ih"] + params["b_hh"]

    def step(carry, xt):
        h, c = carry
        gates = xt @ W_ih.T + b + h @ W_hh.T
        i = jax.nn.sigmoid(gates[:, 0:H])
        f = jax.nn.sigmoid(gates[:, H:2 * H])
        g = jnp.tanh(gates[:, 2 * H:3 * H])
        o = jax.nn.sigmoid(gates[:, 3 * H:4 * H])
        c = f * c + i * g
        h = o * jnp.tanh(c)
        return (h, c), h

    x_t = jnp.swapaxes(x, 0, 1)                                      # (T, bs, D)
    init = (jnp.zeros((bs, H), jnp.float32), jnp.zeros((bs, H), jnp.float32))
    _, hs = lax.scan(step, init, x_t)
    hs = jnp.swapaxes(hs, 0, 1)                                      # (bs, T, H)
    logits = jnp.tanh(hs) @ params["w_fc"].T + params["b_fc"]
    y = jax.nn.softmax(logits, axis=-1) * act_filter
    return y


# ----------------------------------------------------------------------------
# Driver
# ----------------------------------------------------------------------------
if __name__ == "__main__":
    vocab_size, embd_size, hidden_size, action_size = 32, 16, 32, 8
    bs, dlg_len, sent_len = 2, 8, 6
    lstm_in_dim = vocab_size + 4 + embd_size + action_size + action_size

    key = jax.random.PRNGKey(0)
    ks = jax.random.split(key, 12)

    def u(k, shape, scale=0.1):
        return jax.random.uniform(k, shape, jnp.float32, -scale, scale)

    params = {
        "emb":  u(ks[0], (vocab_size, embd_size), 0.5),
        "w_ih": u(ks[1], (4 * hidden_size, lstm_in_dim)),
        "w_hh": u(ks[2], (4 * hidden_size, hidden_size)),
        "b_ih": u(ks[3], (4 * hidden_size,)),
        "b_hh": u(ks[4], (4 * hidden_size,)),
        "w_fc": u(ks[5], (action_size, hidden_size), 0.2),
        "b_fc": u(ks[6], (action_size,), 0.2),
    }

    uttr = jax.random.randint(ks[7], (bs, dlg_len, sent_len), 0, vocab_size,
                              dtype=jnp.int32)
    context = u(ks[8], (bs, dlg_len, 4), 1.0)
    bow = (jax.random.uniform(ks[9], (bs, dlg_len, vocab_size)) > 0.7).astype(jnp.float32)
    prev = (jax.random.uniform(ks[10], (bs, dlg_len, action_size)) > 0.7).astype(jnp.float32)
    act_filter = (jax.random.uniform(ks[11], (bs, dlg_len, action_size)) > 0.3).astype(jnp.float32)

    fwd = jax.jit(functools.partial(
        hybrid_code_network,
        vocab_size=vocab_size, embd_size=embd_size,
        hidden_size=hidden_size, action_size=action_size))

    y = jax.block_until_ready(fwd(uttr, context, bow, prev, act_filter, params))

    y_ref = jax.block_until_ready(
        ref_forward(uttr, context, bow, prev, act_filter, params,
                    vocab_size=vocab_size, hidden_size=hidden_size))

    assert y.shape == (bs, dlg_len, action_size)
    err = jnp.max(jnp.abs(y - y_ref))
    # Kernel runs the bow projection, the h @ W_hh recurrence matmul and the fc
    # matmul with bf16 operands (f32 accumulation); softmax itself is exact.
    assert jnp.allclose(y, y_ref, atol=1e-2, rtol=2e-2), f"max abs err {err}"

    print("KERNEL_OK")
</pallas_src>

<mosaic_0001>
module attributes {stable_mosaic.version = 11 : i64} {
  func.func @hcn_kernel(%arg0: i32, %arg1: i32, %arg2: memref<1x64x128xbf16, #tpu.memory_space<vmem>>, %arg3: memref<1x64x16xf32, #tpu.memory_space<vmem>>, %arg4: memref<1x64x4xf32, #tpu.memory_space<vmem>>, %arg5: memref<1x64x8xf32, #tpu.memory_space<vmem>>, %arg6: memref<1x64x128xf32, #tpu.memory_space<vmem>>, %arg7: memref<128x512xbf16, #tpu.memory_space<vmem>>, %arg8: memref<16x512xf32, #tpu.memory_space<vmem>>, %arg9: memref<4x512xf32, #tpu.memory_space<vmem>>, %arg10: memref<8x512xf32, #tpu.memory_space<vmem>>, %arg11: memref<128x512xf32, #tpu.memory_space<vmem>>, %arg12: memref<128x512xbf16, #tpu.memory_space<vmem>>, %arg13: memref<1x512xf32, #tpu.memory_space<vmem>>, %arg14: memref<128x128xbf16, #tpu.memory_space<vmem>>, %arg15: memref<1x128xf32, #tpu.memory_space<vmem>>, %arg16: memref<1x64x128xf32, #tpu.memory_space<vmem>>, %arg17: memref<64x512xf32, #tpu.memory_space<vmem>>, %arg18: memref<64x128xf32, #tpu.memory_space<vmem>>) attributes {dimension_semantics = [#tpu.dimension_semantics<parallel>, #tpu.dimension_semantics<arbitrary>], iteration_bounds = array<i64: 1, 1>, scalar_prefetch = 0 : i64, scratch_operands = 2 : i64, tpu.core_type = #tpu.core_type<tc>, window_params = [{transform_indices = @transform_0, window_bounds = array<i64: 1, 64, 128>}, {transform_indices = @transform_1, window_bounds = array<i64: 1, 64, 16>}, {transform_indices = @transform_2, window_bounds = array<i64: 1, 64, 4>}, {transform_indices = @transform_3, window_bounds = array<i64: 1, 64, 8>}, {transform_indices = @transform_4, window_bounds = array<i64: 1, 64, 128>}, {transform_indices = @transform_5, window_bounds = array<i64: 128, 512>}, {pipeline_mode = #tpu.pipeline_mode<synchronous>, transform_indices = @transform_6, window_bounds = array<i64: 16, 512>}, {pipeline_mode = #tpu.pipeline_mode<synchronous>, transform_indices = @transform_7, window_bounds = array<i64: 4, 512>}, {pipeline_mode = #tpu.pipeline_mode<synchronous>, transform_indices = @transform_8, window_bounds = array<i64: 8, 512>}, {pipeline_mode = #tpu.pipeline_mode<synchronous>, transform_indices = @transform_9, window_bounds = array<i64: 128, 512>}, {pipeline_mode = #tpu.pipeline_mode<synchronous>, transform_indices = @transform_10, window_bounds = array<i64: 128, 512>}, {pipeline_mode = #tpu.pipeline_mode<synchronous>, transform_indices = @transform_11, window_bounds = array<i64: 1, 512>}, {pipeline_mode = #tpu.pipeline_mode<synchronous>, transform_indices = @transform_12, window_bounds = array<i64: 128, 128>}, {pipeline_mode = #tpu.pipeline_mode<synchronous>, transform_indices = @transform_13, window_bounds = array<i64: 1, 128>}, {transform_indices = @transform_14, window_bounds = array<i64: 1, 64, 128>}]} {
    %c0_i32 = arith.constant 0 : i32
    %0 = arith.cmpi eq, %arg1, %c0_i32 : i32
    %1 = arith.extui %0 : i1 to i32
    %c0_i32_0 = arith.constant 0 : i32
    %2 = arith.cmpi ne, %1, %c0_i32_0 : i32
    scf.if %2 {
      %c0_11 = arith.constant 0 : index
      %c0_12 = arith.constant 0 : index
      %c0_13 = arith.constant 0 : index
      %13 = vector.load %arg3[%c0_11, %c0_12, %c0_13] : memref<1x64x16xf32, #tpu.memory_space<vmem>>, vector<1x64x16xf32>
      %14 = vector.shape_cast %13 : vector<1x64x16xf32> to vector<64x16xf32>
      %c0_14 = arith.constant 0 : index
      %c0_15 = arith.constant 0 : index
      %15 = vector.load %arg8[%c0_14, %c0_15] : memref<16x512xf32, #tpu.memory_space<vmem>>, vector<16x512xf32>
      %cst_16 = arith.constant dense<0.000000e+00> : vector<64x512xf32>
      %16 = tpu.matmul %14, %15, %cst_16 {dimension_numbers = #tpu.dot_dimension_numbers<[1], [0], [0], [1], [0, 0, 1, 1], [], []>} : vector<64x16xf32>, vector<16x512xf32>, vector<64x512xf32> -> vector<64x512xf32>
      %c0_17 = arith.constant 0 : index
      %c0_18 = arith.constant 0 : index
      %c0_19 = arith.constant 0 : index
      %17 = vector.load %arg4[%c0_17, %c0_18, %c0_19] : memref<1x64x4xf32, #tpu.memory_space<vmem>>, vector<1x64x4xf32>
      %18 = vector.shape_cast %17 : vector<1x64x4xf32> to vector<64x4xf32>
      %c0_20 = arith.constant 0 : index
      %c0_21 = arith.constant 0 : index
      %19 = vector.load %arg9[%c0_20, %c0_21] : memref<4x512xf32, #tpu.memory_space<vmem>>, vector<4x512xf32>
      %cst_22 = arith.constant dense<0.000000e+00> : vector<64x512xf32>
      %20 = tpu.matmul %18, %19, %cst_22 {dimension_numbers = #tpu.dot_dimension_numbers<[1], [0], [0], [1], [0, 0, 1, 1], [], []>} : vector<64x4xf32>, vector<4x512xf32>, vector<64x512xf32> -> vector<64x512xf32>
      %21 = arith.addf %16, %20 : vector<64x512xf32>
      %c0_23 = arith.constant 0 : index
      %c0_24 = arith.constant 0 : index
      %c0_25 = arith.constant 0 : index
      %22 = vector.load %arg5[%c0_23, %c0_24, %c0_25] : memref<1x64x8xf32, #tpu.memory_space<vmem>>, vector<1x64x8xf32>
      %23 = vector.shape_cast %22 : vector<1x64x8xf32> to vector<64x8xf32>
      %c0_26 = arith.constant 0 : index
      %c0_27 = arith.constant 0 : index
      %24 = vector.load %arg10[%c0_26, %c0_27] : memref<8x512xf32, #tpu.memory_space<vmem>>, vector<8x512xf32>
      %cst_28 = arith.constant dense<0.000000e+00> : vector<64x512xf32>
      %25 = tpu.matmul %23, %24, %cst_28 {dimension_numbers = #tpu.dot_dimension_numbers<[1], [0], [0], [1], [0, 0, 1, 1], [], []>} : vector<64x8xf32>, vector<8x512xf32>, vector<64x512xf32> -> vector<64x512xf32>
      %26 = arith.addf %21, %25 : vector<64x512xf32>
      %c0_29 = arith.constant 0 : index
      %c0_30 = arith.constant 0 : index
      %c0_31 = arith.constant 0 : index
      %27 = vector.load %arg6[%c0_29, %c0_30, %c0_31] : memref<1x64x128xf32, #tpu.memory_space<vmem>>, vector<1x64x128xf32>
      %28 = vector.shape_cast %27 : vector<1x64x128xf32> to vector<64x128xf32>
      %c0_32 = arith.constant 0 : index
      %c0_33 = arith.constant 0 : index
      %29 = vector.load %arg11[%c0_32, %c0_33] : memref<128x512xf32, #tpu.memory_space<vmem>>, vector<128x512xf32>
      %cst_34 = arith.constant dense<0.000000e+00> : vector<64x512xf32>
      %30 = tpu.matmul %28, %29, %cst_34 {dimension_numbers = #tpu.dot_dimension_numbers<[1], [0], [0], [1], [0, 0, 1, 1], [], []>} : vector<64x128xf32>, vector<128x512xf32>, vector<64x512xf32> -> vector<64x512xf32>
      %31 = arith.addf %26, %30 : vector<64x512xf32>
      %c0_35 = arith.constant 0 : index
      %c0_36 = arith.constant 0 : index
      %32 = vector.load %arg13[%c0_35, %c0_36] : memref<1x512xf32, #tpu.memory_space<vmem>>, vector<1x512xf32>
      %33 = vector.broadcast %32 : vector<1x512xf32> to vector<64x512xf32>
      %34 = arith.addf %31, %33 : vector<64x512xf32>
      %c0_37 = arith.constant 0 : index
      %c0_38 = arith.constant 0 : index
      %35 = vector.load %arg17[%c0_37, %c0_38] : memref<64x512xf32, #tpu.memory_space<vmem>>, vector<64x512xf32>
      tpu.vector_store %arg17[%c0_37, %c0_38], %34 {strides = array<i32>} : memref<64x512xf32, #tpu.memory_space<vmem>>, vector<64x512xf32>,
    } else {
    }
    %c0 = arith.constant 0 : index
    %c0_1 = arith.constant 0 : index
    %3 = vector.load %arg17[%c0, %c0_1] : memref<64x512xf32, #tpu.memory_space<vmem>>, vector<64x512xf32>
    %c0_2 = arith.constant 0 : index
    %c0_3 = arith.constant 0 : index
    %c0_4 = arith.constant 0 : index
    %4 = vector.load %arg2[%c0_2, %c0_3, %c0_4] : memref<1x64x128xbf16, #tpu.memory_space<vmem>>, vector<1x64x128xbf16>
    %5 = vector.shape_cast %4 : vector<1x64x128xbf16> to vector<64x128xbf16>
    %c0_5 = arith.constant 0 : index
    %c0_6 = arith.constant 0 : index
    %6 = vector.load %arg7[%c0_5, %c0_6] : memref<128x512xbf16, #tpu.memory_space<vmem>>, vector<128x512xbf16>
    %cst = arith.constant dense<0.000000e+00> : vector<64x512xf32>
    %7 = tpu.matmul %5, %6, %cst {dimension_numbers = #tpu.dot_dimension_numbers<[1], [0], [0], [1], [0, 0, 1, 1], [], []>} : vector<64x128xbf16>, vector<128x512xbf16>, vector<64x512xf32> -> vector<64x512xf32>
    %8 = arith.addf %3, %7 : vector<64x512xf32>
    %c0_7 = arith.constant 0 : index
    %c0_8 = arith.constant 0 : index
    %9 = vector.load %arg17[%c0_7, %c0_8] : memref<64x512xf32, #tpu.memory_space<vmem>>, vector<64x512xf32>
    tpu.vector_store %arg17[%c0_7, %c0_8], %8 {strides = array<i32>} : memref<64x512xf32, #tpu.memory_space<vmem>>, vector<64x512xf32>,
    %c0_i32_9 = arith.constant 0 : i32
    %10 = arith.cmpi eq, %arg1, %c0_i32_9 : i32
    %11 = arith.extui %10 : i1 to i32
    %c0_i32_10 = arith.constant 0 : i32
    %12 = arith.cmpi ne, %11, %c0_i32_10 : i32
    scf.if %12 {
      %c0_11 = arith.constant 0 : index
      %c0_12 = arith.constant 0 : index
      %13 = vector.load %arg12[%c0_11, %c0_12] : memref<128x512xbf16, #tpu.memory_space<vmem>>, vector<128x512xbf16>
      %c0_13 = arith.constant 0 : index
      %c0_14 = arith.constant 0 : index
      %14 = vector.load %arg17[%c0_13, %c0_14] : memref<64x512xf32, #tpu.memory_space<vmem>>, vector<8x512xf32>
      %cst_15 = arith.constant 0.000000e+00 : f32
      %15 = vector.broadcast %cst_15 : f32 to vector<8x128xf32>
      %16 = vector.extract_strided_slice %14 {offsets = [0, 0], sizes = [8, 128], strides = [1, 1]} : vector<8x512xf32> to vector<8x128xf32>
      %17 = arith.negf %16 : vector<8x128xf32>
      %18 = math.exp %17 : vector<8x128xf32>
      %cst_16 = arith.constant 1.000000e+00 : f32
      %19 = vector.broadcast %cst_16 : f32 to vector<8x128xf32>
      %20 = arith.addf %19, %18 : vector<8x128xf32>
      %21 = arith.divf %19, %20 : vector<8x128xf32>
      %22 = vector.extract_strided_slice %14 {offsets = [0, 128], sizes = [8, 128], strides = [1, 1]} : vector<8x512xf32> to vector<8x128xf32>
      %23 = arith.negf %22 : vector<8x128xf32>
      %24 = math.exp %23 : vector<8x128xf32>
      %cst_17 = arith.constant 1.000000e+00 : f32
      %25 = vector.broadcast %cst_17 : f32 to vector<8x128xf32>
      %26 = arith.addf %25, %24 : vector<8x128xf32>
      %27 = arith.divf %25, %26 : vector<8x128xf32>
      %28 = vector.extract_strided_slice %14 {offsets = [0, 256], sizes = [8, 128], strides = [1, 1]} : vector<8x512xf32> to vector<8x128xf32>
      %29 = math.tanh %28 : vector<8x128xf32>
      %30 = vector.extract_strided_slice %14 {offsets = [0, 384], sizes = [8, 128], strides = [1, 1]} : vector<8x512xf32> to vector<8x128xf32>
      %31 = arith.negf %30 : vector<8x128xf32>
      %32 = math.exp %31 : vector<8x128xf32>
      %cst_18 = arith.constant 1.000000e+00 : f32
      %33 = vector.broadcast %cst_18 : f32 to vector<8x128xf32>
      %34 = arith.addf %33, %32 : vector<8x128xf32>
      %35 = arith.divf %33, %34 : vector<8x128xf32>
      %36 = arith.mulf %27, %15 : vector<8x128xf32>
      %37 = arith.mulf %21, %29 : vector<8x128xf32>
      %38 = arith.addf %36, %37 : vector<8x128xf32>
      %39 = math.tanh %38 : vector<8x128xf32>
      %40 = arith.mulf %35, %39 : vector<8x128xf32>
      %41 = math.tanh %40 : vector<8x128xf32>
      %c0_19 = arith.constant 0 : index
      %c0_20 = arith.constant 0 : index
      %42 = vector.load %arg18[%c0_19, %c0_20] : memref<64x128xf32, #tpu.memory_space<vmem>>, vector<8x128xf32>
      tpu.vector_store %arg18[%c0_19, %c0_20], %41 {strides = array<i32>} : memref<64x128xf32, #tpu.memory_space<vmem>>, vector<8x128xf32>,
      %c1_i32 = arith.constant 1 : i32
      %c8_i32 = arith.constant 8 : i32
      %43 = arith.muli %c1_i32, %c8_i32 : i32
      %44 = tpu.assume_multiple %43, 8 : i32
      %45 = arith.index_cast %44 : i32 to index
      %c0_21 = arith.constant 0 : index
      %46 = vector.load %arg17[%45, %c0_21] : memref<64x512xf32, #tpu.memory_space<vmem>>, vector<8x512xf32>
      %47 = arith.truncf %40 : vector<8x128xf32> to vector<8x128xbf16>
      %cst_22 = arith.constant dense<0.000000e+00> : vector<8x512xf32>
      %48 = tpu.matmul %47, %13, %cst_22 {dimension_numbers = #tpu.dot_dimension_numbers<[1], [0], [0], [1], [0, 0, 1, 1], [], []>} : vector<8x128xbf16>, vector<128x512xbf16>, vector<8x512xf32> -> vector<8x512xf32>
      %49 = arith.addf %46, %48 : vector<8x512xf32>
      %50 = vector.extract_strided_slice %49 {offsets = [0, 0], sizes = [8, 128], strides = [1, 1]} : vector<8x512xf32> to vector<8x128xf32>
      %51 = arith.negf %50 : vector<8x128xf32>
      %52 = math.exp %51 : vector<8x128xf32>
      %cst_23 = arith.constant 1.000000e+00 : f32
      %53 = vector.broadcast %cst_23 : f32 to vector<8x128xf32>
      %54 = arith.addf %53, %52 : vector<8x128xf32>
      %55 = arith.divf %53, %54 : vector<8x128xf32>
      %56 = vector.extract_strided_slice %49 {offsets = [0, 128], sizes = [8, 128], strides = [1, 1]} : vector<8x512xf32> to vector<8x128xf32>
      %57 = arith.negf %56 : vector<8x128xf32>
      %58 = math.exp %57 : vector<8x128xf32>
      %cst_24 = arith.constant 1.000000e+00 : f32
      %59 = vector.broadcast %cst_24 : f32 to vector<8x128xf32>
      %60 = arith.addf %59, %58 : vector<8x128xf32>
      %61 = arith.divf %59, %60 : vector<8x128xf32>
      %62 = vector.extract_strided_slice %49 {offsets = [0, 256], sizes = [8, 128], strides = [1, 1]} : vector<8x512xf32> to vector<8x128xf32>
      %63 = math.tanh %62 : vector<8x128xf32>
      %64 = vector.extract_strided_slice %49 {offsets = [0, 384], sizes = [8, 128], strides = [1, 1]} : vector<8x512xf32> to vector<8x128xf32>
      %65 = arith.negf %64 : vector<8x128xf32>
      %66 = math.exp %65 : vector<8x128xf32>
      %cst_25 = arith.constant 1.000000e+00 : f32
      %67 = vector.broadcast %cst_25 : f32 to vector<8x128xf32>
      %68 = arith.addf %67, %66 : vector<8x128xf32>
      %69 = arith.divf %67, %68 : vector<8x128xf32>
      %70 = arith.mulf %61, %38 : vector<8x128xf32>
      %71 = arith.mulf %55, %63 : vector<8x128xf32>
      %72 = arith.addf %70, %71 : vector<8x128xf32>
      %73 = math.tanh %72 : vector<8x128xf32>
      %74 = arith.mulf %69, %73 : vector<8x128xf32>
      %75 = math.tanh %74 : vector<8x128xf32>
      %76 = arith.index_cast %44 : i32 to index
      %c0_26 = arith.constant 0 : index
      %77 = vector.load %arg18[%76, %c0_26] : memref<64x128xf32, #tpu.memory_space<vmem>>, vector<8x128xf32>
      tpu.vector_store %arg18[%76, %c0_26], %75 {strides = array<i32>} : memref<64x128xf32, #tpu.memory_space<vmem>>, vector<8x128xf32>,
      %c2_i32 = arith.constant 2 : i32
      %c8_i32_27 = arith.constant 8 : i32
      %78 = arith.muli %c2_i32, %c8_i32_27 : i32
      %79 = tpu.assume_multiple %78, 8 : i32
      %80 = arith.index_cast %79 : i32 to index
      %c0_28 = arith.constant 0 : index
      %81 = vector.load %arg17[%80, %c0_28] : memref<64x512xf32, #tpu.memory_space<vmem>>, vector<8x512xf32>
      %82 = arith.truncf %74 : vector<8x128xf32> to vector<8x128xbf16>
      %cst_29 = arith.constant dense<0.000000e+00> : vector<8x512xf32>
      %83 = tpu.matmul %82, %13, %cst_29 {dimension_numbers = #tpu.dot_dimension_numbers<[1], [0], [0], [1], [0, 0, 1, 1], [], []>} : vector<8x128xbf16>, vector<128x512xbf16>, vector<8x512xf32> -> vector<8x512xf32>
      %84 = arith.addf %81, %83 : vector<8x512xf32>
      %85 = vector.extract_strided_slice %84 {offsets = [0, 0], sizes = [8, 128], strides = [1, 1]} : vector<8x512xf32> to vector<8x128xf32>
      %86 = arith.negf %85 : vector<8x128xf32>
      %87 = math.exp %86 : vector<8x128xf32>
      %cst_30 = arith.constant 1.000000e+00 : f32
      %88 = vector.broadcast %cst_30 : f32 to vector<8x128xf32>
      %89 = arith.addf %88, %87 : vector<8x128xf32>
      %90 = arith.divf %88, %89 : vector<8x128xf32>
      %91 = vector.extract_strided_slice %84 {offsets = [0, 128], sizes = [8, 128], strides = [1, 1]} : vector<8x512xf32> to vector<8x128xf32>
      %92 = arith.negf %91 : vector<8x128xf32>
      %93 = math.exp %92 : vector<8x128xf32>
      %cst_31 = arith.constant 1.000000e+00 : f32
      %94 = vector.broadcast %cst_31 : f32 to vector<8x128xf32>
      %95 = arith.addf %94, %93 : vector<8x128xf32>
      %96 = arith.divf %94, %95 : vector<8x128xf32>
      %97 = vector.extract_strided_slice %84 {offsets = [0, 256], sizes = [8, 128], strides = [1, 1]} : vector<8x512xf32> to vector<8x128xf32>
      %98 = math.tanh %97 : vector<8x128xf32>
      %99 = vector.extract_strided_slice %84 {offsets = [0, 384], sizes = [8, 128], strides = [1, 1]} : vector<8x512xf32> to vector<8x128xf32>
      %100 = arith.negf %99 : vector<8x128xf32>
      %101 = math.exp %100 : vector<8x128xf32>
      %cst_32 = arith.constant 1.000000e+00 : f32
      %102 = vector.broadcast %cst_32 : f32 to vector<8x128xf32>
      %103 = arith.addf %102, %101 : vector<8x128xf32>
      %104 = arith.divf %102, %103 : vector<8x128xf32>
      %105 = arith.mulf %96, %72 : vector<8x128xf32>
      %106 = arith.mulf %90, %98 : vector<8x128xf32>
      %107 = arith.addf %105, %106 : vector<8x128xf32>
      %108 = math.tanh %107 : vector<8x128xf32>
      %109 = arith.mulf %104, %108 : vector<8x128xf32>
      %110 = math.tanh %109 : vector<8x128xf32>
      %111 = arith.index_cast %79 : i32 to index
      %c0_33 = arith.constant 0 : index
      %112 = vector.load %arg18[%111, %c0_33] : memref<64x128xf32, #tpu.memory_space<vmem>>, vector<8x128xf32>
      tpu.vector_store %arg18[%111, %c0_33], %110 {strides = array<i32>} : memref<64x128xf32, #tpu.memory_space<vmem>>, vector<8x128xf32>,
      %c3_i32 = arith.constant 3 : i32
      %c8_i32_34 = arith.constant 8 : i32
      %113 = arith.muli %c3_i32, %c8_i32_34 : i32
      %114 = tpu.assume_multiple %113, 8 : i32
      %115 = arith.index_cast %114 : i32 to index
      %c0_35 = arith.constant 0 : index
      %116 = vector.load %arg17[%115, %c0_35] : memref<64x512xf32, #tpu.memory_space<vmem>>, vector<8x512xf32>
      %117 = arith.truncf %109 : vector<8x128xf32> to vector<8x128xbf16>
      %cst_36 = arith.constant dense<0.000000e+00> : vector<8x512xf32>
      %118 = tpu.matmul %117, %13, %cst_36 {dimension_numbers = #tpu.dot_dimension_numbers<[1], [0], [0], [1], [0, 0, 1, 1], [], []>} : vector<8x128xbf16>, vector<128x512xbf16>, vector<8x512xf32> -> vector<8x512xf32>
      %119 = arith.addf %116, %118 : vector<8x512xf32>
      %120 = vector.extract_strided_slice %119 {offsets = [0, 0], sizes = [8, 128], strides = [1, 1]} : vector<8x512xf32> to vector<8x128xf32>
      %121 = arith.negf %120 : vector<8x128xf32>
      %122 = math.exp %121 : vector<8x128xf32>
      %cst_37 = arith.constant 1.000000e+00 : f32
      %123 = vector.broadcast %cst_37 : f32 to vector<8x128xf32>
      %124 = arith.addf %123, %122 : vector<8x128xf32>
      %125 = arith.divf %123, %124 : vector<8x128xf32>
      %126 = vector.extract_strided_slice %119 {offsets = [0, 128], sizes = [8, 128], strides = [1, 1]} : vector<8x512xf32> to vector<8x128xf32>
      %127 = arith.negf %126 : vector<8x128xf32>
      %128 = math.exp %127 : vector<8x128xf32>
      %cst_38 = arith.constant 1.000000e+00 : f32
      %129 = vector.broadcast %cst_38 : f32 to vector<8x128xf32>
      %130 = arith.addf %129, %128 : vector<8x128xf32>
      %131 = arith.divf %129, %130 : vector<8x128xf32>
      %132 = vector.extract_strided_slice %119 {offsets = [0, 256], sizes = [8, 128], strides = [1, 1]} : vector<8x512xf32> to vector<8x128xf32>
      %133 = math.tanh %132 : vector<8x128xf32>
      %134 = vector.extract_strided_slice %119 {offsets = [0, 384], sizes = [8, 128], strides = [1, 1]} : vector<8x512xf32> to vector<8x128xf32>
      %135 = arith.negf %134 : vector<8x128xf32>
      %136 = math.exp %135 : vector<8x128xf32>
      %cst_39 = arith.constant 1.000000e+00 : f32
      %137 = vector.broadcast %cst_39 : f32 to vector<8x128xf32>
      %138 = arith.addf %137, %136 : vector<8x128xf32>
      %139 = arith.divf %137, %138 : vector<8x128xf32>
      %140 = arith.mulf %131, %107 : vector<8x128xf32>
      %141 = arith.mulf %125, %133 : vector<8x128xf32>
      %142 = arith.addf %140, %141 : vector<8x128xf32>
      %143 = math.tanh %142 : vector<8x128xf32>
      %144 = arith.mulf %139, %143 : vector<8x128xf32>
      %145 = math.tanh %144 : vector<8x128xf32>
      %146 = arith.index_cast %114 : i32 to index
      %c0_40 = arith.constant 0 : index
      %147 = vector.load %arg18[%146, %c0_40] : memref<64x128xf32, #tpu.memory_space<vmem>>, vector<8x128xf32>
      tpu.vector_store %arg18[%146, %c0_40], %145 {strides = array<i32>} : memref<64x128xf32, #tpu.memory_space<vmem>>, vector<8x128xf32>,
      %c4_i32 = arith.constant 4 : i32
      %c8_i32_41 = arith.constant 8 : i32
      %148 = arith.muli %c4_i32, %c8_i32_41 : i32
      %149 = tpu.assume_multiple %148, 8 : i32
      %150 = arith.index_cast %149 : i32 to index
      %c0_42 = arith.constant 0 : index
      %151 = vector.load %arg17[%150, %c0_42] : memref<64x512xf32, #tpu.memory_space<vmem>>, vector<8x512xf32>
      %152 = arith.truncf %144 : vector<8x128xf32> to vector<8x128xbf16>
      %cst_43 = arith.constant dense<0.000000e+00> : vector<8x512xf32>
      %153 = tpu.matmul %152, %13, %cst_43 {dimension_numbers = #tpu.dot_dimension_numbers<[1], [0], [0], [1], [0, 0, 1, 1], [], []>} : vector<8x128xbf16>, vector<128x512xbf16>, vector<8x512xf32> -> vector<8x512xf32>
      %154 = arith.addf %151, %153 : vector<8x512xf32>
      %155 = vector.extract_strided_slice %154 {offsets = [0, 0], sizes = [8, 128], strides = [1, 1]} : vector<8x512xf32> to vector<8x128xf32>
      %156 = arith.negf %155 : vector<8x128xf32>
      %157 = math.exp %156 : vector<8x128xf32>
      %cst_44 = arith.constant 1.000000e+00 : f32
      %158 = vector.broadcast %cst_44 : f32 to vector<8x128xf32>
      %159 = arith.addf %158, %157 : vector<8x128xf32>
      %160 = arith.divf %158, %159 : vector<8x128xf32>
      %161 = vector.extract_strided_slice %154 {offsets = [0, 128], sizes = [8, 128], strides = [1, 1]} : vector<8x512xf32> to vector<8x128xf32>
      %162 = arith.negf %161 : vector<8x128xf32>
      %163 = math.exp %162 : vector<8x128xf32>
      %cst_45 = arith.constant 1.000000e+00 : f32
      %164 = vector.broadcast %cst_45 : f32 to vector<8x128xf32>
      %165 = arith.addf %164, %163 : vector<8x128xf32>
      %166 = arith.divf %164, %165 : vector<8x128xf32>
      %167 = vector.extract_strided_slice %154 {offsets = [0, 256], sizes = [8, 128], strides = [1, 1]} : vector<8x512xf32> to vector<8x128xf32>
      %168 = math.tanh %167 : vector<8x128xf32>
      %169 = vector.extract_strided_slice %154 {offsets = [0, 384], sizes = [8, 128], strides = [1, 1]} : vector<8x512xf32> to vector<8x128xf32>
      %170 = arith.negf %169 : vector<8x128xf32>
      %171 = math.exp %170 : vector<8x128xf32>
      %cst_46 = arith.constant 1.000000e+00 : f32
      %172 = vector.broadcast %cst_46 : f32 to vector<8x128xf32>
      %173 = arith.addf %172, %171 : vector<8x128xf32>
      %174 = arith.divf %172, %173 : vector<8x128xf32>
      %175 = arith.mulf %166, %142 : vector<8x128xf32>
      %176 = arith.mulf %160, %168 : vector<8x128xf32>
      %177 = arith.addf %175, %176 : vector<8x128xf32>
      %178 = math.tanh %177 : vector<8x128xf32>
      %179 = arith.mulf %174, %178 : vector<8x128xf32>
      %180 = math.tanh %179 : vector<8x128xf32>
      %181 = arith.index_cast %149 : i32 to index
      %c0_47 = arith.constant 0 : index
      %182 = vector.load %arg18[%181, %c0_47] : memref<64x128xf32, #tpu.memory_space<vmem>>, vector<8x128xf32>
      tpu.vector_store %arg18[%181, %c0_47], %180 {strides = array<i32>} : memref<64x128xf32, #tpu.memory_space<vmem>>, vector<8x128xf32>,
      %c5_i32 = arith.constant 5 : i32
      %c8_i32_48 = arith.constant 8 : i32
      %183 = arith.muli %c5_i32, %c8_i32_48 : i32
      %184 = tpu.assume_multiple %183, 8 : i32
      %185 = arith.index_cast %184 : i32 to index
      %c0_49 = arith.constant 0 : index
      %186 = vector.load %arg17[%185, %c0_49] : memref<64x512xf32, #tpu.memory_space<vmem>>, vector<8x512xf32>
      %187 = arith.truncf %179 : vector<8x128xf32> to vector<8x128xbf16>
      %cst_50 = arith.constant dense<0.000000e+00> : vector<8x512xf32>
      %188 = tpu.matmul %187, %13, %cst_50 {dimension_numbers = #tpu.dot_dimension_numbers<[1], [0], [0], [1], [0, 0, 1, 1], [], []>} : vector<8x128xbf16>, vector<128x512xbf16>, vector<8x512xf32> -> vector<8x512xf32>
      %189 = arith.addf %186, %188 : vector<8x512xf32>
      %190 = vector.extract_strided_slice %189 {offsets = [0, 0], sizes = [8, 128], strides = [1, 1]} : vector<8x512xf32> to vector<8x128xf32>
      %191 = arith.negf %190 : vector<8x128xf32>
      %192 = math.exp %191 : vector<8x128xf32>
      %cst_51 = arith.constant 1.000000e+00 : f32
      %193 = vector.broadcast %cst_51 : f32 to vector<8x128xf32>
      %194 = arith.addf %193, %192 : vector<8x128xf32>
      %195 = arith.divf %193, %194 : vector<8x128xf32>
      %196 = vector.extract_strided_slice %189 {offsets = [0, 128], sizes = [8, 128], strides = [1, 1]} : vector<8x512xf32> to vector<8x128xf32>
      %197 = arith.negf %196 : vector<8x128xf32>
      %198 = math.exp %197 : vector<8x128xf32>
      %cst_52 = arith.constant 1.000000e+00 : f32
      %199 = vector.broadcast %cst_52 : f32 to vector<8x128xf32>
      %200 = arith.addf %199, %198 : vector<8x128xf32>
      %201 = arith.divf %199, %200 : vector<8x128xf32>
      %202 = vector.extract_strided_slice %189 {offsets = [0, 256], sizes = [8, 128], strides = [1, 1]} : vector<8x512xf32> to vector<8x128xf32>
      %203 = math.tanh %202 : vector<8x128xf32>
      %204 = vector.extract_strided_slice %189 {offsets = [0, 384], sizes = [8, 128], strides = [1, 1]} : vector<8x512xf32> to vector<8x128xf32>
      %205 = arith.negf %204 : vector<8x128xf32>
      %206 = math.exp %205 : vector<8x128xf32>
      %cst_53 = arith.constant 1.000000e+00 : f32
      %207 = vector.broadcast %cst_53 : f32 to vector<8x128xf32>
      %208 = arith.addf %207, %206 : vector<8x128xf32>
      %209 = arith.divf %207, %208 : vector<8x128xf32>
      %210 = arith.mulf %201, %177 : vector<8x128xf32>
      %211 = arith.mulf %195, %203 : vector<8x128xf32>
      %212 = arith.addf %210, %211 : vector<8x128xf32>
      %213 = math.tanh %212 : vector<8x128xf32>
      %214 = arith.mulf %209, %213 : vector<8x128xf32>
      %215 = math.tanh %214 : vector<8x128xf32>
      %216 = arith.index_cast %184 : i32 to index
      %c0_54 = arith.constant 0 : index
      %217 = vector.load %arg18[%216, %c0_54] : memref<64x128xf32, #tpu.memory_space<vmem>>, vector<8x128xf32>
      tpu.vector_store %arg18[%216, %c0_54], %215 {strides = array<i32>} : memref<64x128xf32, #tpu.memory_space<vmem>>, vector<8x128xf32>,
      %c6_i32 = arith.constant 6 : i32
      %c8_i32_55 = arith.constant 8 : i32
      %218 = arith.muli %c6_i32, %c8_i32_55 : i32
      %219 = tpu.assume_multiple %218, 8 : i32
      %220 = arith.index_cast %219 : i32 to index
      %c0_56 = arith.constant 0 : index
      %221 = vector.load %arg17[%220, %c0_56] : memref<64x512xf32, #tpu.memory_space<vmem>>, vector<8x512xf32>
      %222 = arith.truncf %214 : vector<8x128xf32> to vector<8x128xbf16>
      %cst_57 = arith.constant dense<0.000000e+00> : vector<8x512xf32>
      %223 = tpu.matmul %222, %13, %cst_57 {dimension_numbers = #tpu.dot_dimension_numbers<[1], [0], [0], [1], [0, 0, 1, 1], [], []>} : vector<8x128xbf16>, vector<128x512xbf16>, vector<8x512xf32> -> vector<8x512xf32>
      %224 = arith.addf %221, %223 : vector<8x512xf32>
      %225 = vector.extract_strided_slice %224 {offsets = [0, 0], sizes = [8, 128], strides = [1, 1]} : vector<8x512xf32> to vector<8x128xf32>
      %226 = arith.negf %225 : vector<8x128xf32>
      %227 = math.exp %226 : vector<8x128xf32>
      %cst_58 = arith.constant 1.000000e+00 : f32
      %228 = vector.broadcast %cst_58 : f32 to vector<8x128xf32>
      %229 = arith.addf %228, %227 : vector<8x128xf32>
      %230 = arith.divf %228, %229 : vector<8x128xf32>
      %231 = vector.extract_strided_slice %224 {offsets = [0, 128], sizes = [8, 128], strides = [1, 1]} : vector<8x512xf32> to vector<8x128xf32>
      %232 = arith.negf %231 : vector<8x128xf32>
      %233 = math.exp %232 : vector<8x128xf32>
      %cst_59 = arith.constant 1.000000e+00 : f32
      %234 = vector.broadcast %cst_59 : f32 to vector<8x128xf32>
      %235 = arith.addf %234, %233 : vector<8x128xf32>
      %236 = arith.divf %234, %235 : vector<8x128xf32>
      %237 = vector.extract_strided_slice %224 {offsets = [0, 256], sizes = [8, 128], strides = [1, 1]} : vector<8x512xf32> to vector<8x128xf32>
      %238 = math.tanh %237 : vector<8x128xf32>
      %239 = vector.extract_strided_slice %224 {offsets = [0, 384], sizes = [8, 128], strides = [1, 1]} : vector<8x512xf32> to vector<8x128xf32>
      %240 = arith.negf %239 : vector<8x128xf32>
      %241 = math.exp %240 : vector<8x128xf32>
      %cst_60 = arith.constant 1.000000e+00 : f32
      %242 = vector.broadcast %cst_60 : f32 to vector<8x128xf32>
      %243 = arith.addf %242, %241 : vector<8x128xf32>
      %244 = arith.divf %242, %243 : vector<8x128xf32>
      %245 = arith.mulf %236, %212 : vector<8x128xf32>
      %246 = arith.mulf %230, %238 : vector<8x128xf32>
      %247 = arith.addf %245, %246 : vector<8x128xf32>
      %248 = math.tanh %247 : vector<8x128xf32>
      %249 = arith.mulf %244, %248 : vector<8x128xf32>
      %250 = math.tanh %249 : vector<8x128xf32>
      %251 = arith.index_cast %219 : i32 to index
      %c0_61 = arith.constant 0 : index
      %252 = vector.load %arg18[%251, %c0_61] : memref<64x128xf32, #tpu.memory_space<vmem>>, vector<8x128xf32>
      tpu.vector_store %arg18[%251, %c0_61], %250 {strides = array<i32>} : memref<64x128xf32, #tpu.memory_space<vmem>>, vector<8x128xf32>,
      %c7_i32 = arith.constant 7 : i32
      %c8_i32_62 = arith.constant 8 : i32
      %253 = arith.muli %c7_i32, %c8_i32_62 : i32
      %254 = tpu.assume_multiple %253, 8 : i32
      %255 = arith.index_cast %254 : i32 to index
      %c0_63 = arith.constant 0 : index
      %256 = vector.load %arg17[%255, %c0_63] : memref<64x512xf32, #tpu.memory_space<vmem>>, vector<8x512xf32>
      %257 = arith.truncf %249 : vector<8x128xf32> to vector<8x128xbf16>
      %cst_64 = arith.constant dense<0.000000e+00> : vector<8x512xf32>
      %258 = tpu.matmul %257, %13, %cst_64 {dimension_numbers = #tpu.dot_dimension_numbers<[1], [0], [0], [1], [0, 0, 1, 1], [], []>} : vector<8x128xbf16>, vector<128x512xbf16>, vector<8x512xf32> -> vector<8x512xf32>
      %259 = arith.addf %256, %258 : vector<8x512xf32>
      %260 = vector.extract_strided_slice %259 {offsets = [0, 0], sizes = [8, 128], strides = [1, 1]} : vector<8x512xf32> to vector<8x128xf32>
      %261 = arith.negf %260 : vector<8x128xf32>
      %262 = math.exp %261 : vector<8x128xf32>
      %cst_65 = arith.constant 1.000000e+00 : f32
      %263 = vector.broadcast %cst_65 : f32 to vector<8x128xf32>
      %264 = arith.addf %263, %262 : vector<8x128xf32>
      %265 = arith.divf %263, %264 : vector<8x128xf32>
      %266 = vector.extract_strided_slice %259 {offsets = [0, 128], sizes = [8, 128], strides = [1, 1]} : vector<8x512xf32> to vector<8x128xf32>
      %267 = arith.negf %266 : vector<8x128xf32>
      %268 = math.exp %267 : vector<8x128xf32>
      %cst_66 = arith.constant 1.000000e+00 : f32
      %269 = vector.broadcast %cst_66 : f32 to vector<8x128xf32>
      %270 = arith.addf %269, %268 : vector<8x128xf32>
      %271 = arith.divf %269, %270 : vector<8x128xf32>
      %272 = vector.extract_strided_slice %259 {offsets = [0, 256], sizes = [8, 128], strides = [1, 1]} : vector<8x512xf32> to vector<8x128xf32>
      %273 = math.tanh %272 : vector<8x128xf32>
      %274 = vector.extract_strided_slice %259 {offsets = [0, 384], sizes = [8, 128], strides = [1, 1]} : vector<8x512xf32> to vector<8x128xf32>
      %275 = arith.negf %274 : vector<8x128xf32>
      %276 = math.exp %275 : vector<8x128xf32>
      %cst_67 = arith.constant 1.000000e+00 : f32
      %277 = vector.broadcast %cst_67 : f32 to vector<8x128xf32>
      %278 = arith.addf %277, %276 : vector<8x128xf32>
      %279 = arith.divf %277, %278 : vector<8x128xf32>
      %280 = arith.mulf %271, %247 : vector<8x128xf32>
      %281 = arith.mulf %265, %273 : vector<8x128xf32>
      %282 = arith.addf %280, %281 : vector<8x128xf32>
      %283 = math.tanh %282 : vector<8x128xf32>
      %284 = arith.mulf %279, %283 : vector<8x128xf32>
      %285 = math.tanh %284 : vector<8x128xf32>
      %286 = arith.index_cast %254 : i32 to index
      %c0_68 = arith.constant 0 : index
      %287 = vector.load %arg18[%286, %c0_68] : memref<64x128xf32, #tpu.memory_space<vmem>>, vector<8x128xf32>
      tpu.vector_store %arg18[%286, %c0_68], %285 {strides = array<i32>} : memref<64x128xf32, #tpu.memory_space<vmem>>, vector<8x128xf32>,
      %c7_i32_69 = arith.constant 7 : i32
      %c0_70 = arith.constant 0 : index
      %c0_71 = arith.constant 0 : index
      %288 = vector.load %arg18[%c0_70, %c0_71] : memref<64x128xf32, #tpu.memory_space<vmem>>, vector<64x128xf32>
      %289 = arith.truncf %288 : vector<64x128xf32> to vector<64x128xbf16>
      %c0_72 = arith.constant 0 : index
      %c0_73 = arith.constant 0 : index
      %290 = vector.load %arg14[%c0_72, %c0_73] : memref<128x128xbf16, #tpu.memory_space<vmem>>, vector<128x128xbf16>
      %cst_74 = arith.constant dense<0.000000e+00> : vector<64x128xf32>
      %291 = tpu.matmul %289, %290, %cst_74 {dimension_numbers = #tpu.dot_dimension_numbers<[1], [0], [0], [1], [0, 0, 1, 1], [], []>} : vector<64x128xbf16>, vector<128x128xbf16>, vector<64x128xf32> -> vector<64x128xf32>
      %c0_75 = arith.constant 0 : index
      %c0_76 = arith.constant 0 : index
      %292 = vector.load %arg15[%c0_75, %c0_76] : memref<1x128xf32, #tpu.memory_space<vmem>>, vector<1x128xf32>
      %293 = vector.broadcast %292 : vector<1x128xf32> to vector<64x128xf32>
      %294 = arith.addf %291, %293 : vector<64x128xf32>
      %cst_77 = arith.constant dense<0xFF800000> : vector<64xf32>
      %295 = vector.multi_reduction <maximumf>, %294, %cst_77 [1] : vector<64x128xf32> to vector<64xf32>
      %296 = vector.shape_cast %295 : vector<64xf32> to vector<64x1xf32>
      %297 = vector.broadcast %296 : vector<64x1xf32> to vector<64x128xf32>
      %298 = arith.subf %294, %297 : vector<64x128xf32>
      %299 = math.exp %298 : vector<64x128xf32>
      %cst_78 = arith.constant dense<0.000000e+00> : vector<64xf32>
      %300 = vector.multi_reduction <add>, %299, %cst_78 [1] : vector<64x128xf32> to vector<64xf32>
      %301 = vector.shape_cast %300 : vector<64xf32> to vector<64x1xf32>
      %302 = vector.broadcast %301 : vector<64x1xf32> to vector<64x128xf32>
      %303 = arith.divf %299, %302 : vector<64x128xf32>
      %c0_79 = arith.constant 0 : index
      %c0_80 = arith.constant 0 : index
      %c0_81 = arith.constant 0 : index
      %304 = vector.load %arg6[%c0_79, %c0_80, %c0_81] : memref<1x64x128xf32, #tpu.memory_space<vmem>>, vector<1x64x128xf32>
      %305 = vector.shape_cast %304 : vector<1x64x128xf32> to vector<64x128xf32>
      %306 = arith.mulf %303, %305 : vector<64x128xf32>
      %c0_82 = arith.constant 0 : index
      %c0_83 = arith.constant 0 : index
      %c0_84 = arith.constant 0 : index
      %307 = vector.load %arg16[%c0_82, %c0_83, %c0_84] : memref<1x64x128xf32, #tpu.memory_space<vmem>>, vector<1x64x128xf32>
      %308 = vector.shape_cast %307 : vector<1x64x128xf32> to vector<64x128xf32>
      %309 = vector.shape_cast %306 : vector<64x128xf32> to vector<1x64x128xf32>
      tpu.vector_store %arg16[%c0_82, %c0_83, %c0_84], %309 {strides = array<i32>} : memref<1x64x128xf32, #tpu.memory_space<vmem>>, vector<1x64x128xf32>,
    } else {
    }
    return
  }
  func.func @transform_0(%arg0: i32, %arg1: i32) -> (i32, i32, i32) {
    %c0_i32 = arith.constant 0 : i32
    %c0_i32_0 = arith.constant 0 : i32
    return %arg0, %c0_i32, %arg1 : i32, i32, i32
  }
  func.func @transform_1(%arg0: i32, %arg1: i32) -> (i32, i32, i32) {
    %c0_i32 = arith.constant 0 : i32
    %c0_i32_0 = arith.constant 0 : i32
    %c0_i32_1 = arith.constant 0 : i32
    return %arg0, %c0_i32, %c0_i32_0 : i32, i32, i32
  }
  func.func @transform_2(%arg0: i32, %arg1: i32) -> (i32, i32, i32) {
    %c0_i32 = arith.constant 0 : i32
    %c0_i32_0 = arith.constant 0 : i32
    %c0_i32_1 = arith.constant 0 : i32
    return %arg0, %c0_i32, %c0_i32_0 : i32, i32, i32
  }
  func.func @transform_3(%arg0: i32, %arg1: i32) -> (i32, i32, i32) {
    %c0_i32 = arith.constant 0 : i32
    %c0_i32_0 = arith.constant 0 : i32
    %c0_i32_1 = arith.constant 0 : i32
    return %arg0, %c0_i32, %c0_i32_0 : i32, i32, i32
  }
  func.func @transform_4(%arg0: i32, %arg1: i32) -> (i32, i32, i32) {
    %c0_i32 = arith.constant 0 : i32
    %c0_i32_0 = arith.constant 0 : i32
    %c0_i32_1 = arith.constant 0 : i32
    return %arg0, %c0_i32, %c0_i32_0 : i32, i32, i32
  }
  func.func @transform_5(%arg0: i32, %arg1: i32) -> (i32, i32) {
    %c0_i32 = arith.constant 0 : i32
    %c0_i32_0 = arith.constant 0 : i32
    return %arg1, %c0_i32 : i32, i32
  }
  func.func @transform_6(%arg0: i32, %arg1: i32) -> (i32, i32) {
    %c0_i32 = arith.constant 0 : i32
    %c0_i32_0 = arith.constant 0 : i32
    %c0_i32_1 = arith.constant 0 : i32
    return %c0_i32, %c0_i32_0 : i32, i32
  }
  func.func @transform_7(%arg0: i32, %arg1: i32) -> (i32, i32) {
    %c0_i32 = arith.constant 0 : i32
    %c0_i32_0 = arith.constant 0 : i32
    %c0_i32_1 = arith.constant 0 : i32
    return %c0_i32, %c0_i32_0 : i32, i32
  }
  func.func @transform_8(%arg0: i32, %arg1: i32) -> (i32, i32) {
    %c0_i32 = arith.constant 0 : i32
    %c0_i32_0 = arith.constant 0 : i32
    %c0_i32_1 = arith.constant 0 : i32
    return %c0_i32, %c0_i32_0 : i32, i32
  }
  func.func @transform_9(%arg0: i32, %arg1: i32) -> (i32, i32) {
    %c0_i32 = arith.constant 0 : i32
    %c0_i32_0 = arith.constant 0 : i32
    %c0_i32_1 = arith.constant 0 : i32
    return %c0_i32, %c0_i32_0 : i32, i32
  }
  func.func @transform_10(%arg0: i32, %arg1: i32) -> (i32, i32) {
    %c0_i32 = arith.constant 0 : i32
    %c0_i32_0 = arith.constant 0 : i32
    %c0_i32_1 = arith.constant 0 : i32
    return %c0_i32, %c0_i32_0 : i32, i32
  }
  func.func @transform_11(%arg0: i32, %arg1: i32) -> (i32, i32) {
    %c0_i32 = arith.constant 0 : i32
    %c0_i32_0 = arith.constant 0 : i32
    %c0_i32_1 = arith.constant 0 : i32
    return %c0_i32, %c0_i32_0 : i32, i32
  }
  func.func @transform_12(%arg0: i32, %arg1: i32) -> (i32, i32) {
    %c0_i32 = arith.constant 0 : i32
    %c0_i32_0 = arith.constant 0 : i32
    %c0_i32_1 = arith.constant 0 : i32
    return %c0_i32, %c0_i32_0 : i32, i32
  }
  func.func @transform_13(%arg0: i32, %arg1: i32) -> (i32, i32) {
    %c0_i32 = arith.constant 0 : i32
    %c0_i32_0 = arith.constant 0 : i32
    %c0_i32_1 = arith.constant 0 : i32
    return %c0_i32, %c0_i32_0 : i32, i32
  }
  func.func @transform_14(%arg0: i32, %arg1: i32) -> (i32, i32, i32) {
    %c0_i32 = arith.constant 0 : i32
    %c0_i32_0 = arith.constant 0 : i32
    %c0_i32_1 = arith.constant 0 : i32
    return %arg0, %c0_i32, %c0_i32_0 : i32, i32, i32
  }
}

</mosaic_0001>

<llo_original>
// kernel: hybrid_code_network.1
$region0: #{hybrid_code_network.1}
  #allocation0 [shape = 'u32[]', space=smem, size = 0x4, offset = 0x4, fixed_abs, tag = 'smem constant byte address 0x4 - core index']
  #allocation1 [shape = 'u32[144,128]{1,0:T(1,128)}', space=vmem, size = 0x12000, scoped, tag = 'internal scratch']
  #allocation2 [shape = 'f32[64,512]{1,0:T(8,128)}', space=vmem, size = 0x20000, scoped, tag = 'scratch operand']
  #allocation3 [shape = 'f32[64,128]{1,0:T(8,128)}', space=vmem, size = 0x8000, scoped, tag = 'scratch operand']
  %s0 = inlined_call_operand.vmem [shape: bf16[1,64,128], index: 0, kind: input, shape index: {}]
  %s1 = inlined_call_operand.vmem [shape: f32[1,64,16], index: 1, kind: input, shape index: {}]
  %s2 = inlined_call_operand.vmem [shape: f32[1,64,4], index: 2, kind: input, shape index: {}]
  %s3 = inlined_call_operand.vmem [shape: f32[1,64,8], index: 3, kind: input, shape index: {}]
  %s4 = inlined_call_operand.vmem [shape: f32[1,64,128], index: 4, kind: input, shape index: {}]
  %s5 = inlined_call_operand.vmem [shape: bf16[128,512], index: 5, kind: input, shape index: {}]
  %s6 = inlined_call_operand.vmem [shape: f32[16,512], index: 6, kind: input, shape index: {}]
  %s7 = inlined_call_operand.vmem [shape: f32[4,512], index: 7, kind: input, shape index: {}]
  %s8 = inlined_call_operand.vmem [shape: f32[8,512], index: 8, kind: input, shape index: {}]
  %s9 = inlined_call_operand.vmem [shape: f32[128,512], index: 9, kind: input, shape index: {}]
  %s10 = inlined_call_operand.vmem [shape: bf16[128,512], index: 10, kind: input, shape index: {}]
  %s11 = inlined_call_operand.vmem [shape: f32[1,512], index: 11, kind: input, shape index: {}]
  %s12 = inlined_call_operand.vmem [shape: bf16[128,128], index: 12, kind: input, shape index: {}]
  %s13 = inlined_call_operand.vmem [shape: f32[1,128], index: 13, kind: input, shape index: {}]
  %s14 = inlined_call_operand.vmem [shape: f32[1,64,128], index: 14, kind: output, shape index: {}]
  %s15 = sld [smem:[#allocation0]]
  $region74: #{hybrid_code_network.1} parent=0
    _
  %s17 = ssub.s32 1, %s15
  %s18 = scalar_select 0, %s17, %s15
  // Predicated region
  $region2: #{hybrid_code_network.1} parent=0 // pred_check
    _
  $region3: #{hybrid_code_network.1} parent=0 // pred_check_branch
    %20 = sbr.rel (0) target = $region5
  $region4: #{hybrid_code_network.1} parent=0 // pred_region
    _
  $region5: #{hybrid_code_network.1} parent=0 // pred_fallthru
    _
  // Predicated region
  $region6: #{hybrid_code_network.1} parent=0 // pred_check
    _
  $region7: #{hybrid_code_network.1} parent=0 // pred_check_branch
    %22 = sbr.rel (0) target = $region9
  $region8: #{hybrid_code_network.1} parent=0 // pred_region
    _
  $region9: #{hybrid_code_network.1} parent=0 // pred_fallthru
    _
  // Predicated region
  $region10: #{hybrid_code_network.1} parent=0 // pred_check
    _
  $region11: #{hybrid_code_network.1} parent=0 // pred_check_branch
    %24 = sbr.rel (0) target = $region13
  $region12: #{hybrid_code_network.1} parent=0 // pred_region
    _
  $region13: #{hybrid_code_network.1} parent=0 // pred_fallthru
    _
  // Predicated region
  $region14: #{hybrid_code_network.1} parent=0 // pred_check
    _
  $region15: #{hybrid_code_network.1} parent=0 // pred_check_branch
    %26 = sbr.rel (0) target = $region17
  $region16: #{hybrid_code_network.1} parent=0 // pred_region
    _
  $region17: #{hybrid_code_network.1} parent=0 // pred_fallthru
    _
  // Predicated region
  $region18: #{hybrid_code_network.1} parent=0 // pred_check
    _
  $region19: #{hybrid_code_network.1} parent=0 // pred_check_branch
    %28 = sbr.rel (0) target = $region21
  $region20: #{hybrid_code_network.1} parent=0 // pred_region
    _
  $region21: #{hybrid_code_network.1} parent=0 // pred_fallthru
    _
  // Predicated region
  $region22: #{hybrid_code_network.1} parent=0 // pred_check
    _
  $region23: #{hybrid_code_network.1} parent=0 // pred_check_branch
    %30 = sbr.rel (0) target = $region25
  $region24: #{hybrid_code_network.1} parent=0 // pred_region
    _
  $region25: #{hybrid_code_network.1} parent=0 // pred_fallthru
    _
  // Predicated region
  $region26: #{hybrid_code_network.1} parent=0 // pred_check
    _
  $region27: #{hybrid_code_network.1} parent=0 // pred_check_branch
    %32 = sbr.rel (0) target = $region29
  $region28: #{hybrid_code_network.1} parent=0 // pred_region
    _
  $region29: #{hybrid_code_network.1} parent=0 // pred_fallthru
    _
  // Predicated region
  $region30: #{hybrid_code_network.1} parent=0 // pred_check
    _
  $region31: #{hybrid_code_network.1} parent=0 // pred_check_branch
    %34 = sbr.rel (0) target = $region33
  $region32: #{hybrid_code_network.1} parent=0 // pred_region
    _
  $region33: #{hybrid_code_network.1} parent=0 // pred_fallthru
    _
  // Predicated region
  $region34: #{hybrid_code_network.1} parent=0 // pred_check
    _
  $region35: #{hybrid_code_network.1} parent=0 // pred_check_branch
    %36 = sbr.rel (0) target = $region37
  $region36: #{hybrid_code_network.1} parent=0 // pred_region
    _
  $region37: #{hybrid_code_network.1} parent=0 // pred_fallthru
    _
  // Predicated region
  $region38: #{hybrid_code_network.1} parent=0 // pred_check
    _
  $region39: #{hybrid_code_network.1} parent=0 // pred_check_branch
    %38 = sbr.rel (0) target = $region41
  $region40: #{hybrid_code_network.1} parent=0 // pred_region
    _
  $region41: #{hybrid_code_network.1} parent=0 // pred_fallthru
    _
  // Predicated region
  $region42: #{hybrid_code_network.1} parent=0 // pred_check
    _
  $region43: #{hybrid_code_network.1} parent=0 // pred_check_branch
    %40 = sbr.rel (0) target = $region45
  $region44: #{hybrid_code_network.1} parent=0 // pred_region
    _
  $region45: #{hybrid_code_network.1} parent=0 // pred_fallthru
    _
  // Predicated region
  $region46: #{hybrid_code_network.1} parent=0 // pred_check
    _
  $region47: #{hybrid_code_network.1} parent=0 // pred_check_branch
    %42 = sbr.rel (0) target = $region49
  $region48: #{hybrid_code_network.1} parent=0 // pred_region
    _
  $region49: #{hybrid_code_network.1} parent=0 // pred_fallthru
    _
  // Predicated region
  $region50: #{hybrid_code_network.1} parent=0 // pred_check
    _
  $region51: #{hybrid_code_network.1} parent=0 // pred_check_branch
    %44 = sbr.rel (0) target = $region53
  $region52: #{hybrid_code_network.1} parent=0 // pred_region
    _
  $region53: #{hybrid_code_network.1} parent=0 // pred_fallthru
    _
  // Predicated region
  $region54: #{hybrid_code_network.1} parent=0 // pred_check
    _
  $region55: #{hybrid_code_network.1} parent=0 // pred_check_branch
    %46 = sbr.rel (0) target = $region57
  $region56: #{hybrid_code_network.1} parent=0 // pred_region
    _
  $region57: #{hybrid_code_network.1} parent=0 // pred_fallthru
    _
  %p48 = scmp.eq.s32.totalorder 0, 0
  // Predicated region
  $region58: #{hybrid_code_network.1} parent=0 // pred_check
    %p49 = pneg %p48
  $region59: #{hybrid_code_network.1} parent=0 // pred_check_branch
    %51 = sbr.rel (%p49) target = $region61
  $region60: #{hybrid_code_network.1} parent=0 // pred_region
    %v52 = vld [vmem:[%s1] sm:$0xff]
    %v53 = vld [vmem:[%s1 + $0x8] sm:$0xff]
    %v54 = vld [vmem:[%s1 + $0x10] sm:$0xff]
    %v55 = vld [vmem:[%s1 + $0x18] sm:$0xff]
    %v56 = vld [vmem:[%s1 + $0x20] sm:$0xff]
    %v57 = vld [vmem:[%s1 + $0x28] sm:$0xff]
    %v58 = vld [vmem:[%s1 + $0x30] sm:$0xff]
    %v59 = vld [vmem:[%s1 + $0x38] sm:$0xff]
    %v60 = vld [vmem:[%s6] sm:$0xff]
    %v61 = vld [vmem:[%s6 + $0x8] sm:$0xff]
    %v62 = vld [vmem:[%s6 + $0x10] sm:$0xff]
    %v63 = vld [vmem:[%s6 + $0x18] sm:$0xff]
    %v64 = vld [vmem:[%s6 + $0x20] sm:$0xff]
    %v65 = vld [vmem:[%s6 + $0x28] sm:$0xff]
    %v66 = vld [vmem:[%s6 + $0x30] sm:$0xff]
    %v67 = vld [vmem:[%s6 + $0x38] sm:$0xff]
    %v68 = vld [vmem:[%s2] sm:$0xff]
    %v69 = vld [vmem:[%s2 + $0x8] sm:$0xff]
    %v70 = vld [vmem:[%s2 + $0x10] sm:$0xff]
    %v71 = vld [vmem:[%s2 + $0x18] sm:$0xff]
    %v72 = vld [vmem:[%s2 + $0x20] sm:$0xff]
    %v73 = vld [vmem:[%s2 + $0x28] sm:$0xff]
    %v74 = vld [vmem:[%s2 + $0x30] sm:$0xff]
    %v75 = vld [vmem:[%s2 + $0x38] sm:$0xff]
    %v76 = vld [vmem:[%s7] sm:$0xff]
    %v77 = vld [vmem:[%s7 + $0x8] sm:$0xff]
    %v80 = vcombine.high %v76, %v76
    %v81 = vcombine.high %v77, %v77
    %vm82 = vcmask 31744
    %v84 = vsel %vm82, %v68, 0
    %v87 = vsel %vm82, %v69, 0
    %v90 = vsel %vm82, %v70, 0
    %v93 = vsel %vm82, %v71, 0
    %v96 = vsel %vm82, %v72, 0
    %v99 = vsel %vm82, %v73, 0
    %v102 = vsel %vm82, %v74, 0
    %v105 = vsel %vm82, %v75, 0
    %vm107 = vcmask 1043456
    %v108 = vsel %vm107, %v76, 0
    %v110 = vsel %vm107, %v80, 0
    %v112 = vsel %vm107, %v77, 0
    %v114 = vsel %vm107, %v81, 0
    %116 = vmatprep.subr.mxu0 0.0
    %117 = vmatpush1.msra.mxu0 0.0
    %118 = vmatprep.subr.mxu0 0.0
    %119 = vmatpush1.msra.mxu0 0.0
    %120 = vmatprep.subr.mxu0 0.0
    %121 = vmatpush1.msra.mxu0 0.0
    %122 = vmatprep.subr.mxu0 0.0
    %123 = vmatpush1.msra.mxu0 0.0
    %124 = vmatprep.subr.mxu0 0.0
    %125 = vmatpush1.msra.mxu0 0.0
    %126 = vmatprep.subr.mxu0 0.0
    %127 = vmatpush1.msra.mxu0 0.0
    %128 = vmatprep.subr.mxu0 0.0
    %129 = vmatpush1.msra.mxu0 0.0
    %130 = vmatprep.subr.mxu0 0.0
    %131 = vmatpush1.msra.mxu0 0.0
    %132 = vmatprep.subr.mxu0 0.0
    %133 = vmatpush1.msra.mxu0 0.0
    %134 = vmatprep.subr.mxu0 0.0
    %135 = vmatpush1.msra.mxu0 0.0
    %136 = vmatprep.subr.mxu0 0.0
    %137 = vmatpush1.msra.mxu0 0.0
    %138 = vmatprep.subr.mxu0 0.0
    %139 = vmatpush1.msra.mxu0 0.0
    %140 = vmatprep.subr.mxu0 0.0
    %141 = vmatpush1.msra.mxu0 0.0
    %142 = vmatprep.subr.mxu0 0.0
    %143 = vmatpush1.msra.mxu0 0.0
    %144 = vmatprep.subr.mxu0 0.0
    %145 = vmatpush1.msra.mxu0 0.0
    %146 = vmatprep.subr.mxu0 %v110
    %147 = vmatpush1.msra.mxu0 %v108
    %148 = vmatprep.subr.mxu0 0.0
    %149 = vmatpush2.msra.mxu0 0.0
    %150 = vmatprep.subr.mxu0 0.0
    %151 = vmatpush2.msra.mxu0 0.0
    %152 = vmatprep.subr.mxu0 0.0
    %153 = vmatpush2.msra.mxu0 0.0
    %154 = vmatprep.subr.mxu0 0.0
    %155 = vmatpush2.msra.mxu0 0.0
    %156 = vmatprep.subr.mxu0 0.0
    %157 = vmatpush2.msra.mxu0 0.0
    %158 = vmatprep.subr.mxu0 0.0
    %159 = vmatpush2.msra.mxu0 0.0
    %160 = vmatprep.subr.mxu0 0.0
    %161 = vmatpush2.msra.mxu0 0.0
    %162 = vmatprep.subr.mxu0 0.0
    %163 = vmatpush2.msra.mxu0 0.0
    %164 = vmatprep.subr.mxu0 0.0
    %165 = vmatpush2.msra.mxu0 0.0
    %166 = vmatprep.subr.mxu0 0.0
    %167 = vmatpush2.msra.mxu0 0.0
    %168 = vmatprep.subr.mxu0 0.0
    %169 = vmatpush2.msra.mxu0 0.0
    %170 = vmatprep.subr.mxu0 0.0
    %171 = vmatpush2.msra.mxu0 0.0
    %172 = vmatprep.subr.mxu0 0.0
    %173 = vmatpush2.msra.mxu0 0.0
    %174 = vmatprep.subr.mxu0 0.0
    %175 = vmatpush2.msra.mxu0 0.0
    %176 = vmatprep.subr.mxu0 0.0
    %177 = vmatpush2.msra.mxu0 0.0
    %178 = vmatprep.subr.mxu0 0.0
    %179 = vmatpush2.msra.mxu0 0.0
    %180 = vmatprep.mubr.f32.mxu0 0.0
    %181 = vmatmul.mubr.f32.gmra.mxu0 %v84
    %v182 = vpop.f32.mrf.mxu0
    %v183 = vadd.f32 0.0, %v182
    %v184 = vpop.f32.mrf.mxu0
    %v185 = vadd.f32 0.0, %v184
    %186 = vmatprep.mubr.f32.mxu0 0.0
    %187 = vmatmul.mubr.f32.gmra.mxu0 %v87
    %v188 = vpop.f32.mrf.mxu0
    %v189 = vadd.f32 0.0, %v188
    %v190 = vpop.f32.mrf.mxu0
    %v191 = vadd.f32 0.0, %v190
    %192 = vmatprep.mubr.f32.mxu0 0.0
    %193 = vmatmul.mubr.f32.gmra.mxu0 %v90
    %v194 = vpop.f32.mrf.mxu0
    %v195 = vadd.f32 0.0, %v194
    %v196 = vpop.f32.mrf.mxu0
    %v197 = vadd.f32 0.0, %v196
    %198 = vmatprep.mubr.f32.mxu0 0.0
    %199 = vmatmul.mubr.f32.gmra.mxu0 %v93
    %v200 = vpop.f32.mrf.mxu0
    %v201 = vadd.f32 0.0, %v200
    %v202 = vpop.f32.mrf.mxu0
    %v203 = vadd.f32 0.0, %v202
    %204 = vmatprep.mubr.f32.mxu0 0.0
    %205 = vmatmul.mubr.f32.gmra.mxu0 %v96
    %v206 = vpop.f32.mrf.mxu0
    %v207 = vadd.f32 0.0, %v206
    %v208 = vpop.f32.mrf.mxu0
    %v209 = vadd.f32 0.0, %v208
    %210 = vmatprep.mubr.f32.mxu0 0.0
    %211 = vmatmul.mubr.f32.gmra.mxu0 %v99
    %v212 = vpop.f32.mrf.mxu0
    %v213 = vadd.f32 0.0, %v212
    %v214 = vpop.f32.mrf.mxu0
    %v215 = vadd.f32 0.0, %v214
    %216 = vmatprep.mubr.f32.mxu0 0.0
    %217 = vmatmul.mubr.f32.gmra.mxu0 %v102
    %v218 = vpop.f32.mrf.mxu0
    %v219 = vadd.f32 0.0, %v218
    %v220 = vpop.f32.mrf.mxu0
    %v221 = vadd.f32 0.0, %v220
    %222 = vmatprep.mubr.f32.mxu0 0.0
    %223 = vmatmul.mubr.f32.gmra.mxu0 %v105
    %v224 = vpop.f32.mrf.mxu0
    %v225 = vadd.f32 0.0, %v224
    %v226 = vpop.f32.mrf.mxu0
    %v227 = vadd.f32 0.0, %v226
    %228 = vdwg.mxu0
    %229 = vmatprep.subr.mxu0 0.0
    %230 = vmatpush1.msra.mxu0 0.0
    %231 = vmatprep.subr.mxu0 0.0
    %232 = vmatpush1.msra.mxu0 0.0
    %233 = vmatprep.subr.mxu0 0.0
    %234 = vmatpush1.msra.mxu0 0.0
    %235 = vmatprep.subr.mxu0 0.0
    %236 = vmatpush1.msra.mxu0 0.0
    %237 = vmatprep.subr.mxu0 0.0
    %238 = vmatpush1.msra.mxu0 0.0
    %239 = vmatprep.subr.mxu0 0.0
    %240 = vmatpush1.msra.mxu0 0.0
    %241 = vmatprep.subr.mxu0 0.0
    %242 = vmatpush1.msra.mxu0 0.0
    %243 = vmatprep.subr.mxu0 0.0
    %244 = vmatpush1.msra.mxu0 0.0
    %245 = vmatprep.subr.mxu0 0.0
    %246 = vmatpush1.msra.mxu0 0.0
    %247 = vmatprep.subr.mxu0 0.0
    %248 = vmatpush1.msra.mxu0 0.0
    %249 = vmatprep.subr.mxu0 0.0
    %250 = vmatpush1.msra.mxu0 0.0
    %251 = vmatprep.subr.mxu0 0.0
    %252 = vmatpush1.msra.mxu0 0.0
    %253 = vmatprep.subr.mxu0 0.0
    %254 = vmatpush1.msra.mxu0 0.0
    %255 = vmatprep.subr.mxu0 0.0
    %256 = vmatpush1.msra.mxu0 0.0
    %257 = vmatprep.subr.mxu0 0.0
    %258 = vmatpush1.msra.mxu0 0.0
    %259 = vmatprep.subr.mxu0 %v114
    %260 = vmatpush1.msra.mxu0 %v112
    %261 = vmatprep.subr.mxu0 0.0
    %262 = vmatpush2.msra.mxu0 0.0
    %263 = vmatprep.subr.mxu0 0.0
    %264 = vmatpush2.msra.mxu0 0.0
    %265 = vmatprep.subr.mxu0 0.0
    %266 = vmatpush2.msra.mxu0 0.0
    %267 = vmatprep.subr.mxu0 0.0
    %268 = vmatpush2.msra.mxu0 0.0
    %269 = vmatprep.subr.mxu0 0.0
    %270 = vmatpush2.msra.mxu0 0.0
    %271 = vmatprep.subr.mxu0 0.0
    %272 = vmatpush2.msra.mxu0 0.0
    %273 = vmatprep.subr.mxu0 0.0
    %274 = vmatpush2.msra.mxu0 0.0
    %275 = vmatprep.subr.mxu0 0.0
    %276 = vmatpush2.msra.mxu0 0.0
    %277 = vmatprep.subr.mxu0 0.0
    %278 = vmatpush2.msra.mxu0 0.0
    %279 = vmatprep.subr.mxu0 0.0
    %280 = vmatpush2.msra.mxu0 0.0
    %281 = vmatprep.subr.mxu0 0.0
    %282 = vmatpush2.msra.mxu0 0.0
    %283 = vmatprep.subr.mxu0 0.0
    %284 = vmatpush2.msra.mxu0 0.0
    %285 = vmatprep.subr.mxu0 0.0
    %286 = vmatpush2.msra.mxu0 0.0
    %287 = vmatprep.subr.mxu0 0.0
    %288 = vmatpush2.msra.mxu0 0.0
    %289 = vmatprep.subr.mxu0 0.0
    %290 = vmatpush2.msra.mxu0 0.0
    %291 = vmatprep.subr.mxu0 0.0
    %292 = vmatpush2.msra.mxu0 0.0
    %293 = vmatprep.mubr.f32.mxu0 0.0
    %294 = vmatmul.mubr.f32.gmra.mxu0 %v84
    %v295 = vpop.f32.mrf.mxu0
    %v296 = vadd.f32 0.0, %v295
    %v297 = vpop.f32.mrf.mxu0
    %v298 = vadd.f32 0.0, %v297
    %299 = vmatprep.mubr.f32.mxu0 0.0
    %300 = vmatmul.mubr.f32.gmra.mxu0 %v87
    %v301 = vpop.f32.mrf.mxu0
    %v302 = vadd.f32 0.0, %v301
    %v303 = vpop.f32.mrf.mxu0
    %v304 = vadd.f32 0.0, %v303
    %305 = vmatprep.mubr.f32.mxu0 0.0
    %306 = vmatmul.mubr.f32.gmra.mxu0 %v90
    %v307 = vpop.f32.mrf.mxu0
    %v308 = vadd.f32 0.0, %v307
    %v309 = vpop.f32.mrf.mxu0
    %v310 = vadd.f32 0.0, %v309
    %311 = vmatprep.mubr.f32.mxu0 0.0
    %312 = vmatmul.mubr.f32.gmra.mxu0 %v93
    %v313 = vpop.f32.mrf.mxu0
    %v314 = vadd.f32 0.0, %v313
    %v315 = vpop.f32.mrf.mxu0
    %v316 = vadd.f32 0.0, %v315
    %317 = vmatprep.mubr.f32.mxu0 0.0
    %318 = vmatmul.mubr.f32.gmra.mxu0 %v96
    %v319 = vpop.f32.mrf.mxu0
    %v320 = vadd.f32 0.0, %v319
    %v321 = vpop.f32.mrf.mxu0
    %v322 = vadd.f32 0.0, %v321
    %323 = vmatprep.mubr.f32.mxu0 0.0
    %324 = vmatmul.mubr.f32.gmra.mxu0 %v99
    %v325 = vpop.f32.mrf.mxu0
    %v326 = vadd.f32 0.0, %v325
    %v327 = vpop.f32.mrf.mxu0
    %v328 = vadd.f32 0.0, %v327
    %329 = vmatprep.mubr.f32.mxu0 0.0
    %330 = vmatmul.mubr.f32.gmra.mxu0 %v102
    %v331 = vpop.f32.mrf.mxu0
    %v332 = vadd.f32 0.0, %v331
    %v333 = vpop.f32.mrf.mxu0
    %v334 = vadd.f32 0.0, %v333
    %335 = vmatprep.mubr.f32.mxu0 0.0
    %336 = vmatmul.mubr.f32.gmra.mxu0 %v105
    %v337 = vpop.f32.mrf.mxu0
    %v338 = vadd.f32 0.0, %v337
    %v339 = vpop.f32.mrf.mxu0
    %v340 = vadd.f32 0.0, %v339
    %341 = vdwg.mxu0
    %vm342 = vcmask 130048
    %v344 = vsel %vm342, %v52, 0
    %v347 = vsel %vm342, %v53, 0
    %v350 = vsel %vm342, %v54, 0
    %v353 = vsel %vm342, %v55, 0
    %v356 = vsel %vm342, %v56, 0
    %v359 = vsel %vm342, %v57, 0
    %v362 = vsel %vm342, %v58, 0
    %v365 = vsel %vm342, %v59, 0
    %367 = vmatprep.subr.mxu0 0.0
    %368 = vmatpush1.msra.mxu0 0.0
    %369 = vmatprep.subr.mxu0 0.0
    %370 = vmatpush1.msra.mxu0 0.0
    %371 = vmatprep.subr.mxu0 0.0
    %372 = vmatpush1.msra.mxu0 0.0
    %373 = vmatprep.subr.mxu0 0.0
    %374 = vmatpush1.msra.mxu0 0.0
    %375 = vmatprep.subr.mxu0 0.0
    %376 = vmatpush1.msra.mxu0 0.0
    %377 = vmatprep.subr.mxu0 0.0
    %378 = vmatpush1.msra.mxu0 0.0
    %379 = vmatprep.subr.mxu0 0.0
    %380 = vmatpush1.msra.mxu0 0.0
    %381 = vmatprep.subr.mxu0 0.0
    %382 = vmatpush1.msra.mxu0 0.0
    %383 = vmatprep.subr.mxu0 0.0
    %384 = vmatpush1.msra.mxu0 0.0
    %385 = vmatprep.subr.mxu0 0.0
    %386 = vmatpush1.msra.mxu0 0.0
    %387 = vmatprep.subr.mxu0 0.0
    %388 = vmatpush1.msra.mxu0 0.0
    %389 = vmatprep.subr.mxu0 0.0
    %390 = vmatpush1.msra.mxu0 0.0
    %391 = vmatprep.subr.mxu0 0.0
    %392 = vmatpush1.msra.mxu0 0.0
    %393 = vmatprep.subr.mxu0 0.0
    %394 = vmatpush1.msra.mxu0 0.0
    %395 = vmatprep.subr.mxu0 %v65
    %396 = vmatpush1.msra.mxu0 %v64
    %397 = vmatprep.subr.mxu0 %v61
    %398 = vmatpush1.msra.mxu0 %v60
    %399 = vmatprep.subr.mxu0 0.0
    %400 = vmatpush2.msra.mxu0 0.0
    %401 = vmatprep.subr.mxu0 0.0
    %402 = vmatpush2.msra.mxu0 0.0
    %403 = vmatprep.subr.mxu0 0.0
    %404 = vmatpush2.msra.mxu0 0.0
    %405 = vmatprep.subr.mxu0 0.0
    %406 = vmatpush2.msra.mxu0 0.0
    %407 = vmatprep.subr.mxu0 0.0
    %408 = vmatpush2.msra.mxu0 0.0
    %409 = vmatprep.subr.mxu0 0.0
    %410 = vmatpush2.msra.mxu0 0.0
    %411 = vmatprep.subr.mxu0 0.0
    %412 = vmatpush2.msra.mxu0 0.0
    %413 = vmatprep.subr.mxu0 0.0
    %414 = vmatpush2.msra.mxu0 0.0
    %415 = vmatprep.subr.mxu0 0.0
    %416 = vmatpush2.msra.mxu0 0.0
    %417 = vmatprep.subr.mxu0 0.0
    %418 = vmatpush2.msra.mxu0 0.0
    %419 = vmatprep.subr.mxu0 0.0
    %420 = vmatpush2.msra.mxu0 0.0
    %421 = vmatprep.subr.mxu0 0.0
    %422 = vmatpush2.msra.mxu0 0.0
    %423 = vmatprep.subr.mxu0 0.0
    %424 = vmatpush2.msra.mxu0 0.0
    %425 = vmatprep.subr.mxu0 0.0
    %426 = vmatpush2.msra.mxu0 0.0
    %427 = vmatprep.subr.mxu0 0.0
    %428 = vmatpush2.msra.mxu0 0.0
    %429 = vmatprep.subr.mxu0 0.0
    %430 = vmatpush2.msra.mxu0 0.0
    %431 = vmatprep.mubr.f32.mxu0 0.0
    %432 = vmatmul.mubr.f32.gmra.mxu0 %v344
    %v433 = vpop.f32.mrf.mxu0
    %v434 = vadd.f32 %v183, %v433
    %v435 = vpop.f32.mrf.mxu0
    %v436 = vadd.f32 %v185, %v435
    %437 = vmatprep.mubr.f32.mxu0 0.0
    %438 = vmatmul.mubr.f32.gmra.mxu0 %v347
    %v439 = vpop.f32.mrf.mxu0
    %v440 = vadd.f32 %v189, %v439
    %v441 = vpop.f32.mrf.mxu0
    %v442 = vadd.f32 %v191, %v441
    %443 = vmatprep.mubr.f32.mxu0 0.0
    %444 = vmatmul.mubr.f32.gmra.mxu0 %v350
    %v445 = vpop.f32.mrf.mxu0
    %v446 = vadd.f32 %v195, %v445
    %v447 = vpop.f32.mrf.mxu0
    %v448 = vadd.f32 %v197, %v447
    %449 = vmatprep.mubr.f32.mxu0 0.0
    %450 = vmatmul.mubr.f32.gmra.mxu0 %v353
    %v451 = vpop.f32.mrf.mxu0
    %v452 = vadd.f32 %v201, %v451
    %v453 = vpop.f32.mrf.mxu0
    %v454 = vadd.f32 %v203, %v453
    %455 = vmatprep.mubr.f32.mxu0 0.0
    %456 = vmatmul.mubr.f32.gmra.mxu0 %v356
    %v457 = vpop.f32.mrf.mxu0
    %v458 = vadd.f32 %v207, %v457
    %v459 = vpop.f32.mrf.mxu0
    %v460 = vadd.f32 %v209, %v459
    %461 = vmatprep.mubr.f32.mxu0 0.0
    %462 = vmatmul.mubr.f32.gmra.mxu0 %v359
    %v463 = vpop.f32.mrf.mxu0
    %v464 = vadd.f32 %v213, %v463
    %v465 = vpop.f32.mrf.mxu0
    %v466 = vadd.f32 %v215, %v465
    %467 = vmatprep.mubr.f32.mxu0 0.0
    %468 = vmatmul.mubr.f32.gmra.mxu0 %v362
    %v469 = vpop.f32.mrf.mxu0
    %v470 = vadd.f32 %v219, %v469
    %v471 = vpop.f32.mrf.mxu0
    %v472 = vadd.f32 %v221, %v471
    %473 = vmatprep.mubr.f32.mxu0 0.0
    %474 = vmatmul.mubr.f32.gmra.mxu0 %v365
    %v475 = vpop.f32.mrf.mxu0
    %v476 = vadd.f32 %v225, %v475
    %v477 = vpop.f32.mrf.mxu0
    %v478 = vadd.f32 %v227, %v477
    %479 = vdwg.mxu0
    %480 = vmatprep.subr.mxu0 0.0
    %481 = vmatpush1.msra.mxu0 0.0
    %482 = vmatprep.subr.mxu0 0.0
    %483 = vmatpush1.msra.mxu0 0.0
    %484 = vmatprep.subr.mxu0 0.0
    %485 = vmatpush1.msra.mxu0 0.0
    %486 = vmatprep.subr.mxu0 0.0
    %487 = vmatpush1.msra.mxu0 0.0
    %488 = vmatprep.subr.mxu0 0.0
    %489 = vmatpush1.msra.mxu0 0.0
    %490 = vmatprep.subr.mxu0 0.0
    %491 = vmatpush1.msra.mxu0 0.0
    %492 = vmatprep.subr.mxu0 0.0
    %493 = vmatpush1.msra.mxu0 0.0
    %494 = vmatprep.subr.mxu0 0.0
    %495 = vmatpush1.msra.mxu0 0.0
    %496 = vmatprep.subr.mxu0 0.0
    %497 = vmatpush1.msra.mxu0 0.0
    %498 = vmatprep.subr.mxu0 0.0
    %499 = vmatpush1.msra.mxu0 0.0
    %500 = vmatprep.subr.mxu0 0.0
    %501 = vmatpush1.msra.mxu0 0.0
    %502 = vmatprep.subr.mxu0 0.0
    %503 = vmatpush1.msra.mxu0 0.0
    %504 = vmatprep.subr.mxu0 0.0
    %505 = vmatpush1.msra.mxu0 0.0
    %506 = vmatprep.subr.mxu0 0.0
    %507 = vmatpush1.msra.mxu0 0.0
    %508 = vmatprep.subr.mxu0 %v67
    %509 = vmatpush1.msra.mxu0 %v66
    %510 = vmatprep.subr.mxu0 %v63
    %511 = vmatpush1.msra.mxu0 %v62
    %512 = vmatprep.subr.mxu0 0.0
    %513 = vmatpush2.msra.mxu0 0.0
    %514 = vmatprep.subr.mxu0 0.0
    %515 = vmatpush2.msra.mxu0 0.0
    %516 = vmatprep.subr.mxu0 0.0
    %517 = vmatpush2.msra.mxu0 0.0
    %518 = vmatprep.subr.mxu0 0.0
    %519 = vmatpush2.msra.mxu0 0.0
    %520 = vmatprep.subr.mxu0 0.0
    %521 = vmatpush2.msra.mxu0 0.0
    %522 = vmatprep.subr.mxu0 0.0
    %523 = vmatpush2.msra.mxu0 0.0
    %524 = vmatprep.subr.mxu0 0.0
    %525 = vmatpush2.msra.mxu0 0.0
    %526 = vmatprep.subr.mxu0 0.0
    %527 = vmatpush2.msra.mxu0 0.0
    %528 = vmatprep.subr.mxu0 0.0
    %529 = vmatpush2.msra.mxu0 0.0
    %530 = vmatprep.subr.mxu0 0.0
    %531 = vmatpush2.msra.mxu0 0.0
    %532 = vmatprep.subr.mxu0 0.0
    %533 = vmatpush2.msra.mxu0 0.0
    %534 = vmatprep.subr.mxu0 0.0
    %535 = vmatpush2.msra.mxu0 0.0
    %536 = vmatprep.subr.mxu0 0.0
    %537 = vmatpush2.msra.mxu0 0.0
    %538 = vmatprep.subr.mxu0 0.0
    %539 = vmatpush2.msra.mxu0 0.0
    %540 = vmatprep.subr.mxu0 0.0
    %541 = vmatpush2.msra.mxu0 0.0
    %542 = vmatprep.subr.mxu0 0.0
    %543 = vmatpush2.msra.mxu0 0.0
    %544 = vmatprep.mubr.f32.mxu0 0.0
    %545 = vmatmul.mubr.f32.gmra.mxu0 %v344
    %v546 = vpop.f32.mrf.mxu0
    %v547 = vadd.f32 %v296, %v546
    %v548 = vpop.f32.mrf.mxu0
    %v549 = vadd.f32 %v298, %v548
    %550 = vmatprep.mubr.f32.mxu0 0.0
    %551 = vmatmul.mubr.f32.gmra.mxu0 %v347
    %v552 = vpop.f32.mrf.mxu0
    %v553 = vadd.f32 %v302, %v552
    %v554 = vpop.f32.mrf.mxu0
    %v555 = vadd.f32 %v304, %v554
    %556 = vmatprep.mubr.f32.mxu0 0.0
    %557 = vmatmul.mubr.f32.gmra.mxu0 %v350
    %v558 = vpop.f32.mrf.mxu0
    %v559 = vadd.f32 %v308, %v558
    %v560 = vpop.f32.mrf.mxu0
    %v561 = vadd.f32 %v310, %v560
    %562 = vmatprep.mubr.f32.mxu0 0.0
    %563 = vmatmul.mubr.f32.gmra.mxu0 %v353
    %v564 = vpop.f32.mrf.mxu0
    %v565 = vadd.f32 %v314, %v564
    %v566 = vpop.f32.mrf.mxu0
    %v567 = vadd.f32 %v316, %v566
    %568 = vmatprep.mubr.f32.mxu0 0.0
    %569 = vmatmul.mubr.f32.gmra.mxu0 %v356
    %v570 = vpop.f32.mrf.mxu0
    %v571 = vadd.f32 %v320, %v570
    %v572 = vpop.f32.mrf.mxu0
    %v573 = vadd.f32 %v322, %v572
    %574 = vmatprep.mubr.f32.mxu0 0.0
    %575 = vmatmul.mubr.f32.gmra.mxu0 %v359
    %v576 = vpop.f32.mrf.mxu0
    %v577 = vadd.f32 %v326, %v576
    %v578 = vpop.f32.mrf.mxu0
    %v579 = vadd.f32 %v328, %v578
    %580 = vmatprep.mubr.f32.mxu0 0.0
    %581 = vmatmul.mubr.f32.gmra.mxu0 %v362
    %v582 = vpop.f32.mrf.mxu0
    %v583 = vadd.f32 %v332, %v582
    %v584 = vpop.f32.mrf.mxu0
    %v585 = vadd.f32 %v334, %v584
    %586 = vmatprep.mubr.f32.mxu0 0.0
    %587 = vmatmul.mubr.f32.gmra.mxu0 %v365
    %v588 = vpop.f32.mrf.mxu0
    %v589 = vadd.f32 %v338, %v588
    %v590 = vpop.f32.mrf.mxu0
    %v591 = vadd.f32 %v340, %v590
    %592 = vdwg.mxu0
    %v593 = vld [vmem:[%s3] sm:$0xff]
    %v594 = vld [vmem:[%s3 + $0x8] sm:$0xff]
    %v595 = vld [vmem:[%s3 + $0x10] sm:$0xff]
    %v596 = vld [vmem:[%s3 + $0x18] sm:$0xff]
    %v597 = vld [vmem:[%s3 + $0x20] sm:$0xff]
    %v598 = vld [vmem:[%s3 + $0x28] sm:$0xff]
    %v599 = vld [vmem:[%s3 + $0x30] sm:$0xff]
    %v600 = vld [vmem:[%s3 + $0x38] sm:$0xff]
    %v601 = vld [vmem:[%s8] sm:$0xff]
    %v602 = vld [vmem:[%s8 + $0x8] sm:$0xff]
    %v603 = vld [vmem:[%s8 + $0x10] sm:$0xff]
    %v604 = vld [vmem:[%s8 + $0x18] sm:$0xff]
    %vm605 = vcmask 64512
    %v607 = vsel %vm605, %v593, 0
    %v610 = vsel %vm605, %v594, 0
    %v613 = vsel %vm605, %v595, 0
    %v616 = vsel %vm605, %v596, 0
    %v619 = vsel %vm605, %v597, 0
    %v622 = vsel %vm605, %v598, 0
    %v625 = vsel %vm605, %v599, 0
    %v628 = vsel %vm605, %v600, 0
    %630 = vmatprep.subr.mxu0 0.0
    %631 = vmatpush1.msra.mxu0 0.0
    %632 = vmatprep.subr.mxu0 0.0
    %633 = vmatpush1.msra.mxu0 0.0
    %634 = vmatprep.subr.mxu0 0.0
    %635 = vmatpush1.msra.mxu0 0.0
    %636 = vmatprep.subr.mxu0 0.0
    %637 = vmatpush1.msra.mxu0 0.0
    %638 = vmatprep.subr.mxu0 0.0
    %639 = vmatpush1.msra.mxu0 0.0
    %640 = vmatprep.subr.mxu0 0.0
    %641 = vmatpush1.msra.mxu0 0.0
    %642 = vmatprep.subr.mxu0 0.0
    %643 = vmatpush1.msra.mxu0 0.0
    %644 = vmatprep.subr.mxu0 0.0
    %645 = vmatpush1.msra.mxu0 0.0
    %646 = vmatprep.subr.mxu0 0.0
    %647 = vmatpush1.msra.mxu0 0.0
    %648 = vmatprep.subr.mxu0 0.0
    %649 = vmatpush1.msra.mxu0 0.0
    %650 = vmatprep.subr.mxu0 0.0
    %651 = vmatpush1.msra.mxu0 0.0
    %652 = vmatprep.subr.mxu0 0.0
    %653 = vmatpush1.msra.mxu0 0.0
    %654 = vmatprep.subr.mxu0 0.0
    %655 = vmatpush1.msra.mxu0 0.0
    %656 = vmatprep.subr.mxu0 0.0
    %657 = vmatpush1.msra.mxu0 0.0
    %658 = vmatprep.subr.mxu0 0.0
    %659 = vmatpush1.msra.mxu0 0.0
    %660 = vmatprep.subr.mxu0 %v602
    %661 = vmatpush1.msra.mxu0 %v601
    %662 = vmatprep.subr.mxu0 0.0
    %663 = vmatpush2.msra.mxu0 0.0
    %664 = vmatprep.subr.mxu0 0.0
    %665 = vmatpush2.msra.mxu0 0.0
    %666 = vmatprep.subr.mxu0 0.0
    %667 = vmatpush2.msra.mxu0 0.0
    %668 = vmatprep.subr.mxu0 0.0
    %669 = vmatpush2.msra.mxu0 0.0
    %670 = vmatprep.subr.mxu0 0.0
    %671 = vmatpush2.msra.mxu0 0.0
    %672 = vmatprep.subr.mxu0 0.0
    %673 = vmatpush2.msra.mxu0 0.0
    %674 = vmatprep.subr.mxu0 0.0
    %675 = vmatpush2.msra.mxu0 0.0
    %676 = vmatprep.subr.mxu0 0.0
    %677 = vmatpush2.msra.mxu0 0.0
    %678 = vmatprep.subr.mxu0 0.0
    %679 = vmatpush2.msra.mxu0 0.0
    %680 = vmatprep.subr.mxu0 0.0
    %681 = vmatpush2.msra.mxu0 0.0
    %682 = vmatprep.subr.mxu0 0.0
    %683 = vmatpush2.msra.mxu0 0.0
    %684 = vmatprep.subr.mxu0 0.0
    %685 = vmatpush2.msra.mxu0 0.0
    %686 = vmatprep.subr.mxu0 0.0
    %687 = vmatpush2.msra.mxu0 0.0
    %688 = vmatprep.subr.mxu0 0.0
    %689 = vmatpush2.msra.mxu0 0.0
    %690 = vmatprep.subr.mxu0 0.0
    %691 = vmatpush2.msra.mxu0 0.0
    %692 = vmatprep.subr.mxu0 0.0
    %693 = vmatpush2.msra.mxu0 0.0
    %694 = vmatprep.mubr.f32.mxu0 0.0
    %695 = vmatmul.mubr.f32.gmra.mxu0 %v607
    %v696 = vpop.f32.mrf.mxu0
    %v697 = vadd.f32 0.0, %v696
    %v698 = vpop.f32.mrf.mxu0
    %v699 = vadd.f32 0.0, %v698
    %700 = vmatprep.mubr.f32.mxu0 0.0
    %701 = vmatmul.mubr.f32.gmra.mxu0 %v610
    %v702 = vpop.f32.mrf.mxu0
    %v703 = vadd.f32 0.0, %v702
    %v704 = vpop.f32.mrf.mxu0
    %v705 = vadd.f32 0.0, %v704
    %706 = vmatprep.mubr.f32.mxu0 0.0
    %707 = vmatmul.mubr.f32.gmra.mxu0 %v613
    %v708 = vpop.f32.mrf.mxu0
    %v709 = vadd.f32 0.0, %v708
    %v710 = vpop.f32.mrf.mxu0
    %v711 = vadd.f32 0.0, %v710
    %712 = vmatprep.mubr.f32.mxu0 0.0
    %713 = vmatmul.mubr.f32.gmra.mxu0 %v616
    %v714 = vpop.f32.mrf.mxu0
    %v715 = vadd.f32 0.0, %v714
    %v716 = vpop.f32.mrf.mxu0
    %v717 = vadd.f32 0.0, %v716
    %718 = vmatprep.mubr.f32.mxu0 0.0
    %719 = vmatmul.mubr.f32.gmra.mxu0 %v619
    %v720 = vpop.f32.mrf.mxu0
    %v721 = vadd.f32 0.0, %v720
    %v722 = vpop.f32.mrf.mxu0
    %v723 = vadd.f32 0.0, %v722
    %724 = vmatprep.mubr.f32.mxu0 0.0
    %725 = vmatmul.mubr.f32.gmra.mxu0 %v622
    %v726 = vpop.f32.mrf.mxu0
    %v727 = vadd.f32 0.0, %v726
    %v728 = vpop.f32.mrf.mxu0
    %v729 = vadd.f32 0.0, %v728
    %730 = vmatprep.mubr.f32.mxu0 0.0
    %731 = vmatmul.mubr.f32.gmra.mxu0 %v625
    %v732 = vpop.f32.mrf.mxu0
    %v733 = vadd.f32 0.0, %v732
    %v734 = vpop.f32.mrf.mxu0
    %v735 = vadd.f32 0.0, %v734
    %736 = vmatprep.mubr.f32.mxu0 0.0
    %737 = vmatmul.mubr.f32.gmra.mxu0 %v628
    %v738 = vpop.f32.mrf.mxu0
    %v739 = vadd.f32 0.0, %v738
    %v740 = vpop.f32.mrf.mxu0
    %v741 = vadd.f32 0.0, %v740
    %742 = vdwg.mxu0
    %743 = vmatprep.subr.mxu0 0.0
    %744 = vmatpush1.msra.mxu0 0.0
    %745 = vmatprep.subr.mxu0 0.0
    %746 = vmatpush1.msra.mxu0 0.0
    %747 = vmatprep.subr.mxu0 0.0
    %748 = vmatpush1.msra.mxu0 0.0
    %749 = vmatprep.subr.mxu0 0.0
    %750 = vmatpush1.msra.mxu0 0.0
    %751 = vmatprep.subr.mxu0 0.0
    %752 = vmatpush1.msra.mxu0 0.0
    %753 = vmatprep.subr.mxu0 0.0
    %754 = vmatpush1.msra.mxu0 0.0
    %755 = vmatprep.subr.mxu0 0.0
    %756 = vmatpush1.msra.mxu0 0.0
    %757 = vmatprep.subr.mxu0 0.0
    %758 = vmatpush1.msra.mxu0 0.0
    %759 = vmatprep.subr.mxu0 0.0
    %760 = vmatpush1.msra.mxu0 0.0
    %761 = vmatprep.subr.mxu0 0.0
    %762 = vmatpush1.msra.mxu0 0.0
    %763 = vmatprep.subr.mxu0 0.0
    %764 = vmatpush1.msra.mxu0 0.0
    %765 = vmatprep.subr.mxu0 0.0
    %766 = vmatpush1.msra.mxu0 0.0
    %767 = vmatprep.subr.mxu0 0.0
    %768 = vmatpush1.msra.mxu0 0.0
    %769 = vmatprep.subr.mxu0 0.0
    %770 = vmatpush1.msra.mxu0 0.0
    %771 = vmatprep.subr.mxu0 0.0
    %772 = vmatpush1.msra.mxu0 0.0
    %773 = vmatprep.subr.mxu0 %v604
    %774 = vmatpush1.msra.mxu0 %v603
    %775 = vmatprep.subr.mxu0 0.0
    %776 = vmatpush2.msra.mxu0 0.0
    %777 = vmatprep.subr.mxu0 0.0
    %778 = vmatpush2.msra.mxu0 0.0
    %779 = vmatprep.subr.mxu0 0.0
    %780 = vmatpush2.msra.mxu0 0.0
    %781 = vmatprep.subr.mxu0 0.0
    %782 = vmatpush2.msra.mxu0 0.0
    %783 = vmatprep.subr.mxu0 0.0
    %784 = vmatpush2.msra.mxu0 0.0
    %785 = vmatprep.subr.mxu0 0.0
    %786 = vmatpush2.msra.mxu0 0.0
    %787 = vmatprep.subr.mxu0 0.0
    %788 = vmatpush2.msra.mxu0 0.0
    %789 = vmatprep.subr.mxu0 0.0
    %790 = vmatpush2.msra.mxu0 0.0
    %791 = vmatprep.subr.mxu0 0.0
    %792 = vmatpush2.msra.mxu0 0.0
    %793 = vmatprep.subr.mxu0 0.0
    %794 = vmatpush2.msra.mxu0 0.0
    %795 = vmatprep.subr.mxu0 0.0
    %796 = vmatpush2.msra.mxu0 0.0
    %797 = vmatprep.subr.mxu0 0.0
    %798 = vmatpush2.msra.mxu0 0.0
    %799 = vmatprep.subr.mxu0 0.0
    %800 = vmatpush2.msra.mxu0 0.0
    %801 = vmatprep.subr.mxu0 0.0
    %802 = vmatpush2.msra.mxu0 0.0
    %803 = vmatprep.subr.mxu0 0.0
    %804 = vmatpush2.msra.mxu0 0.0
    %805 = vmatprep.subr.mxu0 0.0
    %806 = vmatpush2.msra.mxu0 0.0
    %807 = vmatprep.mubr.f32.mxu0 0.0
    %808 = vmatmul.mubr.f32.gmra.mxu0 %v607
    %v809 = vpop.f32.mrf.mxu0
    %v810 = vadd.f32 0.0, %v809
    %v811 = vpop.f32.mrf.mxu0
    %v812 = vadd.f32 0.0, %v811
    %813 = vmatprep.mubr.f32.mxu0 0.0
    %814 = vmatmul.mubr.f32.gmra.mxu0 %v610
    %v815 = vpop.f32.mrf.mxu0
    %v816 = vadd.f32 0.0, %v815
    %v817 = vpop.f32.mrf.mxu0
    %v818 = vadd.f32 0.0, %v817
    %819 = vmatprep.mubr.f32.mxu0 0.0
    %820 = vmatmul.mubr.f32.gmra.mxu0 %v613
    %v821 = vpop.f32.mrf.mxu0
    %v822 = vadd.f32 0.0, %v821
    %v823 = vpop.f32.mrf.mxu0
    %v824 = vadd.f32 0.0, %v823
    %825 = vmatprep.mubr.f32.mxu0 0.0
    %826 = vmatmul.mubr.f32.gmra.mxu0 %v616
    %v827 = vpop.f32.mrf.mxu0
    %v828 = vadd.f32 0.0, %v827
    %v829 = vpop.f32.mrf.mxu0
    %v830 = vadd.f32 0.0, %v829
    %831 = vmatprep.mubr.f32.mxu0 0.0
    %832 = vmatmul.mubr.f32.gmra.mxu0 %v619
    %v833 = vpop.f32.mrf.mxu0
    %v834 = vadd.f32 0.0, %v833
    %v835 = vpop.f32.mrf.mxu0
    %v836 = vadd.f32 0.0, %v835
    %837 = vmatprep.mubr.f32.mxu0 0.0
    %838 = vmatmul.mubr.f32.gmra.mxu0 %v622
    %v839 = vpop.f32.mrf.mxu0
    %v840 = vadd.f32 0.0, %v839
    %v841 = vpop.f32.mrf.mxu0
    %v842 = vadd.f32 0.0, %v841
    %843 = vmatprep.mubr.f32.mxu0 0.0
    %844 = vmatmul.mubr.f32.gmra.mxu0 %v625
    %v845 = vpop.f32.mrf.mxu0
    %v846 = vadd.f32 0.0, %v845
    %v847 = vpop.f32.mrf.mxu0
    %v848 = vadd.f32 0.0, %v847
    %849 = vmatprep.mubr.f32.mxu0 0.0
    %850 = vmatmul.mubr.f32.gmra.mxu0 %v628
    %v851 = vpop.f32.mrf.mxu0
    %v852 = vadd.f32 0.0, %v851
    %v853 = vpop.f32.mrf.mxu0
    %v854 = vadd.f32 0.0, %v853
    %855 = vdwg.mxu0
    %v856 = vadd.f32 %v434, %v697
    %v857 = vadd.f32 %v436, %v699
    %v858 = vadd.f32 %v547, %v810
    %v859 = vadd.f32 %v549, %v812
    %v860 = vadd.f32 %v440, %v703
    %v861 = vadd.f32 %v442, %v705
    %v862 = vadd.f32 %v553, %v816
    %v863 = vadd.f32 %v555, %v818
    %v864 = vadd.f32 %v446, %v709
    %v865 = vadd.f32 %v448, %v711
    %v866 = vadd.f32 %v559, %v822
    %v867 = vadd.f32 %v561, %v824
    %v868 = vadd.f32 %v452, %v715
    %v869 = vadd.f32 %v454, %v717
    %v870 = vadd.f32 %v565, %v828
    %v871 = vadd.f32 %v567, %v830
    %v872 = vadd.f32 %v458, %v721
    %v873 = vadd.f32 %v460, %v723
    %v874 = vadd.f32 %v571, %v834
    %v875 = vadd.f32 %v573, %v836
    %v876 = vadd.f32 %v464, %v727
    %v877 = vadd.f32 %v466, %v729
    %v878 = vadd.f32 %v577, %v840
    %v879 = vadd.f32 %v579, %v842
    %v880 = vadd.f32 %v470, %v733
    %v881 = vadd.f32 %v472, %v735
    %v882 = vadd.f32 %v583, %v846
    %v883 = vadd.f32 %v585, %v848
    %v884 = vadd.f32 %v476, %v739
    %v885 = vadd.f32 %v478, %v741
    %v886 = vadd.f32 %v589, %v852
    %v887 = vadd.f32 %v591, %v854
    %v888 = vld [vmem:[%s4] sm:$0xff]
    %v889 = vld [vmem:[%s4 + $0x8] sm:$0xff]
    %v890 = vld [vmem:[%s4 + $0x10] sm:$0xff]
    %v891 = vld [vmem:[%s4 + $0x18] sm:$0xff]
    %v892 = vld [vmem:[%s4 + $0x20] sm:$0xff]
    %v893 = vld [vmem:[%s4 + $0x28] sm:$0xff]
    %v894 = vld [vmem:[%s4 + $0x30] sm:$0xff]
    %v895 = vld [vmem:[%s4 + $0x38] sm:$0xff]
    %v896 = vld [vmem:[%s9] sm:$0xff]
    %v897 = vld [vmem:[%s9 + $0x8] sm:$0xff]
    %v898 = vld [vmem:[%s9 + $0x10] sm:$0xff]
    %v899 = vld [vmem:[%s9 + $0x18] sm:$0xff]
    %v900 = vld [vmem:[%s9 + $0x20] sm:$0xff]
    %v901 = vld [vmem:[%s9 + $0x28] sm:$0xff]
    %v902 = vld [vmem:[%s9 + $0x30] sm:$0xff]
    %v903 = vld [vmem:[%s9 + $0x38] sm:$0xff]
    %v904 = vld [vmem:[%s9 + $0x40] sm:$0xff]
    %v905 = vld [vmem:[%s9 + $0x48] sm:$0xff]
    %v906 = vld [vmem:[%s9 + $0x50] sm:$0xff]
    %v907 = vld [vmem:[%s9 + $0x58] sm:$0xff]
    %v908 = vld [vmem:[%s9 + $0x60] sm:$0xff]
    %v909 = vld [vmem:[%s9 + $0x68] sm:$0xff]
    %v910 = vld [vmem:[%s9 + $0x70] sm:$0xff]
    %v911 = vld [vmem:[%s9 + $0x78] sm:$0xff]
    %v912 = vld [vmem:[%s9 + $0x80] sm:$0xff]
    %v913 = vld [vmem:[%s9 + $0x88] sm:$0xff]
    %v914 = vld [vmem:[%s9 + $0x90] sm:$0xff]
    %v915 = vld [vmem:[%s9 + $0x98] sm:$0xff]
    %v916 = vld [vmem:[%s9 + $0xa0] sm:$0xff]
    %v917 = vld [vmem:[%s9 + $0xa8] sm:$0xff]
    %v918 = vld [vmem:[%s9 + $0xb0] sm:$0xff]
    %v919 = vld [vmem:[%s9 + $0xb8] sm:$0xff]
    %v920 = vld [vmem:[%s9 + $0xc0] sm:$0xff]
    %v921 = vld [vmem:[%s9 + $0xc8] sm:$0xff]
    %v922 = vld [vmem:[%s9 + $0xd0] sm:$0xff]
    %v923 = vld [vmem:[%s9 + $0xd8] sm:$0xff]
    %v924 = vld [vmem:[%s9 + $0xe0] sm:$0xff]
    %v925 = vld [vmem:[%s9 + $0xe8] sm:$0xff]
    %v926 = vld [vmem:[%s9 + $0xf0] sm:$0xff]
    %v927 = vld [vmem:[%s9 + $0xf8] sm:$0xff]
    %v928 = vld [vmem:[%s9 + $0x100] sm:$0xff]
    %v929 = vld [vmem:[%s9 + $0x108] sm:$0xff]
    %v930 = vld [vmem:[%s9 + $0x110] sm:$0xff]
    %v931 = vld [vmem:[%s9 + $0x118] sm:$0xff]
    %v932 = vld [vmem:[%s9 + $0x120] sm:$0xff]
    %v933 = vld [vmem:[%s9 + $0x128] sm:$0xff]
    %v934 = vld [vmem:[%s9 + $0x130] sm:$0xff]
    %v935 = vld [vmem:[%s9 + $0x138] sm:$0xff]
    %v936 = vld [vmem:[%s9 + $0x140] sm:$0xff]
    %v937 = vld [vmem:[%s9 + $0x148] sm:$0xff]
    %v938 = vld [vmem:[%s9 + $0x150] sm:$0xff]
    %v939 = vld [vmem:[%s9 + $0x158] sm:$0xff]
    %v940 = vld [vmem:[%s9 + $0x160] sm:$0xff]
    %v941 = vld [vmem:[%s9 + $0x168] sm:$0xff]
    %v942 = vld [vmem:[%s9 + $0x170] sm:$0xff]
    %v943 = vld [vmem:[%s9 + $0x178] sm:$0xff]
    %v944 = vld [vmem:[%s9 + $0x180] sm:$0xff]
    %v945 = vld [vmem:[%s9 + $0x188] sm:$0xff]
    %v946 = vld [vmem:[%s9 + $0x190] sm:$0xff]
    %v947 = vld [vmem:[%s9 + $0x198] sm:$0xff]
    %v948 = vld [vmem:[%s9 + $0x1a0] sm:$0xff]
    %v949 = vld [vmem:[%s9 + $0x1a8] sm:$0xff]
    %v950 = vld [vmem:[%s9 + $0x1b0] sm:$0xff]
    %v951 = vld [vmem:[%s9 + $0x1b8] sm:$0xff]
    %v952 = vld [vmem:[%s9 + $0x1c0] sm:$0xff]
    %v953 = vld [vmem:[%s9 + $0x1c8] sm:$0xff]
    %v954 = vld [vmem:[%s9 + $0x1d0] sm:$0xff]
    %v955 = vld [vmem:[%s9 + $0x1d8] sm:$0xff]
    %v956 = vld [vmem:[%s9 + $0x1e0] sm:$0xff]
    %v957 = vld [vmem:[%s9 + $0x1e8] sm:$0xff]
    %v958 = vld [vmem:[%s9 + $0x1f0] sm:$0xff]
    %v959 = vld [vmem:[%s9 + $0x1f8] sm:$0xff]
    %960 = vmatprep.subr.mxu0 %v957
    %961 = vmatpush1.msra.mxu0 %v956
    %962 = vmatprep.subr.mxu0 %v953
    %963 = vmatpush1.msra.mxu0 %v952
    %964 = vmatprep.subr.mxu0 %v949
    %965 = vmatpush1.msra.mxu0 %v948
    %966 = vmatprep.subr.mxu0 %v945
    %967 = vmatpush1.msra.mxu0 %v944
    %968 = vmatprep.subr.mxu0 %v941
    %969 = vmatpush1.msra.mxu0 %v940
    %970 = vmatprep.subr.mxu0 %v937
    %971 = vmatpush1.msra.mxu0 %v936
    %972 = vmatprep.subr.mxu0 %v933
    %973 = vmatpush1.msra.mxu0 %v932
    %974 = vmatprep.subr.mxu0 %v929
    %975 = vmatpush1.msra.mxu0 %v928
    %976 = vmatprep.subr.mxu0 %v925
    %977 = vmatpush1.msra.mxu0 %v924
    %978 = vmatprep.subr.mxu0 %v921
    %979 = vmatpush1.msra.mxu0 %v920
    %980 = vmatprep.subr.mxu0 %v917
    %981 = vmatpush1.msra.mxu0 %v916
    %982 = vmatprep.subr.mxu0 %v913
    %983 = vmatpush1.msra.mxu0 %v912
    %984 = vmatprep.subr.mxu0 %v909
    %985 = vmatpush1.msra.mxu0 %v908
    %986 = vmatprep.subr.mxu0 %v905
    %987 = vmatpush1.msra.mxu0 %v904
    %988 = vmatprep.subr.mxu0 %v901
    %989 = vmatpush1.msra.mxu0 %v900
    %990 = vmatprep.subr.mxu0 %v897
    %991 = vmatpush1.msra.mxu0 %v896
    %992 = vmatprep.subr.mxu0 0.0
    %993 = vmatpush2.msra.mxu0 0.0
    %994 = vmatprep.subr.mxu0 0.0
    %995 = vmatpush2.msra.mxu0 0.0
    %996 = vmatprep.subr.mxu0 0.0
    %997 = vmatpush2.msra.mxu0 0.0
    %998 = vmatprep.subr.mxu0 0.0
    %999 = vmatpush2.msra.mxu0 0.0
    %1000 = vmatprep.subr.mxu0 0.0
    %1001 = vmatpush2.msra.mxu0 0.0
    %1002 = vmatprep.subr.mxu0 0.0
    %1003 = vmatpush2.msra.mxu0 0.0
    %1004 = vmatprep.subr.mxu0 0.0
    %1005 = vmatpush2.msra.mxu0 0.0
    %1006 = vmatprep.subr.mxu0 0.0
    %1007 = vmatpush2.msra.mxu0 0.0
    %1008 = vmatprep.subr.mxu0 0.0
    %1009 = vmatpush2.msra.mxu0 0.0
    %1010 = vmatprep.subr.mxu0 0.0
    %1011 = vmatpush2.msra.mxu0 0.0
    %1012 = vmatprep.subr.mxu0 0.0
    %1013 = vmatpush2.msra.mxu0 0.0
    %1014 = vmatprep.subr.mxu0 0.0
    %1015 = vmatpush2.msra.mxu0 0.0
    %1016 = vmatprep.subr.mxu0 0.0
    %1017 = vmatpush2.msra.mxu0 0.0
    %1018 = vmatprep.subr.mxu0 0.0
    %1019 = vmatpush2.msra.mxu0 0.0
    %1020 = vmatprep.subr.mxu0 0.0
    %1021 = vmatpush2.msra.mxu0 0.0
    %1022 = vmatprep.subr.mxu0 0.0
    %1023 = vmatpush2.msra.mxu0 0.0
    %1024 = vmatprep.mubr.f32.mxu0 0.0
    %1025 = vmatmul.mubr.f32.gmra.mxu0 %v888
    %v1026 = vpop.f32.mrf.mxu0
    %v1027 = vadd.f32 0.0, %v1026
    %v1028 = vpop.f32.mrf.mxu0
    %v1029 = vadd.f32 0.0, %v1028
    %1030 = vmatprep.mubr.f32.mxu0 0.0
    %1031 = vmatmul.mubr.f32.gmra.mxu0 %v889
    %v1032 = vpop.f32.mrf.mxu0
    %v1033 = vadd.f32 0.0, %v1032
    %v1034 = vpop.f32.mrf.mxu0
    %v1035 = vadd.f32 0.0, %v1034
    %1036 = vmatprep.mubr.f32.mxu0 0.0
    %1037 = vmatmul.mubr.f32.gmra.mxu0 %v890
    %v1038 = vpop.f32.mrf.mxu0
    %v1039 = vadd.f32 0.0, %v1038
    %v1040 = vpop.f32.mrf.mxu0
    %v1041 = vadd.f32 0.0, %v1040
    %1042 = vmatprep.mubr.f32.mxu0 0.0
    %1043 = vmatmul.mubr.f32.gmra.mxu0 %v891
    %v1044 = vpop.f32.mrf.mxu0
    %v1045 = vadd.f32 0.0, %v1044
    %v1046 = vpop.f32.mrf.mxu0
    %v1047 = vadd.f32 0.0, %v1046
    %1048 = vmatprep.mubr.f32.mxu0 0.0
    %1049 = vmatmul.mubr.f32.gmra.mxu0 %v892
    %v1050 = vpop.f32.mrf.mxu0
    %v1051 = vadd.f32 0.0, %v1050
    %v1052 = vpop.f32.mrf.mxu0
    %v1053 = vadd.f32 0.0, %v1052
    %1054 = vmatprep.mubr.f32.mxu0 0.0
    %1055 = vmatmul.mubr.f32.gmra.mxu0 %v893
    %v1056 = vpop.f32.mrf.mxu0
    %v1057 = vadd.f32 0.0, %v1056
    %v1058 = vpop.f32.mrf.mxu0
    %v1059 = vadd.f32 0.0, %v1058
    %1060 = vmatprep.mubr.f32.mxu0 0.0
    %1061 = vmatmul.mubr.f32.gmra.mxu0 %v894
    %v1062 = vpop.f32.mrf.mxu0
    %v1063 = vadd.f32 0.0, %v1062
    %v1064 = vpop.f32.mrf.mxu0
    %v1065 = vadd.f32 0.0, %v1064
    %1066 = vmatprep.mubr.f32.mxu0 0.0
    %1067 = vmatmul.mubr.f32.gmra.mxu0 %v895
    %v1068 = vpop.f32.mrf.mxu0
    %v1069 = vadd.f32 0.0, %v1068
    %v1070 = vpop.f32.mrf.mxu0
    %v1071 = vadd.f32 0.0, %v1070
    %1072 = vdwg.mxu0
    %1073 = vmatprep.subr.mxu0 %v959
    %1074 = vmatpush1.msra.mxu0 %v958
    %1075 = vmatprep.subr.mxu0 %v955
    %1076 = vmatpush1.msra.mxu0 %v954
    %1077 = vmatprep.subr.mxu0 %v951
    %1078 = vmatpush1.msra.mxu0 %v950
    %1079 = vmatprep.subr.mxu0 %v947
    %1080 = vmatpush1.msra.mxu0 %v946
    %1081 = vmatprep.subr.mxu0 %v943
    %1082 = vmatpush1.msra.mxu0 %v942
    %1083 = vmatprep.subr.mxu0 %v939
    %1084 = vmatpush1.msra.mxu0 %v938
    %1085 = vmatprep.subr.mxu0 %v935
    %1086 = vmatpush1.msra.mxu0 %v934
    %1087 = vmatprep.subr.mxu0 %v931
    %1088 = vmatpush1.msra.mxu0 %v930
    %1089 = vmatprep.subr.mxu0 %v927
    %1090 = vmatpush1.msra.mxu0 %v926
    %1091 = vmatprep.subr.mxu0 %v923
    %1092 = vmatpush1.msra.mxu0 %v922
    %1093 = vmatprep.subr.mxu0 %v919
    %1094 = vmatpush1.msra.mxu0 %v918
    %1095 = vmatprep.subr.mxu0 %v915
    %1096 = vmatpush1.msra.mxu0 %v914
    %1097 = vmatprep.subr.mxu0 %v911
    %1098 = vmatpush1.msra.mxu0 %v910
    %1099 = vmatprep.subr.mxu0 %v907
    %1100 = vmatpush1.msra.mxu0 %v906
    %1101 = vmatprep.subr.mxu0 %v903
    %1102 = vmatpush1.msra.mxu0 %v902
    %1103 = vmatprep.subr.mxu0 %v899
    %1104 = vmatpush1.msra.mxu0 %v898
    %1105 = vmatprep.subr.mxu0 0.0
    %1106 = vmatpush2.msra.mxu0 0.0
    %1107 = vmatprep.subr.mxu0 0.0
    %1108 = vmatpush2.msra.mxu0 0.0
    %1109 = vmatprep.subr.mxu0 0.0
    %1110 = vmatpush2.msra.mxu0 0.0
    %1111 = vmatprep.subr.mxu0 0.0
    %1112 = vmatpush2.msra.mxu0 0.0
    %1113 = vmatprep.subr.mxu0 0.0
    %1114 = vmatpush2.msra.mxu0 0.0
    %1115 = vmatprep.subr.mxu0 0.0
    %1116 = vmatpush2.msra.mxu0 0.0
    %1117 = vmatprep.subr.mxu0 0.0
    %1118 = vmatpush2.msra.mxu0 0.0
    %1119 = vmatprep.subr.mxu0 0.0
    %1120 = vmatpush2.msra.mxu0 0.0
    %1121 = vmatprep.subr.mxu0 0.0
    %1122 = vmatpush2.msra.mxu0 0.0
    %1123 = vmatprep.subr.mxu0 0.0
    %1124 = vmatpush2.msra.mxu0 0.0
    %1125 = vmatprep.subr.mxu0 0.0
    %1126 = vmatpush2.msra.mxu0 0.0
    %1127 = vmatprep.subr.mxu0 0.0
    %1128 = vmatpush2.msra.mxu0 0.0
    %1129 = vmatprep.subr.mxu0 0.0
    %1130 = vmatpush2.msra.mxu0 0.0
    %1131 = vmatprep.subr.mxu0 0.0
    %1132 = vmatpush2.msra.mxu0 0.0
    %1133 = vmatprep.subr.mxu0 0.0
    %1134 = vmatpush2.msra.mxu0 0.0
    %1135 = vmatprep.subr.mxu0 0.0
    %1136 = vmatpush2.msra.mxu0 0.0
    %1137 = vmatprep.mubr.f32.mxu0 0.0
    %1138 = vmatmul.mubr.f32.gmra.mxu0 %v888
    %v1139 = vpop.f32.mrf.mxu0
    %v1140 = vadd.f32 0.0, %v1139
    %v1141 = vpop.f32.mrf.mxu0
    %v1142 = vadd.f32 0.0, %v1141
    %1143 = vmatprep.mubr.f32.mxu0 0.0
    %1144 = vmatmul.mubr.f32.gmra.mxu0 %v889
    %v1145 = vpop.f32.mrf.mxu0
    %v1146 = vadd.f32 0.0, %v1145
    %v1147 = vpop.f32.mrf.mxu0
    %v1148 = vadd.f32 0.0, %v1147
    %1149 = vmatprep.mubr.f32.mxu0 0.0
    %1150 = vmatmul.mubr.f32.gmra.mxu0 %v890
    %v1151 = vpop.f32.mrf.mxu0
    %v1152 = vadd.f32 0.0, %v1151
    %v1153 = vpop.f32.mrf.mxu0
    %v1154 = vadd.f32 0.0, %v1153
    %1155 = vmatprep.mubr.f32.mxu0 0.0
    %1156 = vmatmul.mubr.f32.gmra.mxu0 %v891
    %v1157 = vpop.f32.mrf.mxu0
    %v1158 = vadd.f32 0.0, %v1157
    %v1159 = vpop.f32.mrf.mxu0
    %v1160 = vadd.f32 0.0, %v1159
    %1161 = vmatprep.mubr.f32.mxu0 0.0
    %1162 = vmatmul.mubr.f32.gmra.mxu0 %v892
    %v1163 = vpop.f32.mrf.mxu0
    %v1164 = vadd.f32 0.0, %v1163
    %v1165 = vpop.f32.mrf.mxu0
    %v1166 = vadd.f32 0.0, %v1165
    %1167 = vmatprep.mubr.f32.mxu0 0.0
    %1168 = vmatmul.mubr.f32.gmra.mxu0 %v893
    %v1169 = vpop.f32.mrf.mxu0
    %v1170 = vadd.f32 0.0, %v1169
    %v1171 = vpop.f32.mrf.mxu0
    %v1172 = vadd.f32 0.0, %v1171
    %1173 = vmatprep.mubr.f32.mxu0 0.0
    %1174 = vmatmul.mubr.f32.gmra.mxu0 %v894
    %v1175 = vpop.f32.mrf.mxu0
    %v1176 = vadd.f32 0.0, %v1175
    %v1177 = vpop.f32.mrf.mxu0
    %v1178 = vadd.f32 0.0, %v1177
    %1179 = vmatprep.mubr.f32.mxu0 0.0
    %1180 = vmatmul.mubr.f32.gmra.mxu0 %v895
    %v1181 = vpop.f32.mrf.mxu0
    %v1182 = vadd.f32 0.0, %v1181
    %v1183 = vpop.f32.mrf.mxu0
    %v1184 = vadd.f32 0.0, %v1183
    %1185 = vdwg.mxu0
    %v1186 = vadd.f32 %v856, %v1027
    %v1187 = vadd.f32 %v857, %v1029
    %v1188 = vadd.f32 %v858, %v1140
    %v1189 = vadd.f32 %v859, %v1142
    %v1190 = vadd.f32 %v860, %v1033
    %v1191 = vadd.f32 %v861, %v1035
    %v1192 = vadd.f32 %v862, %v1146
    %v1193 = vadd.f32 %v863, %v1148
    %v1194 = vadd.f32 %v864, %v1039
    %v1195 = vadd.f32 %v865, %v1041
    %v1196 = vadd.f32 %v866, %v1152
    %v1197 = vadd.f32 %v867, %v1154
    %v1198 = vadd.f32 %v868, %v1045
    %v1199 = vadd.f32 %v869, %v1047
    %v1200 = vadd.f32 %v870, %v1158
    %v1201 = vadd.f32 %v871, %v1160
    %v1202 = vadd.f32 %v872, %v1051
    %v1203 = vadd.f32 %v873, %v1053
    %v1204 = vadd.f32 %v874, %v1164
    %v1205 = vadd.f32 %v875, %v1166
    %v1206 = vadd.f32 %v876, %v1057
    %v1207 = vadd.f32 %v877, %v1059
    %v1208 = vadd.f32 %v878, %v1170
    %v1209 = vadd.f32 %v879, %v1172
    %v1210 = vadd.f32 %v880, %v1063
    %v1211 = vadd.f32 %v881, %v1065
    %v1212 = vadd.f32 %v882, %v1176
    %v1213 = vadd.f32 %v883, %v1178
    %v1214 = vadd.f32 %v884, %v1069
    %v1215 = vadd.f32 %v885, %v1071
    %v1216 = vadd.f32 %v886, %v1182
    %v1217 = vadd.f32 %v887, %v1184
    %v1218 = vld [vmem:[%s11] sm:$0xf]
    %v1220 = vlaneseq
    %v1221 = vshrl.u32 %v1220, 7
    %v1222 = vsub.s32 0, %v1221
    %v1223 = vrot.slane %v1218, %v1222
    %v1224 = vlaneseq
    %v1225 = vshrl.u32 %v1224, 7
    %v1226 = vsub.s32 1, %v1225
    %v1227 = vrot.slane %v1218, %v1226
    %v1228 = vlaneseq
    %v1229 = vshrl.u32 %v1228, 7
    %v1230 = vsub.s32 2, %v1229
    %v1231 = vrot.slane %v1218, %v1230
    %v1232 = vlaneseq
    %v1233 = vshrl.u32 %v1232, 7
    %v1234 = vsub.s32 3, %v1233
    %v1235 = vrot.slane %v1218, %v1234
    %v1240 = vadd.f32 %v1186, %v1223
    %v1241 = vadd.f32 %v1187, %v1227
    %v1242 = vadd.f32 %v1188, %v1231
    %v1243 = vadd.f32 %v1189, %v1235
    %v1244 = vadd.f32 %v1190, %v1223
    %v1245 = vadd.f32 %v1191, %v1227
    %v1246 = vadd.f32 %v1192, %v1231
    %v1247 = vadd.f32 %v1193, %v1235
    %v1248 = vadd.f32 %v1194, %v1223
    %v1249 = vadd.f32 %v1195, %v1227
    %v1250 = vadd.f32 %v1196, %v1231
    %v1251 = vadd.f32 %v1197, %v1235
    %v1252 = vadd.f32 %v1198, %v1223
    %v1253 = vadd.f32 %v1199, %v1227
    %v1254 = vadd.f32 %v1200, %v1231
    %v1255 = vadd.f32 %v1201, %v1235
    %v1256 = vadd.f32 %v1202, %v1223
    %v1257 = vadd.f32 %v1203, %v1227
    %v1258 = vadd.f32 %v1204, %v1231
    %v1259 = vadd.f32 %v1205, %v1235
    %v1260 = vadd.f32 %v1206, %v1223
    %v1261 = vadd.f32 %v1207, %v1227
    %v1262 = vadd.f32 %v1208, %v1231
    %v1263 = vadd.f32 %v1209, %v1235
    %v1264 = vadd.f32 %v1210, %v1223
    %v1265 = vadd.f32 %v1211, %v1227
    %v1266 = vadd.f32 %v1212, %v1231
    %v1267 = vadd.f32 %v1213, %v1235
    %v1268 = vadd.f32 %v1214, %v1223
    %v1269 = vadd.f32 %v1215, %v1227
    %v1270 = vadd.f32 %v1216, %v1231
    %v1271 = vadd.f32 %v1217, %v1235
    %1272 = vst [vmem:[#allocation2] sm:$0xff] %v1240
    %1273 = vst [vmem:[#allocation2 + $0x8] sm:$0xff] %v1241
    %1274 = vst [vmem:[#allocation2 + $0x10] sm:$0xff] %v1242
    %1275 = vst [vmem:[#allocation2 + $0x18] sm:$0xff] %v1243
    %1276 = vst [vmem:[#allocation2 + $0x20] sm:$0xff] %v1244
    %1277 = vst [vmem:[#allocation2 + $0x28] sm:$0xff] %v1245
    %1278 = vst [vmem:[#allocation2 + $0x30] sm:$0xff] %v1246
    %1279 = vst [vmem:[#allocation2 + $0x38] sm:$0xff] %v1247
    %1280 = vst [vmem:[#allocation2 + $0x40] sm:$0xff] %v1248
    %1281 = vst [vmem:[#allocation2 + $0x48] sm:$0xff] %v1249
    %1282 = vst [vmem:[#allocation2 + $0x50] sm:$0xff] %v1250
    %1283 = vst [vmem:[#allocation2 + $0x58] sm:$0xff] %v1251
    %1284 = vst [vmem:[#allocation2 + $0x60] sm:$0xff] %v1252
    %1285 = vst [vmem:[#allocation2 + $0x68] sm:$0xff] %v1253
    %1286 = vst [vmem:[#allocation2 + $0x70] sm:$0xff] %v1254
    %1287 = vst [vmem:[#allocation2 + $0x78] sm:$0xff] %v1255
    %1288 = vst [vmem:[#allocation2 + $0x80] sm:$0xff] %v1256
    %1289 = vst [vmem:[#allocation2 + $0x88] sm:$0xff] %v1257
    %1290 = vst [vmem:[#allocation2 + $0x90] sm:$0xff] %v1258
    %1291 = vst [vmem:[#allocation2 + $0x98] sm:$0xff] %v1259
    %1292 = vst [vmem:[#allocation2 + $0xa0] sm:$0xff] %v1260
    %1293 = vst [vmem:[#allocation2 + $0xa8] sm:$0xff] %v1261
    %1294 = vst [vmem:[#allocation2 + $0xb0] sm:$0xff] %v1262
    %1295 = vst [vmem:[#allocation2 + $0xb8] sm:$0xff] %v1263
    %1296 = vst [vmem:[#allocation2 + $0xc0] sm:$0xff] %v1264
    %1297 = vst [vmem:[#allocation2 + $0xc8] sm:$0xff] %v1265
    %1298 = vst [vmem:[#allocation2 + $0xd0] sm:$0xff] %v1266
    %1299 = vst [vmem:[#allocation2 + $0xd8] sm:$0xff] %v1267
    %1300 = vst [vmem:[#allocation2 + $0xe0] sm:$0xff] %v1268
    %1301 = vst [vmem:[#allocation2 + $0xe8] sm:$0xff] %v1269
    %1302 = vst [vmem:[#allocation2 + $0xf0] sm:$0xff] %v1270
    %1303 = vst [vmem:[#allocation2 + $0xf8] sm:$0xff] %v1271
  $region61: #{hybrid_code_network.1} parent=0 // pred_fallthru
    _
  %v1304 = vld [vmem:[#allocation2] sm:$0xff]
  %v1305 = vld [vmem:[#allocation2 + $0x8] sm:$0xff]
  %v1306 = vld [vmem:[#allocation2 + $0x10] sm:$0xff]
  %v1307 = vld [vmem:[#allocation2 + $0x18] sm:$0xff]
  %v1308 = vld [vmem:[#allocation2 + $0x20] sm:$0xff]
  %v1309 = vld [vmem:[#allocation2 + $0x28] sm:$0xff]
  %v1310 = vld [vmem:[#allocation2 + $0x30] sm:$0xff]
  %v1311 = vld [vmem:[#allocation2 + $0x38] sm:$0xff]
  %v1312 = vld [vmem:[#allocation2 + $0x40] sm:$0xff]
  %v1313 = vld [vmem:[#allocation2 + $0x48] sm:$0xff]
  %v1314 = vld [vmem:[#allocation2 + $0x50] sm:$0xff]
  %v1315 = vld [vmem:[#allocation2 + $0x58] sm:$0xff]
  %v1316 = vld [vmem:[#allocation2 + $0x60] sm:$0xff]
  %v1317 = vld [vmem:[#allocation2 + $0x68] sm:$0xff]
  %v1318 = vld [vmem:[#allocation2 + $0x70] sm:$0xff]
  %v1319 = vld [vmem:[#allocation2 + $0x78] sm:$0xff]
  %v1320 = vld [vmem:[#allocation2 + $0x80] sm:$0xff]
  %v1321 = vld [vmem:[#allocation2 + $0x88] sm:$0xff]
  %v1322 = vld [vmem:[#allocation2 + $0x90] sm:$0xff]
  %v1323 = vld [vmem:[#allocation2 + $0x98] sm:$0xff]
  %v1324 = vld [vmem:[#allocation2 + $0xa0] sm:$0xff]
  %v1325 = vld [vmem:[#allocation2 + $0xa8] sm:$0xff]
  %v1326 = vld [vmem:[#allocation2 + $0xb0] sm:$0xff]
  %v1327 = vld [vmem:[#allocation2 + $0xb8] sm:$0xff]
  %v1328 = vld [vmem:[#allocation2 + $0xc0] sm:$0xff]
  %v1329 = vld [vmem:[#allocation2 + $0xc8] sm:$0xff]
  %v1330 = vld [vmem:[#allocation2 + $0xd0] sm:$0xff]
  %v1331 = vld [vmem:[#allocation2 + $0xd8] sm:$0xff]
  %v1332 = vld [vmem:[#allocation2 + $0xe0] sm:$0xff]
  %v1333 = vld [vmem:[#allocation2 + $0xe8] sm:$0xff]
  %v1334 = vld [vmem:[#allocation2 + $0xf0] sm:$0xff]
  %v1335 = vld [vmem:[#allocation2 + $0xf8] sm:$0xff]
  %v1336 = vld [vmem:[%s0] sm:$0xf]
  %v1337 = vld [vmem:[%s0 + $0x4] sm:$0xf]
  %v1338 = vld [vmem:[%s0 + $0x8] sm:$0xf]
  %v1339 = vld [vmem:[%s0 + $0xc] sm:$0xf]
  %v1340 = vld [vmem:[%s0 + $0x10] sm:$0xf]
  %v1341 = vld [vmem:[%s0 + $0x14] sm:$0xf]
  %v1342 = vld [vmem:[%s0 + $0x18] sm:$0xf]
  %v1343 = vld [vmem:[%s0 + $0x1c] sm:$0xf]
  %v1344 = vld [vmem:[%s5] sm:$0xff]
  %v1345 = vld [vmem:[%s5 + $0x8] sm:$0xff]
  %v1346 = vld [vmem:[%s5 + $0x10] sm:$0xff]
  %v1347 = vld [vmem:[%s5 + $0x18] sm:$0xff]
  %v1348 = vld [vmem:[%s5 + $0x20] sm:$0xff]
  %v1349 = vld [vmem:[%s5 + $0x28] sm:$0xff]
  %v1350 = vld [vmem:[%s5 + $0x30] sm:$0xff]
  %v1351 = vld [vmem:[%s5 + $0x38] sm:$0xff]
  %v1352 = vld [vmem:[%s5 + $0x40] sm:$0xff]
  %v1353 = vld [vmem:[%s5 + $0x48] sm:$0xff]
  %v1354 = vld [vmem:[%s5 + $0x50] sm:$0xff]
  %v1355 = vld [vmem:[%s5 + $0x58] sm:$0xff]
  %v1356 = vld [vmem:[%s5 + $0x60] sm:$0xff]
  %v1357 = vld [vmem:[%s5 + $0x68] sm:$0xff]
  %v1358 = vld [vmem:[%s5 + $0x70] sm:$0xff]
  %v1359 = vld [vmem:[%s5 + $0x78] sm:$0xff]
  %v1360 = vld [vmem:[%s5 + $0x80] sm:$0xff]
  %v1361 = vld [vmem:[%s5 + $0x88] sm:$0xff]
  %v1362 = vld [vmem:[%s5 + $0x90] sm:$0xff]
  %v1363 = vld [vmem:[%s5 + $0x98] sm:$0xff]
  %v1364 = vld [vmem:[%s5 + $0xa0] sm:$0xff]
  %v1365 = vld [vmem:[%s5 + $0xa8] sm:$0xff]
  %v1366 = vld [vmem:[%s5 + $0xb0] sm:$0xff]
  %v1367 = vld [vmem:[%s5 + $0xb8] sm:$0xff]
  %v1368 = vld [vmem:[%s5 + $0xc0] sm:$0xff]
  %v1369 = vld [vmem:[%s5 + $0xc8] sm:$0xff]
  %v1370 = vld [vmem:[%s5 + $0xd0] sm:$0xff]
  %v1371 = vld [vmem:[%s5 + $0xd8] sm:$0xff]
  %v1372 = vld [vmem:[%s5 + $0xe0] sm:$0xff]
  %v1373 = vld [vmem:[%s5 + $0xe8] sm:$0xff]
  %v1374 = vld [vmem:[%s5 + $0xf0] sm:$0xff]
  %v1375 = vld [vmem:[%s5 + $0xf8] sm:$0xff]
  %v1384 = vunpack.c.l.b16 %v1336
  %v1385 = vunpack.c.l.b16 %v1337
  %v1386 = vunpack.c.l.b16 %v1338
  %v1387 = vunpack.c.l.b16 %v1339
  %v1388 = vunpack.c.l.b16 %v1340
  %v1389 = vunpack.c.l.b16 %v1341
  %v1390 = vunpack.c.l.b16 %v1342
  %v1391 = vunpack.c.l.b16 %v1343
  %v1392 = vpack.c.b16 %v1385, %v1384
  %v1393 = vpack.c.b16 %v1387, %v1386
  %v1394 = vpack.c.b16 %v1389, %v1388
  %v1395 = vpack.c.b16 %v1391, %v1390
  %v1432 = vunpack.c.l.b16 %v1344
  %v1433 = vunpack.c.h.b16 %v1344
  %v1434 = vunpack.c.l.b16 %v1345
  %v1435 = vunpack.c.h.b16 %v1345
  %v1436 = vunpack.c.l.b16 %v1346
  %v1437 = vunpack.c.h.b16 %v1346
  %v1438 = vunpack.c.l.b16 %v1347
  %v1439 = vunpack.c.h.b16 %v1347
  %v1440 = vunpack.c.l.b16 %v1348
  %v1441 = vunpack.c.h.b16 %v1348
  %v1442 = vunpack.c.l.b16 %v1349
  %v1443 = vunpack.c.h.b16 %v1349
  %v1444 = vunpack.c.l.b16 %v1350
  %v1445 = vunpack.c.h.b16 %v1350
  %v1446 = vunpack.c.l.b16 %v1351
  %v1447 = vunpack.c.h.b16 %v1351
  %v1448 = vunpack.c.l.b16 %v1352
  %v1449 = vunpack.c.h.b16 %v1352
  %v1450 = vunpack.c.l.b16 %v1353
  %v1451 = vunpack.c.h.b16 %v1353
  %v1452 = vunpack.c.l.b16 %v1354
  %v1453 = vunpack.c.h.b16 %v1354
  %v1454 = vunpack.c.l.b16 %v1355
  %v1455 = vunpack.c.h.b16 %v1355
  %v1456 = vunpack.c.l.b16 %v1356
  %v1457 = vunpack.c.h.b16 %v1356
  %v1458 = vunpack.c.l.b16 %v1357
  %v1459 = vunpack.c.h.b16 %v1357
  %v1460 = vunpack.c.l.b16 %v1358
  %v1461 = vunpack.c.h.b16 %v1358
  %v1462 = vunpack.c.l.b16 %v1359
  %v1463 = vunpack.c.h.b16 %v1359
  %v1464 = vunpack.c.l.b16 %v1360
  %v1465 = vunpack.c.h.b16 %v1360
  %v1466 = vunpack.c.l.b16 %v1361
  %v1467 = vunpack.c.h.b16 %v1361
  %v1468 = vunpack.c.l.b16 %v1362
  %v1469 = vunpack.c.h.b16 %v1362
  %v1470 = vunpack.c.l.b16 %v1363
  %v1471 = vunpack.c.h.b16 %v1363
  %v1472 = vunpack.c.l.b16 %v1364
  %v1473 = vunpack.c.h.b16 %v1364
  %v1474 = vunpack.c.l.b16 %v1365
  %v1475 = vunpack.c.h.b16 %v1365
  %v1476 = vunpack.c.l.b16 %v1366
  %v1477 = vunpack.c.h.b16 %v1366
  %v1478 = vunpack.c.l.b16 %v1367
  %v1479 = vunpack.c.h.b16 %v1367
  %v1480 = vunpack.c.l.b16 %v1368
  %v1481 = vunpack.c.h.b16 %v1368
  %v1482 = vunpack.c.l.b16 %v1369
  %v1483 = vunpack.c.h.b16 %v1369
  %v1484 = vunpack.c.l.b16 %v1370
  %v1485 = vunpack.c.h.b16 %v1370
  %v1486 = vunpack.c.l.b16 %v1371
  %v1487 = vunpack.c.h.b16 %v1371
  %v1488 = vunpack.c.l.b16 %v1372
  %v1489 = vunpack.c.h.b16 %v1372
  %v1490 = vunpack.c.l.b16 %v1373
  %v1491 = vunpack.c.h.b16 %v1373
  %v1492 = vunpack.c.l.b16 %v1374
  %v1493 = vunpack.c.h.b16 %v1374
  %v1494 = vunpack.c.l.b16 %v1375
  %v1495 = vunpack.c.h.b16 %v1375
  %v1496 = vpack.c.b16 %v1436, %v1432
  %v1497 = vpack.c.b16 %v1437, %v1433
  %v1498 = vpack.c.b16 %v1438, %v1434
  %v1499 = vpack.c.b16 %v1439, %v1435
  %v1500 = vpack.c.b16 %v1444, %v1440
  %v1501 = vpack.c.b16 %v1445, %v1441
  %v1502 = vpack.c.b16 %v1446, %v1442
  %v1503 = vpack.c.b16 %v1447, %v1443
  %v1504 = vpack.c.b16 %v1452, %v1448
  %v1505 = vpack.c.b16 %v1453, %v1449
  %v1506 = vpack.c.b16 %v1454, %v1450
  %v1507 = vpack.c.b16 %v1455, %v1451
  %v1508 = vpack.c.b16 %v1460, %v1456
  %v1509 = vpack.c.b16 %v1461, %v1457
  %v1510 = vpack.c.b16 %v1462, %v1458
  %v1511 = vpack.c.b16 %v1463, %v1459
  %v1512 = vpack.c.b16 %v1468, %v1464
  %v1513 = vpack.c.b16 %v1469, %v1465
  %v1514 = vpack.c.b16 %v1470, %v1466
  %v1515 = vpack.c.b16 %v1471, %v1467
  %v1516 = vpack.c.b16 %v1476, %v1472
  %v1517 = vpack.c.b16 %v1477, %v1473
  %v1518 = vpack.c.b16 %v1478, %v1474
  %v1519 = vpack.c.b16 %v1479, %v1475
  %v1520 = vpack.c.b16 %v1484, %v1480
  %v1521 = vpack.c.b16 %v1485, %v1481
  %v1522 = vpack.c.b16 %v1486, %v1482
  %v1523 = vpack.c.b16 %v1487, %v1483
  %v1524 = vpack.c.b16 %v1492, %v1488
  %v1525 = vpack.c.b16 %v1493, %v1489
  %v1526 = vpack.c.b16 %v1494, %v1490
  %v1527 = vpack.c.b16 %v1495, %v1491
  %1560 = vmatprep.subr.bf16.mxu0 %v1525
  %1561 = vmatpush1.bf16.msra.mxu0 %v1524
  %1562 = vmatprep.subr.bf16.mxu0 %v1521
  %1563 = vmatpush1.bf16.msra.mxu0 %v1520
  %1564 = vmatprep.subr.bf16.mxu0 %v1517
  %1565 = vmatpush1.bf16.msra.mxu0 %v1516
  %1566 = vmatprep.subr.bf16.mxu0 %v1513
  %1567 = vmatpush1.bf16.msra.mxu0 %v1512
  %1568 = vmatprep.subr.bf16.mxu0 %v1509
  %1569 = vmatpush1.bf16.msra.mxu0 %v1508
  %1570 = vmatprep.subr.bf16.mxu0 %v1505
  %1571 = vmatpush1.bf16.msra.mxu0 %v1504
  %1572 = vmatprep.subr.bf16.mxu0 %v1501
  %1573 = vmatpush1.bf16.msra.mxu0 %v1500
  %1574 = vmatprep.subr.bf16.mxu0 %v1497
  %1575 = vmatpush1.bf16.msra.mxu0 %v1496
  %1576 = vmatprep.subr.bf16.mxu0 0
  %1577 = vmatpush2.bf16.msra.mxu0 0
  %1578 = vmatprep.subr.bf16.mxu0 0
  %1579 = vmatpush2.bf16.msra.mxu0 0
  %1580 = vmatprep.subr.bf16.mxu0 0
  %1581 = vmatpush2.bf16.msra.mxu0 0
  %1582 = vmatprep.subr.bf16.mxu0 0
  %1583 = vmatpush2.bf16.msra.mxu0 0
  %1584 = vmatprep.subr.bf16.mxu0 0
  %1585 = vmatpush2.bf16.msra.mxu0 0
  %1586 = vmatprep.subr.bf16.mxu0 0
  %1587 = vmatpush2.bf16.msra.mxu0 0
  %1588 = vmatprep.subr.bf16.mxu0 0
  %1589 = vmatpush2.bf16.msra.mxu0 0
  %1590 = vmatprep.subr.bf16.mxu0 0
  %1591 = vmatpush2.bf16.msra.mxu0 0
  %1592 = vmatprep.mubr.bf16.mxu0 0
  %1593 = vmatmul.mubr.bf16.gmra.mxu0 %v1392
  %v1594 = vpop.f32.mrf.mxu0
  %v1595 = vadd.f32 0.0, %v1594
  %v1596 = vpop.f32.mrf.mxu0
  %v1597 = vadd.f32 0.0, %v1596
  %v1598 = vpop.f32.mrf.mxu0
  %v1599 = vadd.f32 0.0, %v1598
  %v1600 = vpop.f32.mrf.mxu0
  %v1601 = vadd.f32 0.0, %v1600
  %1602 = vmatprep.mubr.bf16.mxu0 0
  %1603 = vmatmul.mubr.bf16.gmra.mxu0 %v1393
  %v1604 = vpop.f32.mrf.mxu0
  %v1605 = vadd.f32 0.0, %v1604
  %v1606 = vpop.f32.mrf.mxu0
  %v1607 = vadd.f32 0.0, %v1606
  %v1608 = vpop.f32.mrf.mxu0
  %v1609 = vadd.f32 0.0, %v1608
  %v1610 = vpop.f32.mrf.mxu0
  %v1611 = vadd.f32 0.0, %v1610
  %1612 = vmatprep.mubr.bf16.mxu0 0
  %1613 = vmatmul.mubr.bf16.gmra.mxu0 %v1394
  %v1614 = vpop.f32.mrf.mxu0
  %v1615 = vadd.f32 0.0, %v1614
  %v1616 = vpop.f32.mrf.mxu0
  %v1617 = vadd.f32 0.0, %v1616
  %v1618 = vpop.f32.mrf.mxu0
  %v1619 = vadd.f32 0.0, %v1618
  %v1620 = vpop.f32.mrf.mxu0
  %v1621 = vadd.f32 0.0, %v1620
  %1622 = vmatprep.mubr.bf16.mxu0 0
  %1623 = vmatmul.mubr.bf16.gmra.mxu0 %v1395
  %v1624 = vpop.f32.mrf.mxu0
  %v1625 = vadd.f32 0.0, %v1624
  %v1626 = vpop.f32.mrf.mxu0
  %v1627 = vadd.f32 0.0, %v1626
  %v1628 = vpop.f32.mrf.mxu0
  %v1629 = vadd.f32 0.0, %v1628
  %v1630 = vpop.f32.mrf.mxu0
  %v1631 = vadd.f32 0.0, %v1630
  %1632 = vdwg.mxu0
  %1633 = vmatprep.subr.bf16.mxu0 %v1527
  %1634 = vmatpush1.bf16.msra.mxu0 %v1526
  %1635 = vmatprep.subr.bf16.mxu0 %v1523
  %1636 = vmatpush1.bf16.msra.mxu0 %v1522
  %1637 = vmatprep.subr.bf16.mxu0 %v1519
  %1638 = vmatpush1.bf16.msra.mxu0 %v1518
  %1639 = vmatprep.subr.bf16.mxu0 %v1515
  %1640 = vmatpush1.bf16.msra.mxu0 %v1514
  %1641 = vmatprep.subr.bf16.mxu0 %v1511
  %1642 = vmatpush1.bf16.msra.mxu0 %v1510
  %1643 = vmatprep.subr.bf16.mxu0 %v1507
  %1644 = vmatpush1.bf16.msra.mxu0 %v1506
  %1645 = vmatprep.subr.bf16.mxu0 %v1503
  %1646 = vmatpush1.bf16.msra.mxu0 %v1502
  %1647 = vmatprep.subr.bf16.mxu0 %v1499
  %1648 = vmatpush1.bf16.msra.mxu0 %v1498
  %1649 = vmatprep.subr.bf16.mxu0 0
  %1650 = vmatpush2.bf16.msra.mxu0 0
  %1651 = vmatprep.subr.bf16.mxu0 0
  %1652 = vmatpush2.bf16.msra.mxu0 0
  %1653 = vmatprep.subr.bf16.mxu0 0
  %1654 = vmatpush2.bf16.msra.mxu0 0
  %1655 = vmatprep.subr.bf16.mxu0 0
  %1656 = vmatpush2.bf16.msra.mxu0 0
  %1657 = vmatprep.subr.bf16.mxu0 0
  %1658 = vmatpush2.bf16.msra.mxu0 0
  %1659 = vmatprep.subr.bf16.mxu0 0
  %1660 = vmatpush2.bf16.msra.mxu0 0
  %1661 = vmatprep.subr.bf16.mxu0 0
  %1662 = vmatpush2.bf16.msra.mxu0 0
  %1663 = vmatprep.subr.bf16.mxu0 0
  %1664 = vmatpush2.bf16.msra.mxu0 0
  %1665 = vmatprep.mubr.bf16.mxu0 0
  %1666 = vmatmul.mubr.bf16.gmra.mxu0 %v1392
  %v1667 = vpop.f32.mrf.mxu0
  %v1668 = vadd.f32 0.0, %v1667
  %v1669 = vpop.f32.mrf.mxu0
  %v1670 = vadd.f32 0.0, %v1669
  %v1671 = vpop.f32.mrf.mxu0
  %v1672 = vadd.f32 0.0, %v1671
  %v1673 = vpop.f32.mrf.mxu0
  %v1674 = vadd.f32 0.0, %v1673
  %1675 = vmatprep.mubr.bf16.mxu0 0
  %1676 = vmatmul.mubr.bf16.gmra.mxu0 %v1393
  %v1677 = vpop.f32.mrf.mxu0
  %v1678 = vadd.f32 0.0, %v1677
  %v1679 = vpop.f32.mrf.mxu0
  %v1680 = vadd.f32 0.0, %v1679
  %v1681 = vpop.f32.mrf.mxu0
  %v1682 = vadd.f32 0.0, %v1681
  %v1683 = vpop.f32.mrf.mxu0
  %v1684 = vadd.f32 0.0, %v1683
  %1685 = vmatprep.mubr.bf16.mxu0 0
  %1686 = vmatmul.mubr.bf16.gmra.mxu0 %v1394
  %v1687 = vpop.f32.mrf.mxu0
  %v1688 = vadd.f32 0.0, %v1687
  %v1689 = vpop.f32.mrf.mxu0
  %v1690 = vadd.f32 0.0, %v1689
  %v1691 = vpop.f32.mrf.mxu0
  %v1692 = vadd.f32 0.0, %v1691
  %v1693 = vpop.f32.mrf.mxu0
  %v1694 = vadd.f32 0.0, %v1693
  %1695 = vmatprep.mubr.bf16.mxu0 0
  %1696 = vmatmul.mubr.bf16.gmra.mxu0 %v1395
  %v1697 = vpop.f32.mrf.mxu0
  %v1698 = vadd.f32 0.0, %v1697
  %v1699 = vpop.f32.mrf.mxu0
  %v1700 = vadd.f32 0.0, %v1699
  %v1701 = vpop.f32.mrf.mxu0
  %v1702 = vadd.f32 0.0, %v1701
  %v1703 = vpop.f32.mrf.mxu0
  %v1704 = vadd.f32 0.0, %v1703
  %1705 = vdwg.mxu0
  %v1706 = vadd.f32 %v1304, %v1595
  %v1707 = vadd.f32 %v1305, %v1597
  %v1708 = vadd.f32 %v1306, %v1668
  %v1709 = vadd.f32 %v1307, %v1670
  %v1710 = vadd.f32 %v1308, %v1599
  %v1711 = vadd.f32 %v1309, %v1601
  %v1712 = vadd.f32 %v1310, %v1672
  %v1713 = vadd.f32 %v1311, %v1674
  %v1714 = vadd.f32 %v1312, %v1605
  %v1715 = vadd.f32 %v1313, %v1607
  %v1716 = vadd.f32 %v1314, %v1678
  %v1717 = vadd.f32 %v1315, %v1680
  %v1718 = vadd.f32 %v1316, %v1609
  %v1719 = vadd.f32 %v1317, %v1611
  %v1720 = vadd.f32 %v1318, %v1682
  %v1721 = vadd.f32 %v1319, %v1684
  %v1722 = vadd.f32 %v1320, %v1615
  %v1723 = vadd.f32 %v1321, %v1617
  %v1724 = vadd.f32 %v1322, %v1688
  %v1725 = vadd.f32 %v1323, %v1690
  %v1726 = vadd.f32 %v1324, %v1619
  %v1727 = vadd.f32 %v1325, %v1621
  %v1728 = vadd.f32 %v1326, %v1692
  %v1729 = vadd.f32 %v1327, %v1694
  %v1730 = vadd.f32 %v1328, %v1625
  %v1731 = vadd.f32 %v1329, %v1627
  %v1732 = vadd.f32 %v1330, %v1698
  %v1733 = vadd.f32 %v1331, %v1700
  %v1734 = vadd.f32 %v1332, %v1629
  %v1735 = vadd.f32 %v1333, %v1631
  %v1736 = vadd.f32 %v1334, %v1702
  %v1737 = vadd.f32 %v1335, %v1704
  %1738 = vst [vmem:[#allocation2] sm:$0xff] %v1706
  %1739 = vst [vmem:[#allocation2 + $0x8] sm:$0xff] %v1707
  %1740 = vst [vmem:[#allocation2 + $0x10] sm:$0xff] %v1708
  %1741 = vst [vmem:[#allocation2 + $0x18] sm:$0xff] %v1709
  %1742 = vst [vmem:[#allocation2 + $0x20] sm:$0xff] %v1710
  %1743 = vst [vmem:[#allocation2 + $0x28] sm:$0xff] %v1711
  %1744 = vst [vmem:[#allocation2 + $0x30] sm:$0xff] %v1712
  %1745 = vst [vmem:[#allocation2 + $0x38] sm:$0xff] %v1713
  %1746 = vst [vmem:[#allocation2 + $0x40] sm:$0xff] %v1714
  %1747 = vst [vmem:[#allocation2 + $0x48] sm:$0xff] %v1715
  %1748 = vst [vmem:[#allocation2 + $0x50] sm:$0xff] %v1716
  %1749 = vst [vmem:[#allocation2 + $0x58] sm:$0xff] %v1717
  %1750 = vst [vmem:[#allocation2 + $0x60] sm:$0xff] %v1718
  %1751 = vst [vmem:[#allocation2 + $0x68] sm:$0xff] %v1719
  %1752 = vst [vmem:[#allocation2 + $0x70] sm:$0xff] %v1720
  %1753 = vst [vmem:[#allocation2 + $0x78] sm:$0xff] %v1721
  %1754 = vst [vmem:[#allocation2 + $0x80] sm:$0xff] %v1722
  %1755 = vst [vmem:[#allocation2 + $0x88] sm:$0xff] %v1723
  %1756 = vst [vmem:[#allocation2 + $0x90] sm:$0xff] %v1724
  %1757 = vst [vmem:[#allocation2 + $0x98] sm:$0xff] %v1725
  %1758 = vst [vmem:[#allocation2 + $0xa0] sm:$0xff] %v1726
  %1759 = vst [vmem:[#allocation2 + $0xa8] sm:$0xff] %v1727
  %1760 = vst [vmem:[#allocation2 + $0xb0] sm:$0xff] %v1728
  %1761 = vst [vmem:[#allocation2 + $0xb8] sm:$0xff] %v1729
  %1762 = vst [vmem:[#allocation2 + $0xc0] sm:$0xff] %v1730
  %1763 = vst [vmem:[#allocation2 + $0xc8] sm:$0xff] %v1731
  %1764 = vst [vmem:[#allocation2 + $0xd0] sm:$0xff] %v1732
  %1765 = vst [vmem:[#allocation2 + $0xd8] sm:$0xff] %v1733
  %1766 = vst [vmem:[#allocation2 + $0xe0] sm:$0xff] %v1734
  %1767 = vst [vmem:[#allocation2 + $0xe8] sm:$0xff] %v1735
  %1768 = vst [vmem:[#allocation2 + $0xf0] sm:$0xff] %v1736
  %1769 = vst [vmem:[#allocation2 + $0xf8] sm:$0xff] %v1737
  // Predicated region
  $region62: #{hybrid_code_network.1} parent=0 // pred_check
    %p1770 = pneg %p48
  $region63: #{hybrid_code_network.1} parent=0 // pred_check_branch
    %1772 = sbr.rel (%p1770) target = $region65
  $region64: #{hybrid_code_network.1} parent=0 // pred_region
    %v1773 = vld [vmem:[%s10] sm:$0xff]
    %v1774 = vld [vmem:[%s10 + $0x8] sm:$0xff]
    %v1775 = vld [vmem:[%s10 + $0x10] sm:$0xff]
    %v1776 = vld [vmem:[%s10 + $0x18] sm:$0xff]
    %v1777 = vld [vmem:[%s10 + $0x20] sm:$0xff]
    %v1778 = vld [vmem:[%s10 + $0x28] sm:$0xff]
    %v1779 = vld [vmem:[%s10 + $0x30] sm:$0xff]
    %v1780 = vld [vmem:[%s10 + $0x38] sm:$0xff]
    %v1781 = vld [vmem:[%s10 + $0x40] sm:$0xff]
    %v1782 = vld [vmem:[%s10 + $0x48] sm:$0xff]
    %v1783 = vld [vmem:[%s10 + $0x50] sm:$0xff]
    %v1784 = vld [vmem:[%s10 + $0x58] sm:$0xff]
    %v1785 = vld [vmem:[%s10 + $0x60] sm:$0xff]
    %v1786 = vld [vmem:[%s10 + $0x68] sm:$0xff]
    %v1787 = vld [vmem:[%s10 + $0x70] sm:$0xff]
    %v1788 = vld [vmem:[%s10 + $0x78] sm:$0xff]
    %v1789 = vld [vmem:[%s10 + $0x80] sm:$0xff]
    %v1790 = vld [vmem:[%s10 + $0x88] sm:$0xff]
    %v1791 = vld [vmem:[%s10 + $0x90] sm:$0xff]
    %v1792 = vld [vmem:[%s10 + $0x98] sm:$0xff]
    %v1793 = vld [vmem:[%s10 + $0xa0] sm:$0xff]
    %v1794 = vld [vmem:[%s10 + $0xa8] sm:$0xff]
    %v1795 = vld [vmem:[%s10 + $0xb0] sm:$0xff]
    %v1796 = vld [vmem:[%s10 + $0xb8] sm:$0xff]
    %v1797 = vld [vmem:[%s10 + $0xc0] sm:$0xff]
    %v1798 = vld [vmem:[%s10 + $0xc8] sm:$0xff]
    %v1799 = vld [vmem:[%s10 + $0xd0] sm:$0xff]
    %v1800 = vld [vmem:[%s10 + $0xd8] sm:$0xff]
    %v1801 = vld [vmem:[%s10 + $0xe0] sm:$0xff]
    %v1802 = vld [vmem:[%s10 + $0xe8] sm:$0xff]
    %v1803 = vld [vmem:[%s10 + $0xf0] sm:$0xff]
    %v1804 = vld [vmem:[%s10 + $0xf8] sm:$0xff]
    %v1805 = vld [vmem:[#allocation2] sm:$0xff]
    %v1806 = vld [vmem:[#allocation2 + $0x8] sm:$0xff]
    %v1807 = vld [vmem:[#allocation2 + $0x10] sm:$0xff]
    %v1808 = vld [vmem:[#allocation2 + $0x18] sm:$0xff]
    %v1809 = vxor.u32 %v1805, 2147483648
    %v1810 = vmul.f32 %v1809, 1.442695
    %v1811 = vpow.pop %v1810
    %v1812 = vadd.f32 %v1811, 1.0
    %v1813 = vrcp.pop %v1812
    %v1814 = vmul.f32 1.0, %v1813
    %v1815 = vxor.u32 %v1806, 2147483648
    %v1816 = vmul.f32 %v1815, 1.442695
    %v1817 = vpow.pop %v1816
    %v1818 = vadd.f32 %v1817, 1.0
    %v1819 = vrcp.pop %v1818
    %v1820 = vmul.f32 1.0, %v1819
    %v1821 = vtanh.pop %v1807
    %v1822 = vxor.u32 %v1808, 2147483648
    %v1823 = vmul.f32 %v1822, 1.442695
    %v1824 = vpow.pop %v1823
    %v1825 = vadd.f32 %v1824, 1.0
    %v1826 = vrcp.pop %v1825
    %v1827 = vmul.f32 1.0, %v1826
    %v1828 = vmul.f32 %v1820, 0.0
    %v1829 = vmul.f32 %v1814, %v1821
    %v1830 = vadd.f32 %v1828, %v1829
    %v1831 = vtanh.pop %v1830
    %v1832 = vmul.f32 %v1827, %v1831
    %v1833 = vtanh.pop %v1832
    %1834 = vst [vmem:[#allocation3] sm:$0xff] %v1833
    %s1835 = smul.u32 1, 4
    %s1836 = smul.addr %s1835, 8
    %s1837 = scalar_lea.vmem [#allocation2], %s1836
    %v1838 = vld [vmem:[%s1837] sm:$0xff]
    %v1839 = vld [vmem:[%s1837 + $0x8] sm:$0xff]
    %v1840 = vld [vmem:[%s1837 + $0x10] sm:$0xff]
    %v1841 = vld [vmem:[%s1837 + $0x18] sm:$0xff]
    %v1842 = vpack.c.bf16 %v1832, %v1832
    %v1875 = vunpack.c.l.b16 %v1773
    %v1876 = vunpack.c.h.b16 %v1773
    %v1877 = vunpack.c.l.b16 %v1774
    %v1878 = vunpack.c.h.b16 %v1774
    %v1879 = vunpack.c.l.b16 %v1775
    %v1880 = vunpack.c.h.b16 %v1775
    %v1881 = vunpack.c.l.b16 %v1776
    %v1882 = vunpack.c.h.b16 %v1776
    %v1883 = vunpack.c.l.b16 %v1777
    %v1884 = vunpack.c.h.b16 %v1777
    %v1885 = vunpack.c.l.b16 %v1778
    %v1886 = vunpack.c.h.b16 %v1778
    %v1887 = vunpack.c.l.b16 %v1779
    %v1888 = vunpack.c.h.b16 %v1779
    %v1889 = vunpack.c.l.b16 %v1780
    %v1890 = vunpack.c.h.b16 %v1780
    %v1891 = vunpack.c.l.b16 %v1781
    %v1892 = vunpack.c.h.b16 %v1781
    %v1893 = vunpack.c.l.b16 %v1782
    %v1894 = vunpack.c.h.b16 %v1782
    %v1895 = vunpack.c.l.b16 %v1783
    %v1896 = vunpack.c.h.b16 %v1783
    %v1897 = vunpack.c.l.b16 %v1784
    %v1898 = vunpack.c.h.b16 %v1784
    %v1899 = vunpack.c.l.b16 %v1785
    %v1900 = vunpack.c.h.b16 %v1785
    %v1901 = vunpack.c.l.b16 %v1786
    %v1902 = vunpack.c.h.b16 %v1786
    %v1903 = vunpack.c.l.b16 %v1787
    %v1904 = vunpack.c.h.b16 %v1787
    %v1905 = vunpack.c.l.b16 %v1788
    %v1906 = vunpack.c.h.b16 %v1788
    %v1907 = vunpack.c.l.b16 %v1789
    %v1908 = vunpack.c.h.b16 %v1789
    %v1909 = vunpack.c.l.b16 %v1790
    %v1910 = vunpack.c.h.b16 %v1790
    %v1911 = vunpack.c.l.b16 %v1791
    %v1912 = vunpack.c.h.b16 %v1791
    %v1913 = vunpack.c.l.b16 %v1792
    %v1914 = vunpack.c.h.b16 %v1792
    %v1915 = vunpack.c.l.b16 %v1793
    %v1916 = vunpack.c.h.b16 %v1793
    %v1917 = vunpack.c.l.b16 %v1794
    %v1918 = vunpack.c.h.b16 %v1794
    %v1919 = vunpack.c.l.b16 %v1795
    %v1920 = vunpack.c.h.b16 %v1795
    %v1921 = vunpack.c.l.b16 %v1796
    %v1922 = vunpack.c.h.b16 %v1796
    %v1923 = vunpack.c.l.b16 %v1797
    %v1924 = vunpack.c.h.b16 %v1797
    %v1925 = vunpack.c.l.b16 %v1798
    %v1926 = vunpack.c.h.b16 %v1798
    %v1927 = vunpack.c.l.b16 %v1799
    %v1928 = vunpack.c.h.b16 %v1799
    %v1929 = vunpack.c.l.b16 %v1800
    %v1930 = vunpack.c.h.b16 %v1800
    %v1931 = vunpack.c.l.b16 %v1801
    %v1932 = vunpack.c.h.b16 %v1801
    %v1933 = vunpack.c.l.b16 %v1802
    %v1934 = vunpack.c.h.b16 %v1802
    %v1935 = vunpack.c.l.b16 %v1803
    %v1936 = vunpack.c.h.b16 %v1803
    %v1937 = vunpack.c.l.b16 %v1804
    %v1938 = vunpack.c.h.b16 %v1804
    %v1939 = vpack.c.b16 %v1879, %v1875
    %v1940 = vpack.c.b16 %v1880, %v1876
    %v1941 = vpack.c.b16 %v1881, %v1877
    %v1942 = vpack.c.b16 %v1882, %v1878
    %v1943 = vpack.c.b16 %v1887, %v1883
    %v1944 = vpack.c.b16 %v1888, %v1884
    %v1945 = vpack.c.b16 %v1889, %v1885
    %v1946 = vpack.c.b16 %v1890, %v1886
    %v1947 = vpack.c.b16 %v1895, %v1891
    %v1948 = vpack.c.b16 %v1896, %v1892
    %v1949 = vpack.c.b16 %v1897, %v1893
    %v1950 = vpack.c.b16 %v1898, %v1894
    %v1951 = vpack.c.b16 %v1903, %v1899
    %v1952 = vpack.c.b16 %v1904, %v1900
    %v1953 = vpack.c.b16 %v1905, %v1901
    %v1954 = vpack.c.b16 %v1906, %v1902
    %v1955 = vpack.c.b16 %v1911, %v1907
    %v1956 = vpack.c.b16 %v1912, %v1908
    %v1957 = vpack.c.b16 %v1913, %v1909
    %v1958 = vpack.c.b16 %v1914, %v1910
    %v1959 = vpack.c.b16 %v1919, %v1915
    %v1960 = vpack.c.b16 %v1920, %v1916
    %v1961 = vpack.c.b16 %v1921, %v1917
    %v1962 = vpack.c.b16 %v1922, %v1918
    %v1963 = vpack.c.b16 %v1927, %v1923
    %v1964 = vpack.c.b16 %v1928, %v1924
    %v1965 = vpack.c.b16 %v1929, %v1925
    %v1966 = vpack.c.b16 %v1930, %v1926
    %v1967 = vpack.c.b16 %v1935, %v1931
    %v1968 = vpack.c.b16 %v1936, %v1932
    %v1969 = vpack.c.b16 %v1937, %v1933
    %v1970 = vpack.c.b16 %v1938, %v1934
    %2003 = vmatprep.subr.bf16.mxu0 %v1968
    %2004 = vmatpush1.bf16.msra.mxu0 %v1967
    %2005 = vmatprep.subr.bf16.mxu0 %v1964
    %2006 = vmatpush1.bf16.msra.mxu0 %v1963
    %2007 = vmatprep.subr.bf16.mxu0 %v1960
    %2008 = vmatpush1.bf16.msra.mxu0 %v1959
    %2009 = vmatprep.subr.bf16.mxu0 %v1956
    %2010 = vmatpush1.bf16.msra.mxu0 %v1955
    %2011 = vmatprep.subr.bf16.mxu0 %v1952
    %2012 = vmatpush1.bf16.msra.mxu0 %v1951
    %2013 = vmatprep.subr.bf16.mxu0 %v1948
    %2014 = vmatpush1.bf16.msra.mxu0 %v1947
    %2015 = vmatprep.subr.bf16.mxu0 %v1944
    %2016 = vmatpush1.bf16.msra.mxu0 %v1943
    %2017 = vmatprep.subr.bf16.mxu0 %v1940
    %2018 = vmatpush1.bf16.msra.mxu0 %v1939
    %2019 = vmatprep.subr.bf16.mxu0 0
    %2020 = vmatpush2.bf16.msra.mxu0 0
    %2021 = vmatprep.subr.bf16.mxu0 0
    %2022 = vmatpush2.bf16.msra.mxu0 0
    %2023 = vmatprep.subr.bf16.mxu0 0
    %2024 = vmatpush2.bf16.msra.mxu0 0
    %2025 = vmatprep.subr.bf16.mxu0 0
    %2026 = vmatpush2.bf16.msra.mxu0 0
    %2027 = vmatprep.subr.bf16.mxu0 0
    %2028 = vmatpush2.bf16.msra.mxu0 0
    %2029 = vmatprep.subr.bf16.mxu0 0
    %2030 = vmatpush2.bf16.msra.mxu0 0
    %2031 = vmatprep.subr.bf16.mxu0 0
    %2032 = vmatpush2.bf16.msra.mxu0 0
    %2033 = vmatprep.subr.bf16.mxu0 0
    %2034 = vmatpush2.bf16.msra.mxu0 0
    %2035 = vmatprep.mubr.bf16.mxu0 0
    %2036 = vmatmul.mubr.bf16.gmra.mxu0 %v1842
    %v2037 = vpop.f32.mrf.mxu0
    %v2038 = vadd.f32 0.0, %v2037
    %v2039 = vpop.f32.mrf.mxu0
    %v2040 = vadd.f32 0.0, %v2039
    %v2041 = vpop.f32.mrf.mxu0
    %v2042 = vpop.f32.mrf.mxu0
    %2043 = vdwg.mxu0
    %2044 = vmatprep.subr.bf16.mxu0 %v1970
    %2045 = vmatpush1.bf16.msra.mxu0 %v1969
    %2046 = vmatprep.subr.bf16.mxu0 %v1966
    %2047 = vmatpush1.bf16.msra.mxu0 %v1965
    %2048 = vmatprep.subr.bf16.mxu0 %v1962
    %2049 = vmatpush1.bf16.msra.mxu0 %v1961
    %2050 = vmatprep.subr.bf16.mxu0 %v1958
    %2051 = vmatpush1.bf16.msra.mxu0 %v1957
    %2052 = vmatprep.subr.bf16.mxu0 %v1954
    %2053 = vmatpush1.bf16.msra.mxu0 %v1953
    %2054 = vmatprep.subr.bf16.mxu0 %v1950
    %2055 = vmatpush1.bf16.msra.mxu0 %v1949
    %2056 = vmatprep.subr.bf16.mxu0 %v1946
    %2057 = vmatpush1.bf16.msra.mxu0 %v1945
    %2058 = vmatprep.subr.bf16.mxu0 %v1942
    %2059 = vmatpush1.bf16.msra.mxu0 %v1941
    %2060 = vmatprep.subr.bf16.mxu0 0
    %2061 = vmatpush2.bf16.msra.mxu0 0
    %2062 = vmatprep.subr.bf16.mxu0 0
    %2063 = vmatpush2.bf16.msra.mxu0 0
    %2064 = vmatprep.subr.bf16.mxu0 0
    %2065 = vmatpush2.bf16.msra.mxu0 0
    %2066 = vmatprep.subr.bf16.mxu0 0
    %2067 = vmatpush2.bf16.msra.mxu0 0
    %2068 = vmatprep.subr.bf16.mxu0 0
    %2069 = vmatpush2.bf16.msra.mxu0 0
    %2070 = vmatprep.subr.bf16.mxu0 0
    %2071 = vmatpush2.bf16.msra.mxu0 0
    %2072 = vmatprep.subr.bf16.mxu0 0
    %2073 = vmatpush2.bf16.msra.mxu0 0
    %2074 = vmatprep.subr.bf16.mxu0 0
    %2075 = vmatpush2.bf16.msra.mxu0 0
    %2076 = vmatprep.mubr.bf16.mxu0 0
    %2077 = vmatmul.mubr.bf16.gmra.mxu0 %v1842
    %v2078 = vpop.f32.mrf.mxu0
    %v2079 = vadd.f32 0.0, %v2078
    %v2080 = vpop.f32.mrf.mxu0
    %v2081 = vadd.f32 0.0, %v2080
    %v2082 = vpop.f32.mrf.mxu0
    %v2083 = vpop.f32.mrf.mxu0
    %2084 = vdwg.mxu0
    %v2085 = vadd.f32 %v1838, %v2038
    %v2086 = vadd.f32 %v1839, %v2040
    %v2087 = vadd.f32 %v1840, %v2079
    %v2088 = vadd.f32 %v1841, %v2081
    %v2089 = vxor.u32 %v2085, 2147483648
    %v2090 = vmul.f32 %v2089, 1.442695
    %v2091 = vpow.pop %v2090
    %v2092 = vadd.f32 %v2091, 1.0
    %v2093 = vrcp.pop %v2092
    %v2094 = vmul.f32 1.0, %v2093
    %v2095 = vxor.u32 %v2086, 2147483648
    %v2096 = vmul.f32 %v2095, 1.442695
    %v2097 = vpow.pop %v2096
    %v2098 = vadd.f32 %v2097, 1.0
    %v2099 = vrcp.pop %v2098
    %v2100 = vmul.f32 1.0, %v2099
    %v2101 = vtanh.pop %v2087
    %v2102 = vxor.u32 %v2088, 2147483648
    %v2103 = vmul.f32 %v2102, 1.442695
    %v2104 = vpow.pop %v2103
    %v2105 = vadd.f32 %v2104, 1.0
    %v2106 = vrcp.pop %v2105
    %v2107 = vmul.f32 1.0, %v2106
    %v2108 = vmul.f32 %v2100, %v1830
    %v2109 = vmul.f32 %v2094, %v2101
    %v2110 = vadd.f32 %v2108, %v2109
    %v2111 = vtanh.pop %v2110
    %v2112 = vmul.f32 %v2107, %v2111
    %v2113 = vtanh.pop %v2112
    %s2114 = scalar_lea.vmem [#allocation3], 8
    %2115 = vst [vmem:[%s2114] sm:$0xff] %v2113
    %s2116 = smul.u32 2, 4
    %s2117 = smul.addr %s2116, 8
    %s2118 = scalar_lea.vmem [#allocation2], %s2117
    %v2119 = vld [vmem:[%s2118] sm:$0xff]
    %v2120 = vld [vmem:[%s2118 + $0x8] sm:$0xff]
    %v2121 = vld [vmem:[%s2118 + $0x10] sm:$0xff]
    %v2122 = vld [vmem:[%s2118 + $0x18] sm:$0xff]
    %v2123 = vpack.c.bf16 %v2112, %v2112
    %2124 = vmatprep.subr.bf16.mxu0 %v1968
    %2125 = vmatpush1.bf16.msra.mxu0 %v1967
    %2126 = vmatprep.subr.bf16.mxu0 %v1964
    %2127 = vmatpush1.bf16.msra.mxu0 %v1963
    %2128 = vmatprep.subr.bf16.mxu0 %v1960
    %2129 = vmatpush1.bf16.msra.mxu0 %v1959
    %2130 = vmatprep.subr.bf16.mxu0 %v1956
    %2131 = vmatpush1.bf16.msra.mxu0 %v1955
    %2132 = vmatprep.subr.bf16.mxu0 %v1952
    %2133 = vmatpush1.bf16.msra.mxu0 %v1951
    %2134 = vmatprep.subr.bf16.mxu0 %v1948
    %2135 = vmatpush1.bf16.msra.mxu0 %v1947
    %2136 = vmatprep.subr.bf16.mxu0 %v1944
    %2137 = vmatpush1.bf16.msra.mxu0 %v1943
    %2138 = vmatprep.subr.bf16.mxu0 %v1940
    %2139 = vmatpush1.bf16.msra.mxu0 %v1939
    %2140 = vmatprep.subr.bf16.mxu0 0
    %2141 = vmatpush2.bf16.msra.mxu0 0
    %2142 = vmatprep.subr.bf16.mxu0 0
    %2143 = vmatpush2.bf16.msra.mxu0 0
    %2144 = vmatprep.subr.bf16.mxu0 0
    %2145 = vmatpush2.bf16.msra.mxu0 0
    %2146 = vmatprep.subr.bf16.mxu0 0
    %2147 = vmatpush2.bf16.msra.mxu0 0
    %2148 = vmatprep.subr.bf16.mxu0 0
    %2149 = vmatpush2.bf16.msra.mxu0 0
    %2150 = vmatprep.subr.bf16.mxu0 0
    %2151 = vmatpush2.bf16.msra.mxu0 0
    %2152 = vmatprep.subr.bf16.mxu0 0
    %2153 = vmatpush2.bf16.msra.mxu0 0
    %2154 = vmatprep.subr.bf16.mxu0 0
    %2155 = vmatpush2.bf16.msra.mxu0 0
    %2156 = vmatprep.mubr.bf16.mxu0 0
    %2157 = vmatmul.mubr.bf16.gmra.mxu0 %v2123
    %v2158 = vpop.f32.mrf.mxu0
    %v2159 = vadd.f32 0.0, %v2158
    %v2160 = vpop.f32.mrf.mxu0
    %v2161 = vadd.f32 0.0, %v2160
    %v2162 = vpop.f32.mrf.mxu0
    %v2163 = vpop.f32.mrf.mxu0
    %2164 = vdwg.mxu0
    %2165 = vmatprep.subr.bf16.mxu0 %v1970
    %2166 = vmatpush1.bf16.msra.mxu0 %v1969
    %2167 = vmatprep.subr.bf16.mxu0 %v1966
    %2168 = vmatpush1.bf16.msra.mxu0 %v1965
    %2169 = vmatprep.subr.bf16.mxu0 %v1962
    %2170 = vmatpush1.bf16.msra.mxu0 %v1961
    %2171 = vmatprep.subr.bf16.mxu0 %v1958
    %2172 = vmatpush1.bf16.msra.mxu0 %v1957
    %2173 = vmatprep.subr.bf16.mxu0 %v1954
    %2174 = vmatpush1.bf16.msra.mxu0 %v1953
    %2175 = vmatprep.subr.bf16.mxu0 %v1950
    %2176 = vmatpush1.bf16.msra.mxu0 %v1949
    %2177 = vmatprep.subr.bf16.mxu0 %v1946
    %2178 = vmatpush1.bf16.msra.mxu0 %v1945
    %2179 = vmatprep.subr.bf16.mxu0 %v1942
    %2180 = vmatpush1.bf16.msra.mxu0 %v1941
    %2181 = vmatprep.subr.bf16.mxu0 0
    %2182 = vmatpush2.bf16.msra.mxu0 0
    %2183 = vmatprep.subr.bf16.mxu0 0
    %2184 = vmatpush2.bf16.msra.mxu0 0
    %2185 = vmatprep.subr.bf16.mxu0 0
    %2186 = vmatpush2.bf16.msra.mxu0 0
    %2187 = vmatprep.subr.bf16.mxu0 0
    %2188 = vmatpush2.bf16.msra.mxu0 0
    %2189 = vmatprep.subr.bf16.mxu0 0
    %2190 = vmatpush2.bf16.msra.mxu0 0
    %2191 = vmatprep.subr.bf16.mxu0 0
    %2192 = vmatpush2.bf16.msra.mxu0 0
    %2193 = vmatprep.subr.bf16.mxu0 0
    %2194 = vmatpush2.bf16.msra.mxu0 0
    %2195 = vmatprep.subr.bf16.mxu0 0
    %2196 = vmatpush2.bf16.msra.mxu0 0
    %2197 = vmatprep.mubr.bf16.mxu0 0
    %2198 = vmatmul.mubr.bf16.gmra.mxu0 %v2123
    %v2199 = vpop.f32.mrf.mxu0
    %v2200 = vadd.f32 0.0, %v2199
    %v2201 = vpop.f32.mrf.mxu0
    %v2202 = vadd.f32 0.0, %v2201
    %v2203 = vpop.f32.mrf.mxu0
    %v2204 = vpop.f32.mrf.mxu0
    %2205 = vdwg.mxu0
    %v2206 = vadd.f32 %v2119, %v2159
    %v2207 = vadd.f32 %v2120, %v2161
    %v2208 = vadd.f32 %v2121, %v2200
    %v2209 = vadd.f32 %v2122, %v2202
    %v2210 = vxor.u32 %v2206, 2147483648
    %v2211 = vmul.f32 %v2210, 1.442695
    %v2212 = vpow.pop %v2211
    %v2213 = vadd.f32 %v2212, 1.0
    %v2214 = vrcp.pop %v2213
    %v2215 = vmul.f32 1.0, %v2214
    %v2216 = vxor.u32 %v2207, 2147483648
    %v2217 = vmul.f32 %v2216, 1.442695
    %v2218 = vpow.pop %v2217
    %v2219 = vadd.f32 %v2218, 1.0
    %v2220 = vrcp.pop %v2219
    %v2221 = vmul.f32 1.0, %v2220
    %v2222 = vtanh.pop %v2208
    %v2223 = vxor.u32 %v2209, 2147483648
    %v2224 = vmul.f32 %v2223, 1.442695
    %v2225 = vpow.pop %v2224
    %v2226 = vadd.f32 %v2225, 1.0
    %v2227 = vrcp.pop %v2226
    %v2228 = vmul.f32 1.0, %v2227
    %v2229 = vmul.f32 %v2221, %v2110
    %v2230 = vmul.f32 %v2215, %v2222
    %v2231 = vadd.f32 %v2229, %v2230
    %v2232 = vtanh.pop %v2231
    %v2233 = vmul.f32 %v2228, %v2232
    %v2234 = vtanh.pop %v2233
    %s2235 = scalar_lea.vmem [#allocation3], 16
    %2236 = vst [vmem:[%s2235] sm:$0xff] %v2234
    %s2237 = smul.u32 3, 4
    %s2238 = smul.addr %s2237, 8
    %s2239 = scalar_lea.vmem [#allocation2], %s2238
    %v2240 = vld [vmem:[%s2239] sm:$0xff]
    %v2241 = vld [vmem:[%s2239 + $0x8] sm:$0xff]
    %v2242 = vld [vmem:[%s2239 + $0x10] sm:$0xff]
    %v2243 = vld [vmem:[%s2239 + $0x18] sm:$0xff]
    %v2244 = vpack.c.bf16 %v2233, %v2233
    %2245 = vmatprep.subr.bf16.mxu0 %v1968
    %2246 = vmatpush1.bf16.msra.mxu0 %v1967
    %2247 = vmatprep.subr.bf16.mxu0 %v1964
    %2248 = vmatpush1.bf16.msra.mxu0 %v1963
    %2249 = vmatprep.subr.bf16.mxu0 %v1960
    %2250 = vmatpush1.bf16.msra.mxu0 %v1959
    %2251 = vmatprep.subr.bf16.mxu0 %v1956
    %2252 = vmatpush1.bf16.msra.mxu0 %v1955
    %2253 = vmatprep.subr.bf16.mxu0 %v1952
    %2254 = vmatpush1.bf16.msra.mxu0 %v1951
    %2255 = vmatprep.subr.bf16.mxu0 %v1948
    %2256 = vmatpush1.bf16.msra.mxu0 %v1947
    %2257 = vmatprep.subr.bf16.mxu0 %v1944
    %2258 = vmatpush1.bf16.msra.mxu0 %v1943
    %2259 = vmatprep.subr.bf16.mxu0 %v1940
    %2260 = vmatpush1.bf16.msra.mxu0 %v1939
    %2261 = vmatprep.subr.bf16.mxu0 0
    %2262 = vmatpush2.bf16.msra.mxu0 0
    %2263 = vmatprep.subr.bf16.mxu0 0
    %2264 = vmatpush2.bf16.msra.mxu0 0
    %2265 = vmatprep.subr.bf16.mxu0 0
    %2266 = vmatpush2.bf16.msra.mxu0 0
    %2267 = vmatprep.subr.bf16.mxu0 0
    %2268 = vmatpush2.bf16.msra.mxu0 0
    %2269 = vmatprep.subr.bf16.mxu0 0
    %2270 = vmatpush2.bf16.msra.mxu0 0
    %2271 = vmatprep.subr.bf16.mxu0 0
    %2272 = vmatpush2.bf16.msra.mxu0 0
    %2273 = vmatprep.subr.bf16.mxu0 0
    %2274 = vmatpush2.bf16.msra.mxu0 0
    %2275 = vmatprep.subr.bf16.mxu0 0
    %2276 = vmatpush2.bf16.msra.mxu0 0
    %2277 = vmatprep.mubr.bf16.mxu0 0
    %2278 = vmatmul.mubr.bf16.gmra.mxu0 %v2244
    %v2279 = vpop.f32.mrf.mxu0
    %v2280 = vadd.f32 0.0, %v2279
    %v2281 = vpop.f32.mrf.mxu0
    %v2282 = vadd.f32 0.0, %v2281
    %v2283 = vpop.f32.mrf.mxu0
    %v2284 = vpop.f32.mrf.mxu0
    %2285 = vdwg.mxu0
    %2286 = vmatprep.subr.bf16.mxu0 %v1970
    %2287 = vmatpush1.bf16.msra.mxu0 %v1969
    %2288 = vmatprep.subr.bf16.mxu0 %v1966
    %2289 = vmatpush1.bf16.msra.mxu0 %v1965
    %2290 = vmatprep.subr.bf16.mxu0 %v1962
    %2291 = vmatpush1.bf16.msra.mxu0 %v1961
    %2292 = vmatprep.subr.bf16.mxu0 %v1958
    %2293 = vmatpush1.bf16.msra.mxu0 %v1957
    %2294 = vmatprep.subr.bf16.mxu0 %v1954
    %2295 = vmatpush1.bf16.msra.mxu0 %v1953
    %2296 = vmatprep.subr.bf16.mxu0 %v1950
    %2297 = vmatpush1.bf16.msra.mxu0 %v1949
    %2298 = vmatprep.subr.bf16.mxu0 %v1946
    %2299 = vmatpush1.bf16.msra.mxu0 %v1945
    %2300 = vmatprep.subr.bf16.mxu0 %v1942
    %2301 = vmatpush1.bf16.msra.mxu0 %v1941
    %2302 = vmatprep.subr.bf16.mxu0 0
    %2303 = vmatpush2.bf16.msra.mxu0 0
    %2304 = vmatprep.subr.bf16.mxu0 0
    %2305 = vmatpush2.bf16.msra.mxu0 0
    %2306 = vmatprep.subr.bf16.mxu0 0
    %2307 = vmatpush2.bf16.msra.mxu0 0
    %2308 = vmatprep.subr.bf16.mxu0 0
    %2309 = vmatpush2.bf16.msra.mxu0 0
    %2310 = vmatprep.subr.bf16.mxu0 0
    %2311 = vmatpush2.bf16.msra.mxu0 0
    %2312 = vmatprep.subr.bf16.mxu0 0
    %2313 = vmatpush2.bf16.msra.mxu0 0
    %2314 = vmatprep.subr.bf16.mxu0 0
    %2315 = vmatpush2.bf16.msra.mxu0 0
    %2316 = vmatprep.subr.bf16.mxu0 0
    %2317 = vmatpush2.bf16.msra.mxu0 0
    %2318 = vmatprep.mubr.bf16.mxu0 0
    %2319 = vmatmul.mubr.bf16.gmra.mxu0 %v2244
    %v2320 = vpop.f32.mrf.mxu0
    %v2321 = vadd.f32 0.0, %v2320
    %v2322 = vpop.f32.mrf.mxu0
    %v2323 = vadd.f32 0.0, %v2322
    %v2324 = vpop.f32.mrf.mxu0
    %v2325 = vpop.f32.mrf.mxu0
    %2326 = vdwg.mxu0
    %v2327 = vadd.f32 %v2240, %v2280
    %v2328 = vadd.f32 %v2241, %v2282
    %v2329 = vadd.f32 %v2242, %v2321
    %v2330 = vadd.f32 %v2243, %v2323
    %v2331 = vxor.u32 %v2327, 2147483648
    %v2332 = vmul.f32 %v2331, 1.442695
    %v2333 = vpow.pop %v2332
    %v2334 = vadd.f32 %v2333, 1.0
    %v2335 = vrcp.pop %v2334
    %v2336 = vmul.f32 1.0, %v2335
    %v2337 = vxor.u32 %v2328, 2147483648
    %v2338 = vmul.f32 %v2337, 1.442695
    %v2339 = vpow.pop %v2338
    %v2340 = vadd.f32 %v2339, 1.0
    %v2341 = vrcp.pop %v2340
    %v2342 = vmul.f32 1.0, %v2341
    %v2343 = vtanh.pop %v2329
    %v2344 = vxor.u32 %v2330, 2147483648
    %v2345 = vmul.f32 %v2344, 1.442695
    %v2346 = vpow.pop %v2345
    %v2347 = vadd.f32 %v2346, 1.0
    %v2348 = vrcp.pop %v2347
    %v2349 = vmul.f32 1.0, %v2348
    %v2350 = vmul.f32 %v2342, %v2231
    %v2351 = vmul.f32 %v2336, %v2343
    %v2352 = vadd.f32 %v2350, %v2351
    %v2353 = vtanh.pop %v2352
    %v2354 = vmul.f32 %v2349, %v2353
    %v2355 = vtanh.pop %v2354
    %s2356 = scalar_lea.vmem [#allocation3], 24
    %2357 = vst [vmem:[%s2356] sm:$0xff] %v2355
    %s2358 = smul.u32 4, 4
    %s2359 = smul.addr %s2358, 8
    %s2360 = scalar_lea.vmem [#allocation2], %s2359
    %v2361 = vld [vmem:[%s2360] sm:$0xff]
    %v2362 = vld [vmem:[%s2360 + $0x8] sm:$0xff]
    %v2363 = vld [vmem:[%s2360 + $0x10] sm:$0xff]
    %v2364 = vld [vmem:[%s2360 + $0x18] sm:$0xff]
    %v2365 = vpack.c.bf16 %v2354, %v2354
    %2366 = vmatprep.subr.bf16.mxu0 %v1968
    %2367 = vmatpush1.bf16.msra.mxu0 %v1967
    %2368 = vmatprep.subr.bf16.mxu0 %v1964
    %2369 = vmatpush1.bf16.msra.mxu0 %v1963
    %2370 = vmatprep.subr.bf16.mxu0 %v1960
    %2371 = vmatpush1.bf16.msra.mxu0 %v1959
    %2372 = vmatprep.subr.bf16.mxu0 %v1956
    %2373 = vmatpush1.bf16.msra.mxu0 %v1955
    %2374 = vmatprep.subr.bf16.mxu0 %v1952
    %2375 = vmatpush1.bf16.msra.mxu0 %v1951
    %2376 = vmatprep.subr.bf16.mxu0 %v1948
    %2377 = vmatpush1.bf16.msra.mxu0 %v1947
    %2378 = vmatprep.subr.bf16.mxu0 %v1944
    %2379 = vmatpush1.bf16.msra.mxu0 %v1943
    %2380 = vmatprep.subr.bf16.mxu0 %v1940
    %2381 = vmatpush1.bf16.msra.mxu0 %v1939
    %2382 = vmatprep.subr.bf16.mxu0 0
    %2383 = vmatpush2.bf16.msra.mxu0 0
    %2384 = vmatprep.subr.bf16.mxu0 0
    %2385 = vmatpush2.bf16.msra.mxu0 0
    %2386 = vmatprep.subr.bf16.mxu0 0
    %2387 = vmatpush2.bf16.msra.mxu0 0
    %2388 = vmatprep.subr.bf16.mxu0 0
    %2389 = vmatpush2.bf16.msra.mxu0 0
    %2390 = vmatprep.subr.bf16.mxu0 0
    %2391 = vmatpush2.bf16.msra.mxu0 0
    %2392 = vmatprep.subr.bf16.mxu0 0
    %2393 = vmatpush2.bf16.msra.mxu0 0
    %2394 = vmatprep.subr.bf16.mxu0 0
    %2395 = vmatpush2.bf16.msra.mxu0 0
    %2396 = vmatprep.subr.bf16.mxu0 0
    %2397 = vmatpush2.bf16.msra.mxu0 0
    %2398 = vmatprep.mubr.bf16.mxu0 0
    %2399 = vmatmul.mubr.bf16.gmra.mxu0 %v2365
    %v2400 = vpop.f32.mrf.mxu0
    %v2401 = vadd.f32 0.0, %v2400
    %v2402 = vpop.f32.mrf.mxu0
    %v2403 = vadd.f32 0.0, %v2402
    %v2404 = vpop.f32.mrf.mxu0
    %v2405 = vpop.f32.mrf.mxu0
    %2406 = vdwg.mxu0
    %2407 = vmatprep.subr.bf16.mxu0 %v1970
    %2408 = vmatpush1.bf16.msra.mxu0 %v1969
    %2409 = vmatprep.subr.bf16.mxu0 %v1966
    %2410 = vmatpush1.bf16.msra.mxu0 %v1965
    %2411 = vmatprep.subr.bf16.mxu0 %v1962
    %2412 = vmatpush1.bf16.msra.mxu0 %v1961
    %2413 = vmatprep.subr.bf16.mxu0 %v1958
    %2414 = vmatpush1.bf16.msra.mxu0 %v1957
    %2415 = vmatprep.subr.bf16.mxu0 %v1954
    %2416 = vmatpush1.bf16.msra.mxu0 %v1953
    %2417 = vmatprep.subr.bf16.mxu0 %v1950
    %2418 = vmatpush1.bf16.msra.mxu0 %v1949
    %2419 = vmatprep.subr.bf16.mxu0 %v1946
    %2420 = vmatpush1.bf16.msra.mxu0 %v1945
    %2421 = vmatprep.subr.bf16.mxu0 %v1942
    %2422 = vmatpush1.bf16.msra.mxu0 %v1941
    %2423 = vmatprep.subr.bf16.mxu0 0
    %2424 = vmatpush2.bf16.msra.mxu0 0
    %2425 = vmatprep.subr.bf16.mxu0 0
    %2426 = vmatpush2.bf16.msra.mxu0 0
    %2427 = vmatprep.subr.bf16.mxu0 0
    %2428 = vmatpush2.bf16.msra.mxu0 0
    %2429 = vmatprep.subr.bf16.mxu0 0
    %2430 = vmatpush2.bf16.msra.mxu0 0
    %2431 = vmatprep.subr.bf16.mxu0 0
    %2432 = vmatpush2.bf16.msra.mxu0 0
    %2433 = vmatprep.subr.bf16.mxu0 0
    %2434 = vmatpush2.bf16.msra.mxu0 0
    %2435 = vmatprep.subr.bf16.mxu0 0
    %2436 = vmatpush2.bf16.msra.mxu0 0
    %2437 = vmatprep.subr.bf16.mxu0 0
    %2438 = vmatpush2.bf16.msra.mxu0 0
    %2439 = vmatprep.mubr.bf16.mxu0 0
    %2440 = vmatmul.mubr.bf16.gmra.mxu0 %v2365
    %v2441 = vpop.f32.mrf.mxu0
    %v2442 = vadd.f32 0.0, %v2441
    %v2443 = vpop.f32.mrf.mxu0
    %v2444 = vadd.f32 0.0, %v2443
    %v2445 = vpop.f32.mrf.mxu0
    %v2446 = vpop.f32.mrf.mxu0
    %2447 = vdwg.mxu0
    %v2448 = vadd.f32 %v2361, %v2401
    %v2449 = vadd.f32 %v2362, %v2403
    %v2450 = vadd.f32 %v2363, %v2442
    %v2451 = vadd.f32 %v2364, %v2444
    %v2452 = vxor.u32 %v2448, 2147483648
    %v2453 = vmul.f32 %v2452, 1.442695
    %v2454 = vpow.pop %v2453
    %v2455 = vadd.f32 %v2454, 1.0
    %v2456 = vrcp.pop %v2455
    %v2457 = vmul.f32 1.0, %v2456
    %v2458 = vxor.u32 %v2449, 2147483648
    %v2459 = vmul.f32 %v2458, 1.442695
    %v2460 = vpow.pop %v2459
    %v2461 = vadd.f32 %v2460, 1.0
    %v2462 = vrcp.pop %v2461
    %v2463 = vmul.f32 1.0, %v2462
    %v2464 = vtanh.pop %v2450
    %v2465 = vxor.u32 %v2451, 2147483648
    %v2466 = vmul.f32 %v2465, 1.442695
    %v2467 = vpow.pop %v2466
    %v2468 = vadd.f32 %v2467, 1.0
    %v2469 = vrcp.pop %v2468
    %v2470 = vmul.f32 1.0, %v2469
    %v2471 = vmul.f32 %v2463, %v2352
    %v2472 = vmul.f32 %v2457, %v2464
    %v2473 = vadd.f32 %v2471, %v2472
    %v2474 = vtanh.pop %v2473
    %v2475 = vmul.f32 %v2470, %v2474
    %v2476 = vtanh.pop %v2475
    %s2477 = scalar_lea.vmem [#allocation3], 32
    %2478 = vst [vmem:[%s2477] sm:$0xff] %v2476
    %s2479 = smul.u32 5, 4
    %s2480 = smul.addr %s2479, 8
    %s2481 = scalar_lea.vmem [#allocation2], %s2480
    %v2482 = vld [vmem:[%s2481] sm:$0xff]
    %v2483 = vld [vmem:[%s2481 + $0x8] sm:$0xff]
    %v2484 = vld [vmem:[%s2481 + $0x10] sm:$0xff]
    %v2485 = vld [vmem:[%s2481 + $0x18] sm:$0xff]
    %v2486 = vpack.c.bf16 %v2475, %v2475
    %2487 = vmatprep.subr.bf16.mxu0 %v1968
    %2488 = vmatpush1.bf16.msra.mxu0 %v1967
    %2489 = vmatprep.subr.bf16.mxu0 %v1964
    %2490 = vmatpush1.bf16.msra.mxu0 %v1963
    %2491 = vmatprep.subr.bf16.mxu0 %v1960
    %2492 = vmatpush1.bf16.msra.mxu0 %v1959
    %2493 = vmatprep.subr.bf16.mxu0 %v1956
    %2494 = vmatpush1.bf16.msra.mxu0 %v1955
    %2495 = vmatprep.subr.bf16.mxu0 %v1952
    %2496 = vmatpush1.bf16.msra.mxu0 %v1951
    %2497 = vmatprep.subr.bf16.mxu0 %v1948
    %2498 = vmatpush1.bf16.msra.mxu0 %v1947
    %2499 = vmatprep.subr.bf16.mxu0 %v1944
    %2500 = vmatpush1.bf16.msra.mxu0 %v1943
    %2501 = vmatprep.subr.bf16.mxu0 %v1940
    %2502 = vmatpush1.bf16.msra.mxu0 %v1939
    %2503 = vmatprep.subr.bf16.mxu0 0
    %2504 = vmatpush2.bf16.msra.mxu0 0
    %2505 = vmatprep.subr.bf16.mxu0 0
    %2506 = vmatpush2.bf16.msra.mxu0 0
    %2507 = vmatprep.subr.bf16.mxu0 0
    %2508 = vmatpush2.bf16.msra.mxu0 0
    %2509 = vmatprep.subr.bf16.mxu0 0
    %2510 = vmatpush2.bf16.msra.mxu0 0
    %2511 = vmatprep.subr.bf16.mxu0 0
    %2512 = vmatpush2.bf16.msra.mxu0 0
    %2513 = vmatprep.subr.bf16.mxu0 0
    %2514 = vmatpush2.bf16.msra.mxu0 0
    %2515 = vmatprep.subr.bf16.mxu0 0
    %2516 = vmatpush2.bf16.msra.mxu0 0
    %2517 = vmatprep.subr.bf16.mxu0 0
    %2518 = vmatpush2.bf16.msra.mxu0 0
    %2519 = vmatprep.mubr.bf16.mxu0 0
    %2520 = vmatmul.mubr.bf16.gmra.mxu0 %v2486
    %v2521 = vpop.f32.mrf.mxu0
    %v2522 = vadd.f32 0.0, %v2521
    %v2523 = vpop.f32.mrf.mxu0
    %v2524 = vadd.f32 0.0, %v2523
    %v2525 = vpop.f32.mrf.mxu0
    %v2526 = vpop.f32.mrf.mxu0
    %2527 = vdwg.mxu0
    %2528 = vmatprep.subr.bf16.mxu0 %v1970
    %2529 = vmatpush1.bf16.msra.mxu0 %v1969
    %2530 = vmatprep.subr.bf16.mxu0 %v1966
    %2531 = vmatpush1.bf16.msra.mxu0 %v1965
    %2532 = vmatprep.subr.bf16.mxu0 %v1962
    %2533 = vmatpush1.bf16.msra.mxu0 %v1961
    %2534 = vmatprep.subr.bf16.mxu0 %v1958
    %2535 = vmatpush1.bf16.msra.mxu0 %v1957
    %2536 = vmatprep.subr.bf16.mxu0 %v1954
    %2537 = vmatpush1.bf16.msra.mxu0 %v1953
    %2538 = vmatprep.subr.bf16.mxu0 %v1950
    %2539 = vmatpush1.bf16.msra.mxu0 %v1949
    %2540 = vmatprep.subr.bf16.mxu0 %v1946
    %2541 = vmatpush1.bf16.msra.mxu0 %v1945
    %2542 = vmatprep.subr.bf16.mxu0 %v1942
    %2543 = vmatpush1.bf16.msra.mxu0 %v1941
    %2544 = vmatprep.subr.bf16.mxu0 0
    %2545 = vmatpush2.bf16.msra.mxu0 0
    %2546 = vmatprep.subr.bf16.mxu0 0
    %2547 = vmatpush2.bf16.msra.mxu0 0
    %2548 = vmatprep.subr.bf16.mxu0 0
    %2549 = vmatpush2.bf16.msra.mxu0 0
    %2550 = vmatprep.subr.bf16.mxu0 0
    %2551 = vmatpush2.bf16.msra.mxu0 0
    %2552 = vmatprep.subr.bf16.mxu0 0
    %2553 = vmatpush2.bf16.msra.mxu0 0
    %2554 = vmatprep.subr.bf16.mxu0 0
    %2555 = vmatpush2.bf16.msra.mxu0 0
    %2556 = vmatprep.subr.bf16.mxu0 0
    %2557 = vmatpush2.bf16.msra.mxu0 0
    %2558 = vmatprep.subr.bf16.mxu0 0
    %2559 = vmatpush2.bf16.msra.mxu0 0
    %2560 = vmatprep.mubr.bf16.mxu0 0
    %2561 = vmatmul.mubr.bf16.gmra.mxu0 %v2486
    %v2562 = vpop.f32.mrf.mxu0
    %v2563 = vadd.f32 0.0, %v2562
    %v2564 = vpop.f32.mrf.mxu0
    %v2565 = vadd.f32 0.0, %v2564
    %v2566 = vpop.f32.mrf.mxu0
    %v2567 = vpop.f32.mrf.mxu0
    %2568 = vdwg.mxu0
    %v2569 = vadd.f32 %v2482, %v2522
    %v2570 = vadd.f32 %v2483, %v2524
    %v2571 = vadd.f32 %v2484, %v2563
    %v2572 = vadd.f32 %v2485, %v2565
    %v2573 = vxor.u32 %v2569, 2147483648
    %v2574 = vmul.f32 %v2573, 1.442695
    %v2575 = vpow.pop %v2574
    %v2576 = vadd.f32 %v2575, 1.0
    %v2577 = vrcp.pop %v2576
    %v2578 = vmul.f32 1.0, %v2577
    %v2579 = vxor.u32 %v2570, 2147483648
    %v2580 = vmul.f32 %v2579, 1.442695
    %v2581 = vpow.pop %v2580
    %v2582 = vadd.f32 %v2581, 1.0
    %v2583 = vrcp.pop %v2582
    %v2584 = vmul.f32 1.0, %v2583
    %v2585 = vtanh.pop %v2571
    %v2586 = vxor.u32 %v2572, 2147483648
    %v2587 = vmul.f32 %v2586, 1.442695
    %v2588 = vpow.pop %v2587
    %v2589 = vadd.f32 %v2588, 1.0
    %v2590 = vrcp.pop %v2589
    %v2591 = vmul.f32 1.0, %v2590
    %v2592 = vmul.f32 %v2584, %v2473
    %v2593 = vmul.f32 %v2578, %v2585
    %v2594 = vadd.f32 %v2592, %v2593
    %v2595 = vtanh.pop %v2594
    %v2596 = vmul.f32 %v2591, %v2595
    %v2597 = vtanh.pop %v2596
    %s2598 = scalar_lea.vmem [#allocation3], 40
    %2599 = vst [vmem:[%s2598] sm:$0xff] %v2597
    %s2600 = smul.u32 6, 4
    %s2601 = smul.addr %s2600, 8
    %s2602 = scalar_lea.vmem [#allocation2], %s2601
    %v2603 = vld [vmem:[%s2602] sm:$0xff]
    %v2604 = vld [vmem:[%s2602 + $0x8] sm:$0xff]
    %v2605 = vld [vmem:[%s2602 + $0x10] sm:$0xff]
    %v2606 = vld [vmem:[%s2602 + $0x18] sm:$0xff]
    %v2607 = vpack.c.bf16 %v2596, %v2596
    %2608 = vmatprep.subr.bf16.mxu0 %v1968
    %2609 = vmatpush1.bf16.msra.mxu0 %v1967
    %2610 = vmatprep.subr.bf16.mxu0 %v1964
    %2611 = vmatpush1.bf16.msra.mxu0 %v1963
    %2612 = vmatprep.subr.bf16.mxu0 %v1960
    %2613 = vmatpush1.bf16.msra.mxu0 %v1959
    %2614 = vmatprep.subr.bf16.mxu0 %v1956
    %2615 = vmatpush1.bf16.msra.mxu0 %v1955
    %2616 = vmatprep.subr.bf16.mxu0 %v1952
    %2617 = vmatpush1.bf16.msra.mxu0 %v1951
    %2618 = vmatprep.subr.bf16.mxu0 %v1948
    %2619 = vmatpush1.bf16.msra.mxu0 %v1947
    %2620 = vmatprep.subr.bf16.mxu0 %v1944
    %2621 = vmatpush1.bf16.msra.mxu0 %v1943
    %2622 = vmatprep.subr.bf16.mxu0 %v1940
    %2623 = vmatpush1.bf16.msra.mxu0 %v1939
    %2624 = vmatprep.subr.bf16.mxu0 0
    %2625 = vmatpush2.bf16.msra.mxu0 0
    %2626 = vmatprep.subr.bf16.mxu0 0
    %2627 = vmatpush2.bf16.msra.mxu0 0
    %2628 = vmatprep.subr.bf16.mxu0 0
    %2629 = vmatpush2.bf16.msra.mxu0 0
    %2630 = vmatprep.subr.bf16.mxu0 0
    %2631 = vmatpush2.bf16.msra.mxu0 0
    %2632 = vmatprep.subr.bf16.mxu0 0
    %2633 = vmatpush2.bf16.msra.mxu0 0
    %2634 = vmatprep.subr.bf16.mxu0 0
    %2635 = vmatpush2.bf16.msra.mxu0 0
    %2636 = vmatprep.subr.bf16.mxu0 0
    %2637 = vmatpush2.bf16.msra.mxu0 0
    %2638 = vmatprep.subr.bf16.mxu0 0
    %2639 = vmatpush2.bf16.msra.mxu0 0
    %2640 = vmatprep.mubr.bf16.mxu0 0
    %2641 = vmatmul.mubr.bf16.gmra.mxu0 %v2607
    %v2642 = vpop.f32.mrf.mxu0
    %v2643 = vadd.f32 0.0, %v2642
    %v2644 = vpop.f32.mrf.mxu0
    %v2645 = vadd.f32 0.0, %v2644
    %v2646 = vpop.f32.mrf.mxu0
    %v2647 = vpop.f32.mrf.mxu0
    %2648 = vdwg.mxu0
    %2649 = vmatprep.subr.bf16.mxu0 %v1970
    %2650 = vmatpush1.bf16.msra.mxu0 %v1969
    %2651 = vmatprep.subr.bf16.mxu0 %v1966
    %2652 = vmatpush1.bf16.msra.mxu0 %v1965
    %2653 = vmatprep.subr.bf16.mxu0 %v1962
    %2654 = vmatpush1.bf16.msra.mxu0 %v1961
    %2655 = vmatprep.subr.bf16.mxu0 %v1958
    %2656 = vmatpush1.bf16.msra.mxu0 %v1957
    %2657 = vmatprep.subr.bf16.mxu0 %v1954
    %2658 = vmatpush1.bf16.msra.mxu0 %v1953
    %2659 = vmatprep.subr.bf16.mxu0 %v1950
    %2660 = vmatpush1.bf16.msra.mxu0 %v1949
    %2661 = vmatprep.subr.bf16.mxu0 %v1946
    %2662 = vmatpush1.bf16.msra.mxu0 %v1945
    %2663 = vmatprep.subr.bf16.mxu0 %v1942
    %2664 = vmatpush1.bf16.msra.mxu0 %v1941
    %2665 = vmatprep.subr.bf16.mxu0 0
    %2666 = vmatpush2.bf16.msra.mxu0 0
    %2667 = vmatprep.subr.bf16.mxu0 0
    %2668 = vmatpush2.bf16.msra.mxu0 0
    %2669 = vmatprep.subr.bf16.mxu0 0
    %2670 = vmatpush2.bf16.msra.mxu0 0
    %2671 = vmatprep.subr.bf16.mxu0 0
    %2672 = vmatpush2.bf16.msra.mxu0 0
    %2673 = vmatprep.subr.bf16.mxu0 0
    %2674 = vmatpush2.bf16.msra.mxu0 0
    %2675 = vmatprep.subr.bf16.mxu0 0
    %2676 = vmatpush2.bf16.msra.mxu0 0
    %2677 = vmatprep.subr.bf16.mxu0 0
    %2678 = vmatpush2.bf16.msra.mxu0 0
    %2679 = vmatprep.subr.bf16.mxu0 0
    %2680 = vmatpush2.bf16.msra.mxu0 0
    %2681 = vmatprep.mubr.bf16.mxu0 0
    %2682 = vmatmul.mubr.bf16.gmra.mxu0 %v2607
    %v2683 = vpop.f32.mrf.mxu0
    %v2684 = vadd.f32 0.0, %v2683
    %v2685 = vpop.f32.mrf.mxu0
    %v2686 = vadd.f32 0.0, %v2685
    %v2687 = vpop.f32.mrf.mxu0
    %v2688 = vpop.f32.mrf.mxu0
    %2689 = vdwg.mxu0
    %v2690 = vadd.f32 %v2603, %v2643
    %v2691 = vadd.f32 %v2604, %v2645
    %v2692 = vadd.f32 %v2605, %v2684
    %v2693 = vadd.f32 %v2606, %v2686
    %v2694 = vxor.u32 %v2690, 2147483648
    %v2695 = vmul.f32 %v2694, 1.442695
    %v2696 = vpow.pop %v2695
    %v2697 = vadd.f32 %v2696, 1.0
    %v2698 = vrcp.pop %v2697
    %v2699 = vmul.f32 1.0, %v2698
    %v2700 = vxor.u32 %v2691, 2147483648
    %v2701 = vmul.f32 %v2700, 1.442695
    %v2702 = vpow.pop %v2701
    %v2703 = vadd.f32 %v2702, 1.0
    %v2704 = vrcp.pop %v2703
    %v2705 = vmul.f32 1.0, %v2704
    %v2706 = vtanh.pop %v2692
    %v2707 = vxor.u32 %v2693, 2147483648
    %v2708 = vmul.f32 %v2707, 1.442695
    %v2709 = vpow.pop %v2708
    %v2710 = vadd.f32 %v2709, 1.0
    %v2711 = vrcp.pop %v2710
    %v2712 = vmul.f32 1.0, %v2711
    %v2713 = vmul.f32 %v2705, %v2594
    %v2714 = vmul.f32 %v2699, %v2706
    %v2715 = vadd.f32 %v2713, %v2714
    %v2716 = vtanh.pop %v2715
    %v2717 = vmul.f32 %v2712, %v2716
    %v2718 = vtanh.pop %v2717
    %s2719 = scalar_lea.vmem [#allocation3], 48
    %2720 = vst [vmem:[%s2719] sm:$0xff] %v2718
    %s2721 = smul.u32 7, 4
    %s2722 = smul.addr %s2721, 8
    %s2723 = scalar_lea.vmem [#allocation2], %s2722
    %v2724 = vld [vmem:[%s2723] sm:$0xff]
    %v2725 = vld [vmem:[%s2723 + $0x8] sm:$0xff]
    %v2726 = vld [vmem:[%s2723 + $0x10] sm:$0xff]
    %v2727 = vld [vmem:[%s2723 + $0x18] sm:$0xff]
    %v2728 = vpack.c.bf16 %v2717, %v2717
    %2729 = vmatprep.subr.bf16.mxu0 %v1968
    %2730 = vmatpush1.bf16.msra.mxu0 %v1967
    %2731 = vmatprep.subr.bf16.mxu0 %v1964
    %2732 = vmatpush1.bf16.msra.mxu0 %v1963
    %2733 = vmatprep.subr.bf16.mxu0 %v1960
    %2734 = vmatpush1.bf16.msra.mxu0 %v1959
    %2735 = vmatprep.subr.bf16.mxu0 %v1956
    %2736 = vmatpush1.bf16.msra.mxu0 %v1955
    %2737 = vmatprep.subr.bf16.mxu0 %v1952
    %2738 = vmatpush1.bf16.msra.mxu0 %v1951
    %2739 = vmatprep.subr.bf16.mxu0 %v1948
    %2740 = vmatpush1.bf16.msra.mxu0 %v1947
    %2741 = vmatprep.subr.bf16.mxu0 %v1944
    %2742 = vmatpush1.bf16.msra.mxu0 %v1943
    %2743 = vmatprep.subr.bf16.mxu0 %v1940
    %2744 = vmatpush1.bf16.msra.mxu0 %v1939
    %2745 = vmatprep.subr.bf16.mxu0 0
    %2746 = vmatpush2.bf16.msra.mxu0 0
    %2747 = vmatprep.subr.bf16.mxu0 0
    %2748 = vmatpush2.bf16.msra.mxu0 0
    %2749 = vmatprep.subr.bf16.mxu0 0
    %2750 = vmatpush2.bf16.msra.mxu0 0
    %2751 = vmatprep.subr.bf16.mxu0 0
    %2752 = vmatpush2.bf16.msra.mxu0 0
    %2753 = vmatprep.subr.bf16.mxu0 0
    %2754 = vmatpush2.bf16.msra.mxu0 0
    %2755 = vmatprep.subr.bf16.mxu0 0
    %2756 = vmatpush2.bf16.msra.mxu0 0
    %2757 = vmatprep.subr.bf16.mxu0 0
    %2758 = vmatpush2.bf16.msra.mxu0 0
    %2759 = vmatprep.subr.bf16.mxu0 0
    %2760 = vmatpush2.bf16.msra.mxu0 0
    %2761 = vmatprep.mubr.bf16.mxu0 0
    %2762 = vmatmul.mubr.bf16.gmra.mxu0 %v2728
    %v2763 = vpop.f32.mrf.mxu0
    %v2764 = vadd.f32 0.0, %v2763
    %v2765 = vpop.f32.mrf.mxu0
    %v2766 = vadd.f32 0.0, %v2765
    %v2767 = vpop.f32.mrf.mxu0
    %v2768 = vpop.f32.mrf.mxu0
    %2769 = vdwg.mxu0
    %2770 = vmatprep.subr.bf16.mxu0 %v1970
    %2771 = vmatpush1.bf16.msra.mxu0 %v1969
    %2772 = vmatprep.subr.bf16.mxu0 %v1966
    %2773 = vmatpush1.bf16.msra.mxu0 %v1965
    %2774 = vmatprep.subr.bf16.mxu0 %v1962
    %2775 = vmatpush1.bf16.msra.mxu0 %v1961
    %2776 = vmatprep.subr.bf16.mxu0 %v1958
    %2777 = vmatpush1.bf16.msra.mxu0 %v1957
    %2778 = vmatprep.subr.bf16.mxu0 %v1954
    %2779 = vmatpush1.bf16.msra.mxu0 %v1953
    %2780 = vmatprep.subr.bf16.mxu0 %v1950
    %2781 = vmatpush1.bf16.msra.mxu0 %v1949
    %2782 = vmatprep.subr.bf16.mxu0 %v1946
    %2783 = vmatpush1.bf16.msra.mxu0 %v1945
    %2784 = vmatprep.subr.bf16.mxu0 %v1942
    %2785 = vmatpush1.bf16.msra.mxu0 %v1941
    %2786 = vmatprep.subr.bf16.mxu0 0
    %2787 = vmatpush2.bf16.msra.mxu0 0
    %2788 = vmatprep.subr.bf16.mxu0 0
    %2789 = vmatpush2.bf16.msra.mxu0 0
    %2790 = vmatprep.subr.bf16.mxu0 0
    %2791 = vmatpush2.bf16.msra.mxu0 0
    %2792 = vmatprep.subr.bf16.mxu0 0
    %2793 = vmatpush2.bf16.msra.mxu0 0
    %2794 = vmatprep.subr.bf16.mxu0 0
    %2795 = vmatpush2.bf16.msra.mxu0 0
    %2796 = vmatprep.subr.bf16.mxu0 0
    %2797 = vmatpush2.bf16.msra.mxu0 0
    %2798 = vmatprep.subr.bf16.mxu0 0
    %2799 = vmatpush2.bf16.msra.mxu0 0
    %2800 = vmatprep.subr.bf16.mxu0 0
    %2801 = vmatpush2.bf16.msra.mxu0 0
    %2802 = vmatprep.mubr.bf16.mxu0 0
    %2803 = vmatmul.mubr.bf16.gmra.mxu0 %v2728
    %v2804 = vpop.f32.mrf.mxu0
    %v2805 = vadd.f32 0.0, %v2804
    %v2806 = vpop.f32.mrf.mxu0
    %v2807 = vadd.f32 0.0, %v2806
    %v2808 = vpop.f32.mrf.mxu0
    %v2809 = vpop.f32.mrf.mxu0
    %2810 = vdwg.mxu0
    %v2811 = vadd.f32 %v2724, %v2764
    %v2812 = vadd.f32 %v2725, %v2766
    %v2813 = vadd.f32 %v2726, %v2805
    %v2814 = vadd.f32 %v2727, %v2807
    %v2815 = vxor.u32 %v2811, 2147483648
    %v2816 = vmul.f32 %v2815, 1.442695
    %v2817 = vpow.pop %v2816
    %v2818 = vadd.f32 %v2817, 1.0
    %v2819 = vrcp.pop %v2818
    %v2820 = vmul.f32 1.0, %v2819
    %v2821 = vxor.u32 %v2812, 2147483648
    %v2822 = vmul.f32 %v2821, 1.442695
    %v2823 = vpow.pop %v2822
    %v2824 = vadd.f32 %v2823, 1.0
    %v2825 = vrcp.pop %v2824
    %v2826 = vmul.f32 1.0, %v2825
    %v2827 = vtanh.pop %v2813
    %v2828 = vxor.u32 %v2814, 2147483648
    %v2829 = vmul.f32 %v2828, 1.442695
    %v2830 = vpow.pop %v2829
    %v2831 = vadd.f32 %v2830, 1.0
    %v2832 = vrcp.pop %v2831
    %v2833 = vmul.f32 1.0, %v2832
    %v2834 = vmul.f32 %v2826, %v2715
    %v2835 = vmul.f32 %v2820, %v2827
    %v2836 = vadd.f32 %v2834, %v2835
    %v2837 = vtanh.pop %v2836
    %v2838 = vmul.f32 %v2833, %v2837
    %v2839 = vtanh.pop %v2838
    %s2840 = scalar_lea.vmem [#allocation3], 56
    %2841 = vst [vmem:[%s2840] sm:$0xff] %v2839
    %v2842 = vld [vmem:[#allocation3] sm:$0xff]
    %v2843 = vld [vmem:[#allocation3 + $0x8] sm:$0xff]
    %v2844 = vld [vmem:[#allocation3 + $0x10] sm:$0xff]
    %v2845 = vld [vmem:[#allocation3 + $0x18] sm:$0xff]
    %v2846 = vld [vmem:[#allocation3 + $0x20] sm:$0xff]
    %v2847 = vld [vmem:[#allocation3 + $0x28] sm:$0xff]
    %v2848 = vld [vmem:[#allocation3 + $0x30] sm:$0xff]
    %v2849 = vld [vmem:[#allocation3 + $0x38] sm:$0xff]
    %v2850 = vpack.c.bf16 %v2843, %v2842
    %v2851 = vpack.c.bf16 %v2845, %v2844
    %v2852 = vpack.c.bf16 %v2847, %v2846
    %v2853 = vpack.c.bf16 %v2849, %v2848
    %v2854 = vld [vmem:[%s12] sm:$0xf]
    %v2855 = vld [vmem:[%s12 + $0x4] sm:$0xf]
    %v2856 = vld [vmem:[%s12 + $0x8] sm:$0xf]
    %v2857 = vld [vmem:[%s12 + $0xc] sm:$0xf]
    %v2858 = vld [vmem:[%s12 + $0x10] sm:$0xf]
    %v2859 = vld [vmem:[%s12 + $0x14] sm:$0xf]
    %v2860 = vld [vmem:[%s12 + $0x18] sm:$0xf]
    %v2861 = vld [vmem:[%s12 + $0x1c] sm:$0xf]
    %v2862 = vld [vmem:[%s12 + $0x20] sm:$0xf]
    %v2863 = vld [vmem:[%s12 + $0x24] sm:$0xf]
    %v2864 = vld [vmem:[%s12 + $0x28] sm:$0xf]
    %v2865 = vld [vmem:[%s12 + $0x2c] sm:$0xf]
    %v2866 = vld [vmem:[%s12 + $0x30] sm:$0xf]
    %v2867 = vld [vmem:[%s12 + $0x34] sm:$0xf]
    %v2868 = vld [vmem:[%s12 + $0x38] sm:$0xf]
    %v2869 = vld [vmem:[%s12 + $0x3c] sm:$0xf]
    %v2870 = vld [vmem:[%s13] sm:$0x1]
    %v2872 = vlaneseq
    %v2873 = vshrl.u32 %v2872, 7
    %v2874 = vsub.s32 0, %v2873
    %v2875 = vrot.slane %v2870, %v2874
    %v2893 = vunpack.c.l.b16 %v2854
    %v2894 = vunpack.c.l.b16 %v2855
    %v2895 = vunpack.c.l.b16 %v2856
    %v2896 = vunpack.c.l.b16 %v2857
    %v2897 = vunpack.c.l.b16 %v2858
    %v2898 = vunpack.c.l.b16 %v2859
    %v2899 = vunpack.c.l.b16 %v2860
    %v2900 = vunpack.c.l.b16 %v2861
    %v2901 = vunpack.c.l.b16 %v2862
    %v2902 = vunpack.c.l.b16 %v2863
    %v2903 = vunpack.c.l.b16 %v2864
    %v2904 = vunpack.c.l.b16 %v2865
    %v2905 = vunpack.c.l.b16 %v2866
    %v2906 = vunpack.c.l.b16 %v2867
    %v2907 = vunpack.c.l.b16 %v2868
    %v2908 = vunpack.c.l.b16 %v2869
    %v2909 = vpack.c.b16 %v2894, %v2893
    %v2910 = vpack.c.b16 %v2896, %v2895
    %v2911 = vpack.c.b16 %v2898, %v2897
    %v2912 = vpack.c.b16 %v2900, %v2899
    %v2913 = vpack.c.b16 %v2902, %v2901
    %v2914 = vpack.c.b16 %v2904, %v2903
    %v2915 = vpack.c.b16 %v2906, %v2905
    %v2916 = vpack.c.b16 %v2908, %v2907
    %2925 = vmatprep.subr.bf16.mxu0 0
    %2926 = vmatpush1.bf16.msra.mxu0 %v2916
    %2927 = vmatprep.subr.bf16.mxu0 0
    %2928 = vmatpush1.bf16.msra.mxu0 %v2915
    %2929 = vmatprep.subr.bf16.mxu0 0
    %2930 = vmatpush1.bf16.msra.mxu0 %v2914
    %2931 = vmatprep.subr.bf16.mxu0 0
    %2932 = vmatpush1.bf16.msra.mxu0 %v2913
    %2933 = vmatprep.subr.bf16.mxu0 0
    %2934 = vmatpush1.bf16.msra.mxu0 %v2912
    %2935 = vmatprep.subr.bf16.mxu0 0
    %2936 = vmatpush1.bf16.msra.mxu0 %v2911
    %2937 = vmatprep.subr.bf16.mxu0 0
    %2938 = vmatpush1.bf16.msra.mxu0 %v2910
    %2939 = vmatprep.subr.bf16.mxu0 0
    %2940 = vmatpush1.bf16.msra.mxu0 %v2909
    %2941 = vmatprep.subr.bf16.mxu0 0
    %2942 = vmatpush2.bf16.msra.mxu0 0
    %2943 = vmatprep.subr.bf16.mxu0 0
    %2944 = vmatpush2.bf16.msra.mxu0 0
    %2945 = vmatprep.subr.bf16.mxu0 0
    %2946 = vmatpush2.bf16.msra.mxu0 0
    %2947 = vmatprep.subr.bf16.mxu0 0
    %2948 = vmatpush2.bf16.msra.mxu0 0
    %2949 = vmatprep.subr.bf16.mxu0 0
    %2950 = vmatpush2.bf16.msra.mxu0 0
    %2951 = vmatprep.subr.bf16.mxu0 0
    %2952 = vmatpush2.bf16.msra.mxu0 0
    %2953 = vmatprep.subr.bf16.mxu0 0
    %2954 = vmatpush2.bf16.msra.mxu0 0
    %2955 = vmatprep.subr.bf16.mxu0 0
    %2956 = vmatpush2.bf16.msra.mxu0 0
    %2957 = vmatprep.mubr.bf16.mxu0 0
    %2958 = vmatmul.mubr.bf16.gmra.mxu0 %v2850
    %v2959 = vpop.f32.mrf.mxu0
    %v2960 = vadd.f32 %v2875, %v2959
    %v2961 = vpop.f32.mrf.mxu0
    %v2962 = vpop.f32.mrf.mxu0
    %v2963 = vadd.f32 %v2875, %v2962
    %v2964 = vpop.f32.mrf.mxu0
    %2965 = vmatprep.mubr.bf16.mxu0 0
    %2966 = vmatmul.mubr.bf16.gmra.mxu0 %v2851
    %v2967 = vpop.f32.mrf.mxu0
    %v2968 = vadd.f32 %v2875, %v2967
    %v2969 = vpop.f32.mrf.mxu0
    %v2970 = vpop.f32.mrf.mxu0
    %v2971 = vadd.f32 %v2875, %v2970
    %v2972 = vpop.f32.mrf.mxu0
    %2973 = vmatprep.mubr.bf16.mxu0 0
    %2974 = vmatmul.mubr.bf16.gmra.mxu0 %v2852
    %v2975 = vpop.f32.mrf.mxu0
    %v2976 = vadd.f32 %v2875, %v2975
    %v2977 = vpop.f32.mrf.mxu0
    %v2978 = vpop.f32.mrf.mxu0
    %v2979 = vadd.f32 %v2875, %v2978
    %v2980 = vpop.f32.mrf.mxu0
    %2981 = vmatprep.mubr.bf16.mxu0 0
    %2982 = vmatmul.mubr.bf16.gmra.mxu0 %v2853
    %v2983 = vpop.f32.mrf.mxu0
    %v2984 = vadd.f32 %v2875, %v2983
    %v2985 = vpop.f32.mrf.mxu0
    %v2986 = vpop.f32.mrf.mxu0
    %v2987 = vadd.f32 %v2875, %v2986
    %v2988 = vpop.f32.mrf.mxu0
    %2989 = vdwg.mxu0
    %2990 = vmax.xlane.f32.xlu0 %v2960
    %v2991 = vpop.xlane.xlu0 %2990
    %2992 = vmax.xlane.f32.xlu0 %v2963
    %v2993 = vpop.xlane.xlu0 %2992
    %2994 = vmax.xlane.f32.xlu0 %v2968
    %v2995 = vpop.xlane.xlu0 %2994
    %2996 = vmax.xlane.f32.xlu0 %v2971
    %v2997 = vpop.xlane.xlu0 %2996
    %2998 = vmax.xlane.f32.xlu0 %v2976
    %v2999 = vpop.xlane.xlu0 %2998
    %3000 = vmax.xlane.f32.xlu0 %v2979
    %v3001 = vpop.xlane.xlu0 %3000
    %3002 = vmax.xlane.f32.xlu0 %v2984
    %v3003 = vpop.xlane.xlu0 %3002
    %3004 = vmax.xlane.f32.xlu0 %v2987
    %v3005 = vpop.xlane.xlu0 %3004
    %v3006 = vsub.f32 %v2960, %v2991
    %v3007 = vsub.f32 %v2963, %v2993
    %v3008 = vsub.f32 %v2968, %v2995
    %v3009 = vsub.f32 %v2971, %v2997
    %v3010 = vsub.f32 %v2976, %v2999
    %v3011 = vsub.f32 %v2979, %v3001
    %v3012 = vsub.f32 %v2984, %v3003
    %v3013 = vsub.f32 %v2987, %v3005
    %v3014 = vmul.f32 %v3006, 1.442695
    %v3015 = vpow.pop %v3014
    %v3016 = vmul.f32 %v3007, 1.442695
    %v3017 = vpow.pop %v3016
    %v3018 = vmul.f32 %v3008, 1.442695
    %v3019 = vpow.pop %v3018
    %v3020 = vmul.f32 %v3009, 1.442695
    %v3021 = vpow.pop %v3020
    %v3022 = vmul.f32 %v3010, 1.442695
    %v3023 = vpow.pop %v3022
    %v3024 = vmul.f32 %v3011, 1.442695
    %v3025 = vpow.pop %v3024
    %v3026 = vmul.f32 %v3012, 1.442695
    %v3027 = vpow.pop %v3026
    %v3028 = vmul.f32 %v3013, 1.442695
    %v3029 = vpow.pop %v3028
    %3030 = vadd.xlane.f32.xlu0 %v3015
    %v3031 = vpop.xlane.xlu0 %3030
    %3032 = vadd.xlane.f32.xlu0 %v3017
    %v3033 = vpop.xlane.xlu0 %3032
    %3034 = vadd.xlane.f32.xlu0 %v3019
    %v3035 = vpop.xlane.xlu0 %3034
    %3036 = vadd.xlane.f32.xlu0 %v3021
    %v3037 = vpop.xlane.xlu0 %3036
    %3038 = vadd.xlane.f32.xlu0 %v3023
    %v3039 = vpop.xlane.xlu0 %3038
    %3040 = vadd.xlane.f32.xlu0 %v3025
    %v3041 = vpop.xlane.xlu0 %3040
    %3042 = vadd.xlane.f32.xlu0 %v3027
    %v3043 = vpop.xlane.xlu0 %3042
    %3044 = vadd.xlane.f32.xlu0 %v3029
    %v3045 = vpop.xlane.xlu0 %3044
    %v3046 = vrcp.pop %v3031
    %v3047 = vmul.f32 %v3015, %v3046
    %v3048 = vrcp.pop %v3033
    %v3049 = vmul.f32 %v3017, %v3048
    %v3050 = vrcp.pop %v3035
    %v3051 = vmul.f32 %v3019, %v3050
    %v3052 = vrcp.pop %v3037
    %v3053 = vmul.f32 %v3021, %v3052
    %v3054 = vrcp.pop %v3039
    %v3055 = vmul.f32 %v3023, %v3054
    %v3056 = vrcp.pop %v3041
    %v3057 = vmul.f32 %v3025, %v3056
    %v3058 = vrcp.pop %v3043
    %v3059 = vmul.f32 %v3027, %v3058
    %v3060 = vrcp.pop %v3045
    %v3061 = vmul.f32 %v3029, %v3060
    %v3062 = vld [vmem:[%s4] sm:$0xff]
    %v3063 = vld [vmem:[%s4 + $0x8] sm:$0xff]
    %v3064 = vld [vmem:[%s4 + $0x10] sm:$0xff]
    %v3065 = vld [vmem:[%s4 + $0x18] sm:$0xff]
    %v3066 = vld [vmem:[%s4 + $0x20] sm:$0xff]
    %v3067 = vld [vmem:[%s4 + $0x28] sm:$0xff]
    %v3068 = vld [vmem:[%s4 + $0x30] sm:$0xff]
    %v3069 = vld [vmem:[%s4 + $0x38] sm:$0xff]
    %v3070 = vmul.f32 %v3047, %v3062
    %v3071 = vmul.f32 %v3049, %v3063
    %v3072 = vmul.f32 %v3051, %v3064
    %v3073 = vmul.f32 %v3053, %v3065
    %v3074 = vmul.f32 %v3055, %v3066
    %v3075 = vmul.f32 %v3057, %v3067
    %v3076 = vmul.f32 %v3059, %v3068
    %v3077 = vmul.f32 %v3061, %v3069
    %3078 = vst [vmem:[%s14] sm:$0xff] %v3070
    %3079 = vst [vmem:[%s14 + $0x8] sm:$0xff] %v3071
    %3080 = vst [vmem:[%s14 + $0x10] sm:$0xff] %v3072
    %3081 = vst [vmem:[%s14 + $0x18] sm:$0xff] %v3073
    %3082 = vst [vmem:[%s14 + $0x20] sm:$0xff] %v3074
    %3083 = vst [vmem:[%s14 + $0x28] sm:$0xff] %v3075
    %3084 = vst [vmem:[%s14 + $0x30] sm:$0xff] %v3076
    %3085 = vst [vmem:[%s14 + $0x38] sm:$0xff] %v3077
  $region65: #{hybrid_code_network.1} parent=0 // pred_fallthru
    _
  // Predicated region
  $region66: #{hybrid_code_network.1} parent=0 // pred_check
    _
  $region67: #{hybrid_code_network.1} parent=0 // pred_check_branch
    %3087 = sbr.rel (0) target = $region69
  $region68: #{hybrid_code_network.1} parent=0 // pred_region
    _
  $region69: #{hybrid_code_network.1} parent=0 // pred_fallthru
    _
  // Predicated region
  $region70: #{hybrid_code_network.1} parent=0 // pred_check
    _
  $region71: #{hybrid_code_network.1} parent=0 // pred_check_branch
    %3089 = sbr.rel (0) target = $region73
  $region72: #{hybrid_code_network.1} parent=0 // pred_region
    _
  $region73: #{hybrid_code_network.1} parent=0 // pred_fallthru
    _

</llo_original>
